<compile_context>
chip_gen: v7x
topology: tpu7x:2x2x1
jax: 0.10.0
libtpu: 0.0.40
codegen_flags: <defaults>
</compile_context>

<pallas_src>
import functools

import jax
import jax.numpy as jnp
from jax.experimental import pallas as pl
from jax.experimental.pallas import tpu as pltpu

IN_FEATURES = 3 * 100 * 100     # 30000
HIDDEN = 500
OUT = 9

TK = 6016                       # fc1 K tile = 47*128; 5 reduction steps over K_PAD
K_PAD = pl.cdiv(IN_FEATURES, TK) * TK       # 30080 = 235*128 (only 80 pad rows)
H_SPLIT = 2                     # HIDDEN column halves (parallel axis -> 2 TCs on v7x)
H_PAD = 512                     # HIDDEN padded to a multiple of 128
H_BLK = H_PAD // H_SPLIT        # 256


def _lenet_kernel(x_ref, w1_ref, b1_ref, w2_ref, b2_ref, o_ref, acc_ref):
    j = pl.program_id(0)        # HIDDEN half (parallel)
    k = pl.program_id(1)        # fc1 contraction step (reduction)

    @pl.when(k == 0)
    def _():
        acc_ref[...] = jnp.zeros_like(acc_ref)

    # fc1 partial for this HIDDEN half: bf16 (B, tk) @ bf16 (tk, H_BLK), f32 acc.
    acc_ref[...] += jnp.dot(x_ref[...], w1_ref[...],
                            preferred_element_type=jnp.float32)

    @pl.when(k == pl.num_programs(1) - 1)
    def _():
        h = jnp.maximum(acc_ref[...] + b1_ref[...], 0.0)            # ReLU(fc1) half
        y = jnp.dot(h, w2_ref[...], preferred_element_type=jnp.float32)
        # fc2 bias is contributed exactly once (by half 0).
        y = y + b2_ref[...] * (j == 0).astype(jnp.float32)
        o_ref[...] = y.astype(o_ref.dtype)                          # partial logits


@functools.partial(jax.jit, static_argnames=("tk",))
def lenet_forward(x, w1, b1, w2, b2, *, tk=TK):
    """x: (B, IN_FEATURES) f32.
    w1: (H_SPLIT, K_PAD, H_BLK) bf16, b1: (1, H_PAD) f32, w2: (H_PAD, OUT) f32,
    b2: (1, OUT) f32 -- the pre-padded kernel layout from prepare_params()."""
    B, K = x.shape
    assert K_PAD % tk == 0
    k_steps = K_PAD // tk

    # Only the tiny activation is padded/cast inside jit (a few KB); the 30 MB
    # bf16 w1 is pre-padded & pre-cast once outside the per-call path.
    x = x.astype(jnp.bfloat16)
    if K != K_PAD:
        x = jnp.pad(x, ((0, 0), (0, K_PAD - K)))

    bytes_accessed = (2 * x.size + 2 * w1.size
                      + 4 * (b1.size + w2.size + b2.size + H_SPLIT * B * OUT))

    partials = pl.pallas_call(
        _lenet_kernel,
        out_shape=jax.ShapeDtypeStruct((H_SPLIT, B, OUT), jnp.float32),
        grid_spec=pltpu.PrefetchScalarGridSpec(
            num_scalar_prefetch=0,
            grid=(H_SPLIT, k_steps),
            in_specs=[
                pl.BlockSpec((B, tk), lambda j, k: (0, k)),            # x K-tile
                pl.BlockSpec((None, tk, H_BLK), lambda j, k: (j, k, 0)),  # w1 half
                pl.BlockSpec((1, H_BLK), lambda j, k: (0, j)),         # b1 half
                pl.BlockSpec((H_BLK, OUT), lambda j, k: (j, 0)),       # w2 half rows
                pl.BlockSpec((1, OUT), lambda j, k: (0, 0)),           # b2 (resident)
            ],
            out_specs=pl.BlockSpec((None, B, OUT), lambda j, k: (j, 0, 0)),
            scratch_shapes=[pltpu.VMEM((B, H_BLK), jnp.float32)],      # fc1 accumulator
        ),
        compiler_params=pltpu.CompilerParams(
            dimension_semantics=("parallel", "arbitrary"),
            # ~2 x 3.1 MB double-buffered bf16 w1 tile + x + scratch: fits easily
            # in v7x's 64 MiB VMEM and covers v5e/v6e's smaller scoped default.
            vmem_limit_bytes=40 << 20,
        ),
        cost_estimate=pl.CostEstimate(
            flops=2 * B * K_PAD * H_PAD + 2 * B * H_PAD * OUT,
            transcendentals=0,
            bytes_accessed=bytes_accessed,
        ),
    )(x, w1, b1, w2, b2)

    # Tiny epilogue: sum the two per-half partial logits -> (B, OUT).
    # (Kept as partials so the two "parallel" halves never write the same
    #  output block -- race-free when v7x shards j across its 2 TensorCores.)
    return jnp.sum(partials, axis=0)


def prepare_params(w1_t, b1, w2_t, b2):
    """PyTorch-layout params ((out,in) weights) -> padded bf16 kernel layout.

    Runs ONCE outside the jitted forward so the 30 MB bf16 w1 pad/reshape/cast
    never sits on the per-call path (zero padding K and HIDDEN is exact)."""
    w1 = jnp.pad(w1_t.T, ((0, K_PAD - IN_FEATURES), (0, H_PAD - HIDDEN)))
    w1 = w1.reshape(K_PAD, H_SPLIT, H_BLK).transpose(1, 0, 2)   # (H_SPLIT,K_PAD,H_BLK)
    w1 = w1.astype(jnp.bfloat16)                                # halve the HBM stream
    b1p = jnp.pad(b1, (0, H_PAD - HIDDEN)).reshape(1, H_PAD)
    w2 = jnp.pad(w2_t.T, ((0, H_PAD - HIDDEN), (0, 0)))         # (H_PAD, OUT), f32
    b2p = b2.reshape(1, OUT)
    return w1, b1p, w2, b2p


def init_params(key):
    """Deterministic init mimicking torch.nn.Linear (uniform +-1/sqrt(fan_in)),
    kept in PyTorch (out, in) layout."""
    k1, k2, k3, k4 = jax.random.split(key, 4)
    bound1 = 1.0 / jnp.sqrt(jnp.float32(IN_FEATURES))
    bound2 = 1.0 / jnp.sqrt(jnp.float32(HIDDEN))
    w1_t = jax.random.uniform(k1, (HIDDEN, IN_FEATURES), jnp.float32, -bound1, bound1)
    b1 = jax.random.uniform(k2, (HIDDEN,), jnp.float32, -bound1, bound1)
    w2_t = jax.random.uniform(k3, (OUT, HIDDEN), jnp.float32, -bound2, bound2)
    b2 = jax.random.uniform(k4, (OUT,), jnp.float32, -bound2, bound2)
    return w1_t, b1, w2_t, b2


if __name__ == "__main__":
    key = jax.random.PRNGKey(0)
    kx, kp = jax.random.split(key)

    B = 2  # small batch; feature dims fixed by the module (cost ~independent of B)
    x = jax.random.normal(kx, (B, IN_FEATURES), jnp.float32)

    w1_t, b1, w2_t, b2 = init_params(kp)                 # PyTorch layout, f32
    kw1, kb1, kw2, kb2 = prepare_params(w1_t, b1, w2_t, b2)  # kernel layout (once)

    out = lenet_forward(x, kw1, kb1, kw2, kb2)
    out = jax.block_until_ready(out)
    assert out.shape == (B, OUT)

    # Reference with the same bf16 inputs the kernel sees (f32 accumulation),
    # mirroring the PyTorch math relu(x @ W1^T + b1) @ W2^T + b2.
    x_bf = x.astype(jnp.bfloat16).astype(jnp.float32)
    w1_bf = w1_t.T.astype(jnp.bfloat16).astype(jnp.float32)
    ref_bf = jnp.maximum(x_bf @ w1_bf + b1, 0.0) @ w2_t.T + b2
    assert jnp.allclose(out, ref_bf, atol=1e-2, rtol=1e-2)

    # Sanity check against the full-f32 reference (looser: bf16 weight cast).
    ref_f32 = jnp.maximum(x @ w1_t.T + b1, 0.0) @ w2_t.T + b2
    assert jnp.allclose(out, ref_f32, atol=5e-2, rtol=5e-2)

    print("KERNEL_OK")
</pallas_src>

<mosaic_0001>
module attributes {stable_mosaic.version = 11 : i64} {
  func.func @_lenet_kernel(%arg0: i32, %arg1: i32, %arg2: memref<2x6016xbf16, #tpu.memory_space<vmem>>, %arg3: memref<1x6016x256xbf16, #tpu.memory_space<vmem>>, %arg4: memref<1x256xf32, #tpu.memory_space<vmem>>, %arg5: memref<256x9xf32, #tpu.memory_space<vmem>>, %arg6: memref<1x9xf32, #tpu.memory_space<vmem>>, %arg7: memref<1x2x9xf32, #tpu.memory_space<vmem>>, %arg8: memref<2x256xf32, #tpu.memory_space<vmem>>) attributes {dimension_semantics = [#tpu.dimension_semantics<parallel>, #tpu.dimension_semantics<arbitrary>], iteration_bounds = array<i64: 2, 5>, scalar_prefetch = 0 : i64, scratch_operands = 1 : i64, tpu.core_type = #tpu.core_type<tc>, window_params = [{transform_indices = @transform_0, window_bounds = array<i64: 2, 6016>}, {transform_indices = @transform_1, window_bounds = array<i64: 1, 6016, 256>}, {transform_indices = @transform_2, window_bounds = array<i64: 1, 256>}, {transform_indices = @transform_3, window_bounds = array<i64: 256, 9>}, {pipeline_mode = #tpu.pipeline_mode<synchronous>, transform_indices = @transform_4, window_bounds = array<i64: 1, 9>}, {transform_indices = @transform_5, window_bounds = array<i64: 1, 2, 9>}]} {
    %c0_i32 = arith.constant 0 : i32
    %0 = arith.cmpi eq, %arg1, %c0_i32 : i32
    %1 = arith.extui %0 : i1 to i32
    %c0_i32_0 = arith.constant 0 : i32
    %2 = arith.cmpi ne, %1, %c0_i32_0 : i32
    scf.if %2 {
      %cst_10 = arith.constant 0.000000e+00 : f32
      %13 = vector.broadcast %cst_10 : f32 to vector<2x256xf32>
      %c0_11 = arith.constant 0 : index
      %c0_12 = arith.constant 0 : index
      %14 = vector.load %arg8[%c0_11, %c0_12] : memref<2x256xf32, #tpu.memory_space<vmem>>, vector<2x256xf32>
      tpu.vector_store %arg8[%c0_11, %c0_12], %13 {strides = array<i32>} : memref<2x256xf32, #tpu.memory_space<vmem>>, vector<2x256xf32>,
    } else {
    }
    %c0 = arith.constant 0 : index
    %c0_1 = arith.constant 0 : index
    %3 = vector.load %arg8[%c0, %c0_1] : memref<2x256xf32, #tpu.memory_space<vmem>>, vector<2x256xf32>
    %c0_2 = arith.constant 0 : index
    %c0_3 = arith.constant 0 : index
    %4 = vector.load %arg2[%c0_2, %c0_3] : memref<2x6016xbf16, #tpu.memory_space<vmem>>, vector<2x6016xbf16>
    %c0_4 = arith.constant 0 : index
    %c0_5 = arith.constant 0 : index
    %c0_6 = arith.constant 0 : index
    %5 = vector.load %arg3[%c0_4, %c0_5, %c0_6] : memref<1x6016x256xbf16, #tpu.memory_space<vmem>>, vector<1x6016x256xbf16>
    %6 = vector.shape_cast %5 : vector<1x6016x256xbf16> to vector<6016x256xbf16>
    %cst = arith.constant dense<0.000000e+00> : vector<2x256xf32>
    %7 = tpu.matmul %4, %6, %cst {dimension_numbers = #tpu.dot_dimension_numbers<[1], [0], [0], [1], [0, 0, 1, 1], [], []>} : vector<2x6016xbf16>, vector<6016x256xbf16>, vector<2x256xf32> -> vector<2x256xf32>
    %8 = arith.addf %3, %7 : vector<2x256xf32>
    %c0_7 = arith.constant 0 : index
    %c0_8 = arith.constant 0 : index
    %9 = vector.load %arg8[%c0_7, %c0_8] : memref<2x256xf32, #tpu.memory_space<vmem>>, vector<2x256xf32>
    tpu.vector_store %arg8[%c0_7, %c0_8], %8 {strides = array<i32>} : memref<2x256xf32, #tpu.memory_space<vmem>>, vector<2x256xf32>,
    %c4_i32 = arith.constant 4 : i32
    %10 = arith.cmpi eq, %arg1, %c4_i32 : i32
    %11 = arith.extui %10 : i1 to i32
    %c0_i32_9 = arith.constant 0 : i32
    %12 = arith.cmpi ne, %11, %c0_i32_9 : i32
    scf.if %12 {
      %c0_10 = arith.constant 0 : index
      %c0_11 = arith.constant 0 : index
      %13 = vector.load %arg8[%c0_10, %c0_11] : memref<2x256xf32, #tpu.memory_space<vmem>>, vector<2x256xf32>
      %c0_12 = arith.constant 0 : index
      %c0_13 = arith.constant 0 : index
      %14 = vector.load %arg4[%c0_12, %c0_13] : memref<1x256xf32, #tpu.memory_space<vmem>>, vector<1x256xf32>
      %15 = vector.broadcast %14 : vector<1x256xf32> to vector<2x256xf32>
      %16 = arith.addf %13, %15 : vector<2x256xf32>
      %cst_14 = arith.constant 0.000000e+00 : f32
      %17 = vector.broadcast %cst_14 : f32 to vector<2x256xf32>
      %18 = arith.maximumf %16, %17 : vector<2x256xf32>
      %c0_15 = arith.constant 0 : index
      %c0_16 = arith.constant 0 : index
      %19 = vector.load %arg5[%c0_15, %c0_16] : memref<256x9xf32, #tpu.memory_space<vmem>>, vector<256x9xf32>
      %cst_17 = arith.constant dense<0.000000e+00> : vector<2x9xf32>
      %20 = tpu.matmul %18, %19, %cst_17 {dimension_numbers = #tpu.dot_dimension_numbers<[1], [0], [0], [1], [0, 0, 1, 1], [], []>} : vector<2x256xf32>, vector<256x9xf32>, vector<2x9xf32> -> vector<2x9xf32>
      %c0_18 = arith.constant 0 : index
      %c0_19 = arith.constant 0 : index
      %21 = vector.load %arg6[%c0_18, %c0_19] : memref<1x9xf32, #tpu.memory_space<vmem>>, vector<1x9xf32>
      %c0_i32_20 = arith.constant 0 : i32
      %22 = arith.cmpi eq, %arg0, %c0_i32_20 : i32
      %23 = arith.extui %22 : i1 to i32
      %24 = arith.sitofp %23 : i32 to f32
      %25 = vector.broadcast %24 : f32 to vector<1x9xf32>
      %26 = arith.mulf %21, %25 : vector<1x9xf32>
      %27 = vector.broadcast %26 : vector<1x9xf32> to vector<2x9xf32>
      %28 = arith.addf %20, %27 : vector<2x9xf32>
      %c0_21 = arith.constant 0 : index
      %c0_22 = arith.constant 0 : index
      %c0_23 = arith.constant 0 : index
      %29 = vector.load %arg7[%c0_21, %c0_22, %c0_23] : memref<1x2x9xf32, #tpu.memory_space<vmem>>, vector<1x2x9xf32>
      %30 = vector.shape_cast %29 : vector<1x2x9xf32> to vector<2x9xf32>
      %31 = vector.shape_cast %28 : vector<2x9xf32> to vector<1x2x9xf32>
      tpu.vector_store %arg7[%c0_21, %c0_22, %c0_23], %31 {strides = array<i32>} : memref<1x2x9xf32, #tpu.memory_space<vmem>>, vector<1x2x9xf32>,
    } else {
    }
    return
  }
  func.func @transform_0(%arg0: i32, %arg1: i32) -> (i32, i32) {
    %c0_i32 = arith.constant 0 : i32
    %c0_i32_0 = arith.constant 0 : i32
    return %c0_i32, %arg1 : i32, i32
  }
  func.func @transform_1(%arg0: i32, %arg1: i32) -> (i32, i32, i32) {
    %c0_i32 = arith.constant 0 : i32
    %c0_i32_0 = arith.constant 0 : i32
    return %arg0, %arg1, %c0_i32 : i32, i32, i32
  }
  func.func @transform_2(%arg0: i32, %arg1: i32) -> (i32, i32) {
    %c0_i32 = arith.constant 0 : i32
    %c0_i32_0 = arith.constant 0 : i32
    return %c0_i32, %arg0 : i32, i32
  }
  func.func @transform_3(%arg0: i32, %arg1: i32) -> (i32, i32) {
    %c0_i32 = arith.constant 0 : i32
    %c0_i32_0 = arith.constant 0 : i32
    return %arg0, %c0_i32 : i32, i32
  }
  func.func @transform_4(%arg0: i32, %arg1: i32) -> (i32, i32) {
    %c0_i32 = arith.constant 0 : i32
    %c0_i32_0 = arith.constant 0 : i32
    %c0_i32_1 = arith.constant 0 : i32
    return %c0_i32, %c0_i32_0 : i32, i32
  }
  func.func @transform_5(%arg0: i32, %arg1: i32) -> (i32, i32, i32) {
    %c0_i32 = arith.constant 0 : i32
    %c0_i32_0 = arith.constant 0 : i32
    %c0_i32_1 = arith.constant 0 : i32
    return %arg0, %c0_i32, %c0_i32_0 : i32, i32, i32
  }
}

</mosaic_0001>

<llo_original>
// kernel: lenet_forward.1
$region0: #{lenet_forward.1}
  #allocation0 [shape = 'u32[]', space=smem, size = 0x4, offset = 0x4, fixed_abs, tag = 'smem constant byte address 0x4 - core index']
  #allocation1 [shape = 'u32[144,128]{1,0:T(1,128)}', space=vmem, size = 0x12000, scoped, tag = 'internal scratch']
  #allocation2 [shape = 'f32[2,256]{1,0:T(2,128)}', space=vmem, size = 0x800, scoped, tag = 'scratch operand']
  %s0 = inlined_call_operand.vmem [shape: bf16[2,30080], index: 0, kind: input, shape index: {}]
  %s1 = inlined_call_operand.hbm [shape: bf16[2,30080,256], index: 1, kind: input, shape index: {}]
  %s2 = inlined_call_operand.hbm [shape: f32[1,512], index: 2, kind: input, shape index: {}]
  %s3 = inlined_call_operand.vmem [shape: f32[512,9], index: 3, kind: input, shape index: {}]
  %s4 = inlined_call_operand.hbm [shape: f32[1,9], index: 4, kind: input, shape index: {}]
  %s5 = inlined_call_operand.vmem [shape: f32[2,2,9], index: 5, kind: output, shape index: {}]
  %s6 = sld [smem:[#allocation0]]
  $region73: #{lenet_forward.1} parent=0
    _
  %s8 = ssub.s32 1, %s6
  %s9 = scalar_select 0, %s8, %s6
  $region1: #{lenet_forward.1} parent=0
    #allocation3 [shape = 'u8[6160384]{0}', space=vmem, size = 0x5e0000, scoped, tag = 'input window, operand 1']
    #allocation4 [shape = 's32[2]{0}', space=sflag, size = 0x8, scoped, tag = 'scoped memory for lenet_forward.1']
    #allocation5 [shape = 'u8[2048]{0}', space=vmem, size = 0x800, scoped, tag = 'input window, operand 2']
    #allocation6 [shape = 's32[2]{0}', space=sflag, size = 0x8, scoped, tag = 'scoped memory for lenet_forward.1']
    #allocation7 [shape = 'u8[512]{0}', space=vmem, size = 0x400, scoped, tag = 'input window, operand 4, single buffered']
    %10 = vsyncpa [#allocation4], 0
    %s11 = scalar_lea.sflag [#allocation4], 1
    %12 = vsyncpa %s11, 0
    %13 = vsyncpa [#allocation6], 0
    %s14 = scalar_lea.sflag [#allocation6], 1
    %15 = vsyncpa %s14, 0
    loop: start=0, step=1, limit=12
    $region2: #{lenet_forward.1} parent=1 // loop_pre_header
      _
    $region3: #{lenet_forward.1} parent=1 // loop_header
      %s17 = sphi 0, %s21
      %p18 = scmp.ge.s32.totalorder %s17, 12
      %s24 = sphi 0, %s36
      %s25 = sphi 0, %s32
      %s26 = sphi 0, %s24
      %s27 = sphi 0, %s25
      %s28 = sphi 0, %s26
      %s29 = sphi 0, %s27
      %s39 = sphi 0, %s41
      %s42 = sphi 0, %s39
      %s43 = sphi 0, %s42
      %s59 = sphi 0, %s43
      %s67 = sphi 0, %s69
      %s70 = sphi 0, %s67
      %s71 = sphi 0, %s70
      %s87 = sphi 0, %s71
      %s93 = sphi 0, %s95
      %s96 = sphi 0, %s93
      %s97 = sphi 0, %s96
      %s113 = sphi 0, %s97
      %s119 = sphi 0, %s121
      %s122 = sphi 0, %s119
      %s123 = sphi 0, %s122
      %s139 = sphi 0, %s123
      %s143 = sphi 0, %s143
      %s145 = sphi 0, %s143
      %s146 = sphi 0, %s145
      %s160 = sphi 0, %s146
      %s166 = sphi 0, %s168
      %s169 = sphi 0, %s166
      %s170 = sphi 0, %s169
      %s186 = sphi 0, %s170
    $region4: #{lenet_forward.1} parent=1 // loop_header_branch
      %20 = sbr.rel (%p18) target = $region8
    $region5: #{lenet_forward.1} parent=1 // loop_body
      %s22 = ssub.s32 %s17, 1
      %s23 = ssub.s32 %s17, 2
      %s30 = sadd.s32 1, %s25
      %p31 = scmp.ge.s32.totalorder %s30, 5
      %s32 = scalar_select %p31, 0, %s30
      %s33 = sadd.s32 1, %s24
      %s34 = scalar_select %p31, %s33, %s24
      %p35 = scmp.ge.s32.totalorder %s34, 2
      %s36 = scalar_select %p35, 0, %s34
      %s37 = ssub.s32 %s25, %s32
      %p38 = scmp.eq.s32.totalorder %s37, 0
      %s40 = sadd.s32 %s39, 1
      %s41 = scalar_select %p38, %s39, %s40
      %p44 = pneg %p38
      %p45 = scmp.eq.s32.totalorder %s17, 9
      %p46 = por %p44, %p45
      %p47 = scmp.ne.s32.totalorder %s39, %s42
      %p48 = scmp.eq.s32.totalorder %s17, 0
      %p49 = por %p47, %p48
      %p50 = scmp.ne.s32.totalorder %s39, %s42
      %p51 = scmp.eq.s32.totalorder %s22, 9
      %p52 = por %p50, %p51
      %p53 = scmp.ne.s32.totalorder %s42, %s43
      %p54 = scmp.eq.s32.totalorder %s22, 0
      %p55 = por %p53, %p54
      %p56 = scmp.ne.s32.totalorder %s42, %s43
      %p57 = scmp.eq.s32.totalorder %s23, 9
      %p58 = por %p56, %p57
      %p60 = scmp.ne.s32.totalorder %s43, %s59
      %p61 = scmp.eq.s32.totalorder %s23, 0
      %p62 = por %p60, %p61
      %s63 = ssub.s32 %s24, %s36
      %s64 = ssub.s32 %s25, %s32
      %s65 = sor.u32 %s63, %s64
      %p66 = scmp.eq.s32.totalorder %s65, 0
      %s68 = sadd.s32 %s67, 1
      %s69 = scalar_select %p66, %s67, %s68
      %p72 = pneg %p66
      %p73 = scmp.eq.s32.totalorder %s17, 9
      %p74 = por %p72, %p73
      %p75 = scmp.ne.s32.totalorder %s67, %s70
      %p76 = scmp.eq.s32.totalorder %s17, 0
      %p77 = por %p75, %p76
      %p78 = scmp.ne.s32.totalorder %s67, %s70
      %p79 = scmp.eq.s32.totalorder %s22, 9
      %p80 = por %p78, %p79
      %p81 = scmp.ne.s32.totalorder %s70, %s71
      %p82 = scmp.eq.s32.totalorder %s22, 0
      %p83 = por %p81, %p82
      %p84 = scmp.ne.s32.totalorder %s70, %s71
      %p85 = scmp.eq.s32.totalorder %s23, 9
      %p86 = por %p84, %p85
      %p88 = scmp.ne.s32.totalorder %s71, %s87
      %p89 = scmp.eq.s32.totalorder %s23, 0
      %p90 = por %p88, %p89
      %s91 = ssub.s32 %s24, %s36
      %p92 = scmp.eq.s32.totalorder %s91, 0
      %s94 = sadd.s32 %s93, 1
      %s95 = scalar_select %p92, %s93, %s94
      %p98 = pneg %p92
      %p99 = scmp.eq.s32.totalorder %s17, 9
      %p100 = por %p98, %p99
      %p101 = scmp.ne.s32.totalorder %s93, %s96
      %p102 = scmp.eq.s32.totalorder %s17, 0
      %p103 = por %p101, %p102
      %p104 = scmp.ne.s32.totalorder %s93, %s96
      %p105 = scmp.eq.s32.totalorder %s22, 9
      %p106 = por %p104, %p105
      %p107 = scmp.ne.s32.totalorder %s96, %s97
      %p108 = scmp.eq.s32.totalorder %s22, 0
      %p109 = por %p107, %p108
      %p110 = scmp.ne.s32.totalorder %s96, %s97
      %p111 = scmp.eq.s32.totalorder %s23, 9
      %p112 = por %p110, %p111
      %p114 = scmp.ne.s32.totalorder %s97, %s113
      %p115 = scmp.eq.s32.totalorder %s23, 0
      %p116 = por %p114, %p115
      %s117 = ssub.s32 %s24, %s36
      %p118 = scmp.eq.s32.totalorder %s117, 0
      %s120 = sadd.s32 %s119, 1
      %s121 = scalar_select %p118, %s119, %s120
      %p124 = pneg %p118
      %p125 = scmp.eq.s32.totalorder %s17, 9
      %p126 = por %p124, %p125
      %p127 = scmp.ne.s32.totalorder %s119, %s122
      %p128 = scmp.eq.s32.totalorder %s17, 0
      %p129 = por %p127, %p128
      %p130 = scmp.ne.s32.totalorder %s119, %s122
      %p131 = scmp.eq.s32.totalorder %s22, 9
      %p132 = por %p130, %p131
      %p133 = scmp.ne.s32.totalorder %s122, %s123
      %p134 = scmp.eq.s32.totalorder %s22, 0
      %p135 = por %p133, %p134
      %p136 = scmp.ne.s32.totalorder %s122, %s123
      %p137 = scmp.eq.s32.totalorder %s23, 9
      %p138 = por %p136, %p137
      %p140 = scmp.ne.s32.totalorder %s123, %s139
      %p141 = scmp.eq.s32.totalorder %s23, 0
      %p142 = por %p140, %p141
      %s144 = sadd.s32 %s143, 1
      %p147 = scmp.eq.s32.totalorder %s17, 9
      %p148 = scmp.ne.s32.totalorder %s143, %s145
      %p149 = scmp.eq.s32.totalorder %s17, 0
      %p150 = por %p148, %p149
      %p151 = scmp.ne.s32.totalorder %s143, %s145
      %p152 = scmp.eq.s32.totalorder %s22, 9
      %p153 = por %p151, %p152
      %p154 = scmp.ne.s32.totalorder %s145, %s146
      %p155 = scmp.eq.s32.totalorder %s22, 0
      %p156 = por %p154, %p155
      %p157 = scmp.ne.s32.totalorder %s145, %s146
      %p158 = scmp.eq.s32.totalorder %s23, 9
      %p159 = por %p157, %p158
      %p161 = scmp.ne.s32.totalorder %s146, %s160
      %p162 = scmp.eq.s32.totalorder %s23, 0
      %p163 = por %p161, %p162
      %s164 = ssub.s32 %s24, %s36
      %p165 = scmp.eq.s32.totalorder %s164, 0
      %s167 = sadd.s32 %s166, 1
      %s168 = scalar_select %p165, %s166, %s167
      %p171 = pneg %p165
      %p172 = scmp.eq.s32.totalorder %s17, 9
      %p173 = por %p171, %p172
      %p174 = scmp.ne.s32.totalorder %s166, %s169
      %p175 = scmp.eq.s32.totalorder %s17, 0
      %p176 = por %p174, %p175
      %p177 = scmp.ne.s32.totalorder %s166, %s169
      %p178 = scmp.eq.s32.totalorder %s22, 9
      %p179 = por %p177, %p178
      %p180 = scmp.ne.s32.totalorder %s169, %s170
      %p181 = scmp.eq.s32.totalorder %s22, 0
      %p182 = por %p180, %p181
      %p183 = scmp.ne.s32.totalorder %s169, %s170
      %p184 = scmp.eq.s32.totalorder %s23, 9
      %p185 = por %p183, %p184
      %p187 = scmp.ne.s32.totalorder %s170, %s186
      %p188 = scmp.eq.s32.totalorder %s23, 0
      %p189 = por %p187, %p188
      %p190 = scmp.le.s32.totalorder 1, %s17
      %p191 = scmp.lt.s32.totalorder %s17, 11
      %p192 = pnand %p190, %p191
      %p193 = pneg %p192
      // Predicated region
      $region9: #{lenet_forward.1} parent=5 // pred_check
        _
      $region10: #{lenet_forward.1} parent=5 // pred_check_branch
        %195 = sbr.rel (%p192) target = $region12
      $region11: #{lenet_forward.1} parent=5 // pred_region
        %s196 = ssub.s32 %s17, 1
        // Predicated region
        $region13: #{lenet_forward.1} parent=11 // pred_check
          %p197 = pneg %p156
        $region14: #{lenet_forward.1} parent=11 // pred_check_branch
          %199 = sbr.rel (%p197) target = $region16
        $region15: #{lenet_forward.1} parent=11 // pred_region
          %s201 = ssub.s32 16, 16
          %202 = vsyncadd [#allocation6], %s201
          %s204 = sshll.u32 [#allocation7], 4
          %s205 = int_to_ptr.vmem [resolvable:$true] %s204
          %207 = dma.hbm_to_vmem [thread:$0]  %s4, 16, %s205, [#allocation6]
        $region16: #{lenet_forward.1} parent=11 // pred_fallthru
          _
      $region12: #{lenet_forward.1} parent=5 // pred_fallthru
        _
      %p208 = scmp.lt.s32.totalorder %s17, 10
      // Predicated region
      $region17: #{lenet_forward.1} parent=5 // pred_check
        %p209 = pneg %p208
      $region18: #{lenet_forward.1} parent=5 // pred_check_branch
        %211 = sbr.rel (%p209) target = $region20
      $region19: #{lenet_forward.1} parent=5 // pred_region
        // Predicated region
        $region21: #{lenet_forward.1} parent=19 // pred_check
          %p212 = pneg %p49
        $region22: #{lenet_forward.1} parent=19 // pred_check_branch
          %214 = sbr.rel (%p212) target = $region24
        $region23: #{lenet_forward.1} parent=19 // pred_region
          %s215 = smul.u32 47, %s25
          %p216 = scmp.lt.s32.totalorder %s215, 234
          %s217 = scalar_select %p216, %s215, 234
          %s218 = scalar_lea.vmem %s0, %s217
          %s219 = smul.u32 47, %s25
        $region24: #{lenet_forward.1} parent=19 // pred_fallthru
          _
        // Predicated region
        $region25: #{lenet_forward.1} parent=19 // pred_check
          %p220 = pneg %p77
        $region26: #{lenet_forward.1} parent=19 // pred_check_branch
          %222 = sbr.rel (%p220) target = $region28
        $region27: #{lenet_forward.1} parent=19 // pred_region
          %s223 = sand.u32 %s67, 1
          %s224 = scalar_lea.sflag [#allocation4], %s223
          %s225 = sand.u32 %s67, 1
          %s226 = smul.addr %s225, 6016
          %s227 = scalar_lea.vmem [#allocation3], %s226
          %s228 = smul.u32 752, %s25
          %s230 = ssub.s32 96256, 96256
          %231 = vsyncadd %s224, %s230
          %s232 = smul.addr %s228, 2
          %s233 = smul.addr %s24, 7520
          %s234 = sadd.s32 %s232, %s233
          %s235 = smul.addr %s234, 64
          %s236 = scalar_lea.hbm %s1, %s235
          %s237 = sshll.u32 %s227, 4
          %s238 = int_to_ptr.vmem [resolvable:$true] %s237
          %243 = dma.hbm_to_vmem [thread:$0]  %s236, 96256, %s238, %s224, 128, 128, 8
        $region28: #{lenet_forward.1} parent=19 // pred_fallthru
          _
        // Predicated region
        $region29: #{lenet_forward.1} parent=19 // pred_check
          %p244 = pneg %p103
        $region30: #{lenet_forward.1} parent=19 // pred_check_branch
          %246 = sbr.rel (%p244) target = $region32
        $region31: #{lenet_forward.1} parent=19 // pred_region
          %s247 = sand.u32 %s17, 1
          %s248 = scalar_lea.sflag [#allocation6], %s247
          %s249 = sand.u32 %s93, 1
          %s250 = smul.addr %s249, 2
          %s251 = scalar_lea.vmem [#allocation5], %s250
          %s252 = smul.u32 2, %s24
          %s254 = ssub.s32 32, 32
          %255 = vsyncadd %s248, %s254
          %s256 = smul.addr %s252, 16
          %s257 = scalar_lea.hbm %s2, %s256
          %s259 = sshll.u32 %s251, 4
          %s260 = int_to_ptr.vmem [resolvable:$true] %s259
          %262 = dma.hbm_to_vmem [thread:$0]  %s257, 32, %s260, %s248
        $region32: #{lenet_forward.1} parent=19 // pred_fallthru
          _
        // Predicated region
        $region33: #{lenet_forward.1} parent=19 // pred_check
          %p263 = pneg %p129
        $region34: #{lenet_forward.1} parent=19 // pred_check_branch
          %265 = sbr.rel (%p263) target = $region36
        $region35: #{lenet_forward.1} parent=19 // pred_region
          %s266 = smul.u32 32, %s24
          %p267 = scmp.lt.s32.totalorder %s266, 63
          %s268 = scalar_select %p267, %s266, 63
          %s269 = smul.addr %s268, 8
          %s270 = scalar_lea.vmem %s3, %s269
          %s271 = smul.u32 32, %s24
        $region36: #{lenet_forward.1} parent=19 // pred_fallthru
          _
      $region20: #{lenet_forward.1} parent=5 // pred_fallthru
        _
      %p272 = scmp.le.s32.totalorder 1, %s17
      %p273 = scmp.lt.s32.totalorder %s17, 11
      %p274 = pnand %p272, %p273
      %p275 = pneg %p274
      // Predicated region
      $region37: #{lenet_forward.1} parent=5 // pred_check
        _
      $region38: #{lenet_forward.1} parent=5 // pred_check_branch
        %277 = sbr.rel (%p274) target = $region40
      $region39: #{lenet_forward.1} parent=5 // pred_region
        %s278 = ssub.s32 %s17, 1
        %s279 = sand.u32 %s70, 1
        %s280 = scalar_lea.sflag [#allocation4], %s279
        %s281 = sand.u32 %s70, 1
        %s282 = smul.addr %s281, 6016
        %s283 = scalar_lea.vmem [#allocation3], %s282
        // Predicated region
        $region41: #{lenet_forward.1} parent=39 // pred_check
          %p284 = pneg %p83
        $region42: #{lenet_forward.1} parent=39 // pred_check_branch
          %286 = sbr.rel (%p284) target = $region44
        $region43: #{lenet_forward.1} parent=39 // pred_region
          %287 = dma.done %s280, 96256
        $region44: #{lenet_forward.1} parent=39 // pred_fallthru
          _
        %s288 = sand.u32 %s22, 1
        %s289 = scalar_lea.sflag [#allocation6], %s288
        %s290 = sand.u32 %s96, 1
        %s291 = smul.addr %s290, 2
        %s292 = scalar_lea.vmem [#allocation5], %s291
        // Predicated region
        $region45: #{lenet_forward.1} parent=39 // pred_check
          %p293 = pneg %p109
        $region46: #{lenet_forward.1} parent=39 // pred_check_branch
          %295 = sbr.rel (%p293) target = $region48
        $region47: #{lenet_forward.1} parent=39 // pred_region
          %296 = dma.done %s289, 32
        $region48: #{lenet_forward.1} parent=39 // pred_fallthru
          _
        // Predicated region
        $region49: #{lenet_forward.1} parent=39 // pred_check
          %p297 = pneg %p156
        $region50: #{lenet_forward.1} parent=39 // pred_check_branch
          %299 = sbr.rel (%p297) target = $region52
        $region51: #{lenet_forward.1} parent=39 // pred_region
          %300 = dma.done [#allocation6], 16
        $region52: #{lenet_forward.1} parent=39 // pred_fallthru
          _
        %s301 = smul.u32 47, %s27
        %p302 = scmp.lt.s32.totalorder %s301, 234
        %s303 = scalar_select %p302, %s301, 234
        %s304 = scalar_lea.vmem %s0, %s303
        %p305 = pneg %p55
        %p306 = pneg %p52
        %s307 = sand.u32 %s70, 1
        %s308 = scalar_lea.sflag [#allocation4], %s307
        %s309 = sand.u32 %s70, 1
        %s310 = smul.addr %s309, 6016
        %s311 = scalar_lea.vmem [#allocation3], %s310
        %p312 = pneg %p83
        %p313 = pneg %p80
        %s314 = sand.u32 %s22, 1
        %s315 = scalar_lea.sflag [#allocation6], %s314
        %s316 = sand.u32 %s96, 1
        %s317 = smul.addr %s316, 2
        %s318 = scalar_lea.vmem [#allocation5], %s317
        %p319 = pneg %p109
        %p320 = pneg %p106
        %s321 = smul.u32 32, %s26
        %p322 = scmp.lt.s32.totalorder %s321, 63
        %s323 = scalar_select %p322, %s321, 63
        %s324 = smul.addr %s323, 8
        %s325 = scalar_lea.vmem %s3, %s324
        %p326 = pneg %p135
        %p327 = pneg %p132
        %p328 = pneg %p156
        %p329 = pneg %p153
        %p330 = pneg %p182
        %p331 = pneg %p179
        %p332 = scmp.lt.s32.totalorder %s26, 1
        %s333 = scalar_select %p332, %s26, 1
        %s334 = smul.addr %s333, 2
        %s335 = scalar_lea.vmem %s5, %s334
        %s336 = smul.u32 47, %s27
        %p337 = scmp.lt.s32.totalorder %s336, 234
        %s338 = scalar_select %p337, %s336, 234
        %s339 = scalar_lea.vmem %s0, %s338
        %s340 = smul.u32 47, %s27
        %s341 = smul.u32 752, %s27
        %s342 = smul.u32 2, %s26
        %s343 = smul.u32 32, %s26
        %p344 = scmp.lt.s32.totalorder %s343, 63
        %s345 = scalar_select %p344, %s343, 63
        %s346 = smul.addr %s345, 8
        %s347 = scalar_lea.vmem %s3, %s346
        %s348 = smul.u32 32, %s26
        %p349 = scmp.lt.s32.totalorder %s26, 1
        %s350 = scalar_select %p349, %s26, 1
        %s351 = smul.addr %s350, 2
        %s352 = scalar_lea.vmem %s5, %s351
        %p354 = scmp.eq.s32.totalorder %s27, 0
        // Predicated region
        $region53: #{lenet_forward.1} parent=39 // pred_check
          %p355 = pneg %p354
        $region54: #{lenet_forward.1} parent=39 // pred_check_branch
          %357 = sbr.rel (%p355) target = $region56
        $region55: #{lenet_forward.1} parent=39 // pred_region
          %358 = vst [vmem:[#allocation2] sm:$0xf] 0.0
        $region56: #{lenet_forward.1} parent=39 // pred_fallthru
          _
        %v359 = vld [vmem:[#allocation2] sm:$0xf]
        %v360 = vld [vmem:[%s339] sm:$0xff]
        %v361 = vld [vmem:[%s339 + $0x8] sm:$0xff]
        %v362 = vld [vmem:[%s339 + $0x10] sm:$0xff]
        %v363 = vld [vmem:[%s339 + $0x18] sm:$0xff]
        %v364 = vld [vmem:[%s339 + $0x20] sm:$0xff]
        %v365 = vld [vmem:[%s339 + $0x28] sm:$0x7f]
        %v366 = vld [vmem:[%s283] sm:$0xff]
        %v367 = vld [vmem:[%s283 + $0x8] sm:$0xff]
        %v368 = vld [vmem:[%s283 + $0x10] sm:$0xff]
        %v369 = vld [vmem:[%s283 + $0x18] sm:$0xff]
        %v370 = vld [vmem:[%s283 + $0x20] sm:$0xff]
        %v371 = vld [vmem:[%s283 + $0x28] sm:$0xff]
        %v372 = vld [vmem:[%s283 + $0x30] sm:$0xff]
        %v373 = vld [vmem:[%s283 + $0x38] sm:$0xff]
        %v374 = vld [vmem:[%s283 + $0x40] sm:$0xff]
        %v375 = vld [vmem:[%s283 + $0x48] sm:$0xff]
        %v376 = vld [vmem:[%s283 + $0x50] sm:$0xff]
        %v377 = vld [vmem:[%s283 + $0x58] sm:$0xff]
        %v378 = vld [vmem:[%s283 + $0x60] sm:$0xff]
        %v379 = vld [vmem:[%s283 + $0x68] sm:$0xff]
        %v380 = vld [vmem:[%s283 + $0x70] sm:$0xff]
        %v381 = vld [vmem:[%s283 + $0x78] sm:$0xff]
        %v382 = vld [vmem:[%s283 + $0x80] sm:$0xff]
        %v383 = vld [vmem:[%s283 + $0x88] sm:$0xff]
        %v384 = vld [vmem:[%s283 + $0x90] sm:$0xff]
        %v385 = vld [vmem:[%s283 + $0x98] sm:$0xff]
        %v386 = vld [vmem:[%s283 + $0xa0] sm:$0xff]
        %v387 = vld [vmem:[%s283 + $0xa8] sm:$0xff]
        %v388 = vld [vmem:[%s283 + $0xb0] sm:$0xff]
        %v389 = vld [vmem:[%s283 + $0xb8] sm:$0xff]
        %v390 = vld [vmem:[%s283 + $0xc0] sm:$0xff]
        %v391 = vld [vmem:[%s283 + $0xc8] sm:$0xff]
        %v392 = vld [vmem:[%s283 + $0xd0] sm:$0xff]
        %v393 = vld [vmem:[%s283 + $0xd8] sm:$0xff]
        %v394 = vld [vmem:[%s283 + $0xe0] sm:$0xff]
        %v395 = vld [vmem:[%s283 + $0xe8] sm:$0xff]
        %v396 = vld [vmem:[%s283 + $0xf0] sm:$0xff]
        %v397 = vld [vmem:[%s283 + $0xf8] sm:$0xff]
        %v398 = vld [vmem:[%s283 + $0x100] sm:$0xff]
        %v399 = vld [vmem:[%s283 + $0x108] sm:$0xff]
        %v400 = vld [vmem:[%s283 + $0x110] sm:$0xff]
        %v401 = vld [vmem:[%s283 + $0x118] sm:$0xff]
        %v402 = vld [vmem:[%s283 + $0x120] sm:$0xff]
        %v403 = vld [vmem:[%s283 + $0x128] sm:$0xff]
        %v404 = vld [vmem:[%s283 + $0x130] sm:$0xff]
        %v405 = vld [vmem:[%s283 + $0x138] sm:$0xff]
        %v406 = vld [vmem:[%s283 + $0x140] sm:$0xff]
        %v407 = vld [vmem:[%s283 + $0x148] sm:$0xff]
        %v408 = vld [vmem:[%s283 + $0x150] sm:$0xff]
        %v409 = vld [vmem:[%s283 + $0x158] sm:$0xff]
        %v410 = vld [vmem:[%s283 + $0x160] sm:$0xff]
        %v411 = vld [vmem:[%s283 + $0x168] sm:$0xff]
        %v412 = vld [vmem:[%s283 + $0x170] sm:$0xff]
        %v413 = vld [vmem:[%s283 + $0x178] sm:$0xff]
        %v414 = vld [vmem:[%s283 + $0x180] sm:$0xff]
        %v415 = vld [vmem:[%s283 + $0x188] sm:$0xff]
        %v416 = vld [vmem:[%s283 + $0x190] sm:$0xff]
        %v417 = vld [vmem:[%s283 + $0x198] sm:$0xff]
        %v418 = vld [vmem:[%s283 + $0x1a0] sm:$0xff]
        %v419 = vld [vmem:[%s283 + $0x1a8] sm:$0xff]
        %v420 = vld [vmem:[%s283 + $0x1b0] sm:$0xff]
        %v421 = vld [vmem:[%s283 + $0x1b8] sm:$0xff]
        %v422 = vld [vmem:[%s283 + $0x1c0] sm:$0xff]
        %v423 = vld [vmem:[%s283 + $0x1c8] sm:$0xff]
        %v424 = vld [vmem:[%s283 + $0x1d0] sm:$0xff]
        %v425 = vld [vmem:[%s283 + $0x1d8] sm:$0xff]
        %v426 = vld [vmem:[%s283 + $0x1e0] sm:$0xff]
        %v427 = vld [vmem:[%s283 + $0x1e8] sm:$0xff]
        %v428 = vld [vmem:[%s283 + $0x1f0] sm:$0xff]
        %v429 = vld [vmem:[%s283 + $0x1f8] sm:$0xff]
        %v430 = vld [vmem:[%s283 + $0x200] sm:$0xff]
        %v431 = vld [vmem:[%s283 + $0x208] sm:$0xff]
        %v432 = vld [vmem:[%s283 + $0x210] sm:$0xff]
        %v433 = vld [vmem:[%s283 + $0x218] sm:$0xff]
        %v434 = vld [vmem:[%s283 + $0x220] sm:$0xff]
        %v435 = vld [vmem:[%s283 + $0x228] sm:$0xff]
        %v436 = vld [vmem:[%s283 + $0x230] sm:$0xff]
        %v437 = vld [vmem:[%s283 + $0x238] sm:$0xff]
        %v438 = vld [vmem:[%s283 + $0x240] sm:$0xff]
        %v439 = vld [vmem:[%s283 + $0x248] sm:$0xff]
        %v440 = vld [vmem:[%s283 + $0x250] sm:$0xff]
        %v441 = vld [vmem:[%s283 + $0x258] sm:$0xff]
        %v442 = vld [vmem:[%s283 + $0x260] sm:$0xff]
        %v443 = vld [vmem:[%s283 + $0x268] sm:$0xff]
        %v444 = vld [vmem:[%s283 + $0x270] sm:$0xff]
        %v445 = vld [vmem:[%s283 + $0x278] sm:$0xff]
        %v446 = vld [vmem:[%s283 + $0x280] sm:$0xff]
        %v447 = vld [vmem:[%s283 + $0x288] sm:$0xff]
        %v448 = vld [vmem:[%s283 + $0x290] sm:$0xff]
        %v449 = vld [vmem:[%s283 + $0x298] sm:$0xff]
        %v450 = vld [vmem:[%s283 + $0x2a0] sm:$0xff]
        %v451 = vld [vmem:[%s283 + $0x2a8] sm:$0xff]
        %v452 = vld [vmem:[%s283 + $0x2b0] sm:$0xff]
        %v453 = vld [vmem:[%s283 + $0x2b8] sm:$0xff]
        %v454 = vld [vmem:[%s283 + $0x2c0] sm:$0xff]
        %v455 = vld [vmem:[%s283 + $0x2c8] sm:$0xff]
        %v456 = vld [vmem:[%s283 + $0x2d0] sm:$0xff]
        %v457 = vld [vmem:[%s283 + $0x2d8] sm:$0xff]
        %v458 = vld [vmem:[%s283 + $0x2e0] sm:$0xff]
        %v459 = vld [vmem:[%s283 + $0x2e8] sm:$0xff]
        %v460 = vld [vmem:[%s283 + $0x2f0] sm:$0xff]
        %v461 = vld [vmem:[%s283 + $0x2f8] sm:$0xff]
        %v462 = vld [vmem:[%s283 + $0x300] sm:$0xff]
        %v463 = vld [vmem:[%s283 + $0x308] sm:$0xff]
        %v464 = vld [vmem:[%s283 + $0x310] sm:$0xff]
        %v465 = vld [vmem:[%s283 + $0x318] sm:$0xff]
        %v466 = vld [vmem:[%s283 + $0x320] sm:$0xff]
        %v467 = vld [vmem:[%s283 + $0x328] sm:$0xff]
        %v468 = vld [vmem:[%s283 + $0x330] sm:$0xff]
        %v469 = vld [vmem:[%s283 + $0x338] sm:$0xff]
        %v470 = vld [vmem:[%s283 + $0x340] sm:$0xff]
        %v471 = vld [vmem:[%s283 + $0x348] sm:$0xff]
        %v472 = vld [vmem:[%s283 + $0x350] sm:$0xff]
        %v473 = vld [vmem:[%s283 + $0x358] sm:$0xff]
        %v474 = vld [vmem:[%s283 + $0x360] sm:$0xff]
        %v475 = vld [vmem:[%s283 + $0x368] sm:$0xff]
        %v476 = vld [vmem:[%s283 + $0x370] sm:$0xff]
        %v477 = vld [vmem:[%s283 + $0x378] sm:$0xff]
        %v478 = vld [vmem:[%s283 + $0x380] sm:$0xff]
        %v479 = vld [vmem:[%s283 + $0x388] sm:$0xff]
        %v480 = vld [vmem:[%s283 + $0x390] sm:$0xff]
        %v481 = vld [vmem:[%s283 + $0x398] sm:$0xff]
        %v482 = vld [vmem:[%s283 + $0x3a0] sm:$0xff]
        %v483 = vld [vmem:[%s283 + $0x3a8] sm:$0xff]
        %v484 = vld [vmem:[%s283 + $0x3b0] sm:$0xff]
        %v485 = vld [vmem:[%s283 + $0x3b8] sm:$0xff]
        %v486 = vld [vmem:[%s283 + $0x3c0] sm:$0xff]
        %v487 = vld [vmem:[%s283 + $0x3c8] sm:$0xff]
        %v488 = vld [vmem:[%s283 + $0x3d0] sm:$0xff]
        %v489 = vld [vmem:[%s283 + $0x3d8] sm:$0xff]
        %v490 = vld [vmem:[%s283 + $0x3e0] sm:$0xff]
        %v491 = vld [vmem:[%s283 + $0x3e8] sm:$0xff]
        %v492 = vld [vmem:[%s283 + $0x3f0] sm:$0xff]
        %v493 = vld [vmem:[%s283 + $0x3f8] sm:$0xff]
        %v494 = vld [vmem:[%s283 + $0x400] sm:$0xff]
        %v495 = vld [vmem:[%s283 + $0x408] sm:$0xff]
        %v496 = vld [vmem:[%s283 + $0x410] sm:$0xff]
        %v497 = vld [vmem:[%s283 + $0x418] sm:$0xff]
        %v498 = vld [vmem:[%s283 + $0x420] sm:$0xff]
        %v499 = vld [vmem:[%s283 + $0x428] sm:$0xff]
        %v500 = vld [vmem:[%s283 + $0x430] sm:$0xff]
        %v501 = vld [vmem:[%s283 + $0x438] sm:$0xff]
        %v502 = vld [vmem:[%s283 + $0x440] sm:$0xff]
        %v503 = vld [vmem:[%s283 + $0x448] sm:$0xff]
        %v504 = vld [vmem:[%s283 + $0x450] sm:$0xff]
        %v505 = vld [vmem:[%s283 + $0x458] sm:$0xff]
        %v506 = vld [vmem:[%s283 + $0x460] sm:$0xff]
        %v507 = vld [vmem:[%s283 + $0x468] sm:$0xff]
        %v508 = vld [vmem:[%s283 + $0x470] sm:$0xff]
        %v509 = vld [vmem:[%s283 + $0x478] sm:$0xff]
        %v510 = vld [vmem:[%s283 + $0x480] sm:$0xff]
        %v511 = vld [vmem:[%s283 + $0x488] sm:$0xff]
        %v512 = vld [vmem:[%s283 + $0x490] sm:$0xff]
        %v513 = vld [vmem:[%s283 + $0x498] sm:$0xff]
        %v514 = vld [vmem:[%s283 + $0x4a0] sm:$0xff]
        %v515 = vld [vmem:[%s283 + $0x4a8] sm:$0xff]
        %v516 = vld [vmem:[%s283 + $0x4b0] sm:$0xff]
        %v517 = vld [vmem:[%s283 + $0x4b8] sm:$0xff]
        %v518 = vld [vmem:[%s283 + $0x4c0] sm:$0xff]
        %v519 = vld [vmem:[%s283 + $0x4c8] sm:$0xff]
        %v520 = vld [vmem:[%s283 + $0x4d0] sm:$0xff]
        %v521 = vld [vmem:[%s283 + $0x4d8] sm:$0xff]
        %v522 = vld [vmem:[%s283 + $0x4e0] sm:$0xff]
        %v523 = vld [vmem:[%s283 + $0x4e8] sm:$0xff]
        %v524 = vld [vmem:[%s283 + $0x4f0] sm:$0xff]
        %v525 = vld [vmem:[%s283 + $0x4f8] sm:$0xff]
        %v526 = vld [vmem:[%s283 + $0x500] sm:$0xff]
        %v527 = vld [vmem:[%s283 + $0x508] sm:$0xff]
        %v528 = vld [vmem:[%s283 + $0x510] sm:$0xff]
        %v529 = vld [vmem:[%s283 + $0x518] sm:$0xff]
        %v530 = vld [vmem:[%s283 + $0x520] sm:$0xff]
        %v531 = vld [vmem:[%s283 + $0x528] sm:$0xff]
        %v532 = vld [vmem:[%s283 + $0x530] sm:$0xff]
        %v533 = vld [vmem:[%s283 + $0x538] sm:$0xff]
        %v534 = vld [vmem:[%s283 + $0x540] sm:$0xff]
        %v535 = vld [vmem:[%s283 + $0x548] sm:$0xff]
        %v536 = vld [vmem:[%s283 + $0x550] sm:$0xff]
        %v537 = vld [vmem:[%s283 + $0x558] sm:$0xff]
        %v538 = vld [vmem:[%s283 + $0x560] sm:$0xff]
        %v539 = vld [vmem:[%s283 + $0x568] sm:$0xff]
        %v540 = vld [vmem:[%s283 + $0x570] sm:$0xff]
        %v541 = vld [vmem:[%s283 + $0x578] sm:$0xff]
        %v542 = vld [vmem:[%s283 + $0x580] sm:$0xff]
        %v543 = vld [vmem:[%s283 + $0x588] sm:$0xff]
        %v544 = vld [vmem:[%s283 + $0x590] sm:$0xff]
        %v545 = vld [vmem:[%s283 + $0x598] sm:$0xff]
        %v546 = vld [vmem:[%s283 + $0x5a0] sm:$0xff]
        %v547 = vld [vmem:[%s283 + $0x5a8] sm:$0xff]
        %v548 = vld [vmem:[%s283 + $0x5b0] sm:$0xff]
        %v549 = vld [vmem:[%s283 + $0x5b8] sm:$0xff]
        %v550 = vld [vmem:[%s283 + $0x5c0] sm:$0xff]
        %v551 = vld [vmem:[%s283 + $0x5c8] sm:$0xff]
        %v552 = vld [vmem:[%s283 + $0x5d0] sm:$0xff]
        %v553 = vld [vmem:[%s283 + $0x5d8] sm:$0xff]
        %v554 = vld [vmem:[%s283 + $0x5e0] sm:$0xff]
        %v555 = vld [vmem:[%s283 + $0x5e8] sm:$0xff]
        %v556 = vld [vmem:[%s283 + $0x5f0] sm:$0xff]
        %v557 = vld [vmem:[%s283 + $0x5f8] sm:$0xff]
        %v558 = vld [vmem:[%s283 + $0x600] sm:$0xff]
        %v559 = vld [vmem:[%s283 + $0x608] sm:$0xff]
        %v560 = vld [vmem:[%s283 + $0x610] sm:$0xff]
        %v561 = vld [vmem:[%s283 + $0x618] sm:$0xff]
        %v562 = vld [vmem:[%s283 + $0x620] sm:$0xff]
        %v563 = vld [vmem:[%s283 + $0x628] sm:$0xff]
        %v564 = vld [vmem:[%s283 + $0x630] sm:$0xff]
        %v565 = vld [vmem:[%s283 + $0x638] sm:$0xff]
        %v566 = vld [vmem:[%s283 + $0x640] sm:$0xff]
        %v567 = vld [vmem:[%s283 + $0x648] sm:$0xff]
        %v568 = vld [vmem:[%s283 + $0x650] sm:$0xff]
        %v569 = vld [vmem:[%s283 + $0x658] sm:$0xff]
        %v570 = vld [vmem:[%s283 + $0x660] sm:$0xff]
        %v571 = vld [vmem:[%s283 + $0x668] sm:$0xff]
        %v572 = vld [vmem:[%s283 + $0x670] sm:$0xff]
        %v573 = vld [vmem:[%s283 + $0x678] sm:$0xff]
        %v574 = vld [vmem:[%s283 + $0x680] sm:$0xff]
        %v575 = vld [vmem:[%s283 + $0x688] sm:$0xff]
        %v576 = vld [vmem:[%s283 + $0x690] sm:$0xff]
        %v577 = vld [vmem:[%s283 + $0x698] sm:$0xff]
        %v578 = vld [vmem:[%s283 + $0x6a0] sm:$0xff]
        %v579 = vld [vmem:[%s283 + $0x6a8] sm:$0xff]
        %v580 = vld [vmem:[%s283 + $0x6b0] sm:$0xff]
        %v581 = vld [vmem:[%s283 + $0x6b8] sm:$0xff]
        %v582 = vld [vmem:[%s283 + $0x6c0] sm:$0xff]
        %v583 = vld [vmem:[%s283 + $0x6c8] sm:$0xff]
        %v584 = vld [vmem:[%s283 + $0x6d0] sm:$0xff]
        %v585 = vld [vmem:[%s283 + $0x6d8] sm:$0xff]
        %v586 = vld [vmem:[%s283 + $0x6e0] sm:$0xff]
        %v587 = vld [vmem:[%s283 + $0x6e8] sm:$0xff]
        %v588 = vld [vmem:[%s283 + $0x6f0] sm:$0xff]
        %v589 = vld [vmem:[%s283 + $0x6f8] sm:$0xff]
        %v590 = vld [vmem:[%s283 + $0x700] sm:$0xff]
        %v591 = vld [vmem:[%s283 + $0x708] sm:$0xff]
        %v592 = vld [vmem:[%s283 + $0x710] sm:$0xff]
        %v593 = vld [vmem:[%s283 + $0x718] sm:$0xff]
        %v594 = vld [vmem:[%s283 + $0x720] sm:$0xff]
        %v595 = vld [vmem:[%s283 + $0x728] sm:$0xff]
        %v596 = vld [vmem:[%s283 + $0x730] sm:$0xff]
        %v597 = vld [vmem:[%s283 + $0x738] sm:$0xff]
        %v598 = vld [vmem:[%s283 + $0x740] sm:$0xff]
        %v599 = vld [vmem:[%s283 + $0x748] sm:$0xff]
        %v600 = vld [vmem:[%s283 + $0x750] sm:$0xff]
        %v601 = vld [vmem:[%s283 + $0x758] sm:$0xff]
        %v602 = vld [vmem:[%s283 + $0x760] sm:$0xff]
        %v603 = vld [vmem:[%s283 + $0x768] sm:$0xff]
        %v604 = vld [vmem:[%s283 + $0x770] sm:$0xff]
        %v605 = vld [vmem:[%s283 + $0x778] sm:$0xff]
        %v606 = vld [vmem:[%s283 + $0x780] sm:$0xff]
        %v607 = vld [vmem:[%s283 + $0x788] sm:$0xff]
        %v608 = vld [vmem:[%s283 + $0x790] sm:$0xff]
        %v609 = vld [vmem:[%s283 + $0x798] sm:$0xff]
        %v610 = vld [vmem:[%s283 + $0x7a0] sm:$0xff]
        %v611 = vld [vmem:[%s283 + $0x7a8] sm:$0xff]
        %v612 = vld [vmem:[%s283 + $0x7b0] sm:$0xff]
        %v613 = vld [vmem:[%s283 + $0x7b8] sm:$0xff]
        %v614 = vld [vmem:[%s283 + $0x7c0] sm:$0xff]
        %v615 = vld [vmem:[%s283 + $0x7c8] sm:$0xff]
        %v616 = vld [vmem:[%s283 + $0x7d0] sm:$0xff]
        %v617 = vld [vmem:[%s283 + $0x7d8] sm:$0xff]
        %v618 = vld [vmem:[%s283 + $0x7e0] sm:$0xff]
        %v619 = vld [vmem:[%s283 + $0x7e8] sm:$0xff]
        %v620 = vld [vmem:[%s283 + $0x7f0] sm:$0xff]
        %v621 = vld [vmem:[%s283 + $0x7f8] sm:$0xff]
        %v622 = vld [vmem:[%s283 + $0x800] sm:$0xff]
        %v623 = vld [vmem:[%s283 + $0x808] sm:$0xff]
        %v624 = vld [vmem:[%s283 + $0x810] sm:$0xff]
        %v625 = vld [vmem:[%s283 + $0x818] sm:$0xff]
        %v626 = vld [vmem:[%s283 + $0x820] sm:$0xff]
        %v627 = vld [vmem:[%s283 + $0x828] sm:$0xff]
        %v628 = vld [vmem:[%s283 + $0x830] sm:$0xff]
        %v629 = vld [vmem:[%s283 + $0x838] sm:$0xff]
        %v630 = vld [vmem:[%s283 + $0x840] sm:$0xff]
        %v631 = vld [vmem:[%s283 + $0x848] sm:$0xff]
        %v632 = vld [vmem:[%s283 + $0x850] sm:$0xff]
        %v633 = vld [vmem:[%s283 + $0x858] sm:$0xff]
        %v634 = vld [vmem:[%s283 + $0x860] sm:$0xff]
        %v635 = vld [vmem:[%s283 + $0x868] sm:$0xff]
        %v636 = vld [vmem:[%s283 + $0x870] sm:$0xff]
        %v637 = vld [vmem:[%s283 + $0x878] sm:$0xff]
        %v638 = vld [vmem:[%s283 + $0x880] sm:$0xff]
        %v639 = vld [vmem:[%s283 + $0x888] sm:$0xff]
        %v640 = vld [vmem:[%s283 + $0x890] sm:$0xff]
        %v641 = vld [vmem:[%s283 + $0x898] sm:$0xff]
        %v642 = vld [vmem:[%s283 + $0x8a0] sm:$0xff]
        %v643 = vld [vmem:[%s283 + $0x8a8] sm:$0xff]
        %v644 = vld [vmem:[%s283 + $0x8b0] sm:$0xff]
        %v645 = vld [vmem:[%s283 + $0x8b8] sm:$0xff]
        %v646 = vld [vmem:[%s283 + $0x8c0] sm:$0xff]
        %v647 = vld [vmem:[%s283 + $0x8c8] sm:$0xff]
        %v648 = vld [vmem:[%s283 + $0x8d0] sm:$0xff]
        %v649 = vld [vmem:[%s283 + $0x8d8] sm:$0xff]
        %v650 = vld [vmem:[%s283 + $0x8e0] sm:$0xff]
        %v651 = vld [vmem:[%s283 + $0x8e8] sm:$0xff]
        %v652 = vld [vmem:[%s283 + $0x8f0] sm:$0xff]
        %v653 = vld [vmem:[%s283 + $0x8f8] sm:$0xff]
        %v654 = vld [vmem:[%s283 + $0x900] sm:$0xff]
        %v655 = vld [vmem:[%s283 + $0x908] sm:$0xff]
        %v656 = vld [vmem:[%s283 + $0x910] sm:$0xff]
        %v657 = vld [vmem:[%s283 + $0x918] sm:$0xff]
        %v658 = vld [vmem:[%s283 + $0x920] sm:$0xff]
        %v659 = vld [vmem:[%s283 + $0x928] sm:$0xff]
        %v660 = vld [vmem:[%s283 + $0x930] sm:$0xff]
        %v661 = vld [vmem:[%s283 + $0x938] sm:$0xff]
        %v662 = vld [vmem:[%s283 + $0x940] sm:$0xff]
        %v663 = vld [vmem:[%s283 + $0x948] sm:$0xff]
        %v664 = vld [vmem:[%s283 + $0x950] sm:$0xff]
        %v665 = vld [vmem:[%s283 + $0x958] sm:$0xff]
        %v666 = vld [vmem:[%s283 + $0x960] sm:$0xff]
        %v667 = vld [vmem:[%s283 + $0x968] sm:$0xff]
        %v668 = vld [vmem:[%s283 + $0x970] sm:$0xff]
        %v669 = vld [vmem:[%s283 + $0x978] sm:$0xff]
        %v670 = vld [vmem:[%s283 + $0x980] sm:$0xff]
        %v671 = vld [vmem:[%s283 + $0x988] sm:$0xff]
        %v672 = vld [vmem:[%s283 + $0x990] sm:$0xff]
        %v673 = vld [vmem:[%s283 + $0x998] sm:$0xff]
        %v674 = vld [vmem:[%s283 + $0x9a0] sm:$0xff]
        %v675 = vld [vmem:[%s283 + $0x9a8] sm:$0xff]
        %v676 = vld [vmem:[%s283 + $0x9b0] sm:$0xff]
        %v677 = vld [vmem:[%s283 + $0x9b8] sm:$0xff]
        %v678 = vld [vmem:[%s283 + $0x9c0] sm:$0xff]
        %v679 = vld [vmem:[%s283 + $0x9c8] sm:$0xff]
        %v680 = vld [vmem:[%s283 + $0x9d0] sm:$0xff]
        %v681 = vld [vmem:[%s283 + $0x9d8] sm:$0xff]
        %v682 = vld [vmem:[%s283 + $0x9e0] sm:$0xff]
        %v683 = vld [vmem:[%s283 + $0x9e8] sm:$0xff]
        %v684 = vld [vmem:[%s283 + $0x9f0] sm:$0xff]
        %v685 = vld [vmem:[%s283 + $0x9f8] sm:$0xff]
        %v686 = vld [vmem:[%s283 + $0xa00] sm:$0xff]
        %v687 = vld [vmem:[%s283 + $0xa08] sm:$0xff]
        %v688 = vld [vmem:[%s283 + $0xa10] sm:$0xff]
        %v689 = vld [vmem:[%s283 + $0xa18] sm:$0xff]
        %v690 = vld [vmem:[%s283 + $0xa20] sm:$0xff]
        %v691 = vld [vmem:[%s283 + $0xa28] sm:$0xff]
        %v692 = vld [vmem:[%s283 + $0xa30] sm:$0xff]
        %v693 = vld [vmem:[%s283 + $0xa38] sm:$0xff]
        %v694 = vld [vmem:[%s283 + $0xa40] sm:$0xff]
        %v695 = vld [vmem:[%s283 + $0xa48] sm:$0xff]
        %v696 = vld [vmem:[%s283 + $0xa50] sm:$0xff]
        %v697 = vld [vmem:[%s283 + $0xa58] sm:$0xff]
        %v698 = vld [vmem:[%s283 + $0xa60] sm:$0xff]
        %v699 = vld [vmem:[%s283 + $0xa68] sm:$0xff]
        %v700 = vld [vmem:[%s283 + $0xa70] sm:$0xff]
        %v701 = vld [vmem:[%s283 + $0xa78] sm:$0xff]
        %v702 = vld [vmem:[%s283 + $0xa80] sm:$0xff]
        %v703 = vld [vmem:[%s283 + $0xa88] sm:$0xff]
        %v704 = vld [vmem:[%s283 + $0xa90] sm:$0xff]
        %v705 = vld [vmem:[%s283 + $0xa98] sm:$0xff]
        %v706 = vld [vmem:[%s283 + $0xaa0] sm:$0xff]
        %v707 = vld [vmem:[%s283 + $0xaa8] sm:$0xff]
        %v708 = vld [vmem:[%s283 + $0xab0] sm:$0xff]
        %v709 = vld [vmem:[%s283 + $0xab8] sm:$0xff]
        %v710 = vld [vmem:[%s283 + $0xac0] sm:$0xff]
        %v711 = vld [vmem:[%s283 + $0xac8] sm:$0xff]
        %v712 = vld [vmem:[%s283 + $0xad0] sm:$0xff]
        %v713 = vld [vmem:[%s283 + $0xad8] sm:$0xff]
        %v714 = vld [vmem:[%s283 + $0xae0] sm:$0xff]
        %v715 = vld [vmem:[%s283 + $0xae8] sm:$0xff]
        %v716 = vld [vmem:[%s283 + $0xaf0] sm:$0xff]
        %v717 = vld [vmem:[%s283 + $0xaf8] sm:$0xff]
        %v718 = vld [vmem:[%s283 + $0xb00] sm:$0xff]
        %v719 = vld [vmem:[%s283 + $0xb08] sm:$0xff]
        %v720 = vld [vmem:[%s283 + $0xb10] sm:$0xff]
        %v721 = vld [vmem:[%s283 + $0xb18] sm:$0xff]
        %v722 = vld [vmem:[%s283 + $0xb20] sm:$0xff]
        %v723 = vld [vmem:[%s283 + $0xb28] sm:$0xff]
        %v724 = vld [vmem:[%s283 + $0xb30] sm:$0xff]
        %v725 = vld [vmem:[%s283 + $0xb38] sm:$0xff]
        %v726 = vld [vmem:[%s283 + $0xb40] sm:$0xff]
        %v727 = vld [vmem:[%s283 + $0xb48] sm:$0xff]
        %v728 = vld [vmem:[%s283 + $0xb50] sm:$0xff]
        %v729 = vld [vmem:[%s283 + $0xb58] sm:$0xff]
        %v730 = vld [vmem:[%s283 + $0xb60] sm:$0xff]
        %v731 = vld [vmem:[%s283 + $0xb68] sm:$0xff]
        %v732 = vld [vmem:[%s283 + $0xb70] sm:$0xff]
        %v733 = vld [vmem:[%s283 + $0xb78] sm:$0xff]
        %v734 = vld [vmem:[%s283 + $0xb80] sm:$0xff]
        %v735 = vld [vmem:[%s283 + $0xb88] sm:$0xff]
        %v736 = vld [vmem:[%s283 + $0xb90] sm:$0xff]
        %v737 = vld [vmem:[%s283 + $0xb98] sm:$0xff]
        %v738 = vld [vmem:[%s283 + $0xba0] sm:$0xff]
        %v739 = vld [vmem:[%s283 + $0xba8] sm:$0xff]
        %v740 = vld [vmem:[%s283 + $0xbb0] sm:$0xff]
        %v741 = vld [vmem:[%s283 + $0xbb8] sm:$0xff]
        %v742 = vld [vmem:[%s283 + $0xbc0] sm:$0xff]
        %v743 = vld [vmem:[%s283 + $0xbc8] sm:$0xff]
        %v744 = vld [vmem:[%s283 + $0xbd0] sm:$0xff]
        %v745 = vld [vmem:[%s283 + $0xbd8] sm:$0xff]
        %v746 = vld [vmem:[%s283 + $0xbe0] sm:$0xff]
        %v747 = vld [vmem:[%s283 + $0xbe8] sm:$0xff]
        %v748 = vld [vmem:[%s283 + $0xbf0] sm:$0xff]
        %v749 = vld [vmem:[%s283 + $0xbf8] sm:$0xff]
        %v750 = vld [vmem:[%s283 + $0xc00] sm:$0xff]
        %v751 = vld [vmem:[%s283 + $0xc08] sm:$0xff]
        %v752 = vld [vmem:[%s283 + $0xc10] sm:$0xff]
        %v753 = vld [vmem:[%s283 + $0xc18] sm:$0xff]
        %v754 = vld [vmem:[%s283 + $0xc20] sm:$0xff]
        %v755 = vld [vmem:[%s283 + $0xc28] sm:$0xff]
        %v756 = vld [vmem:[%s283 + $0xc30] sm:$0xff]
        %v757 = vld [vmem:[%s283 + $0xc38] sm:$0xff]
        %v758 = vld [vmem:[%s283 + $0xc40] sm:$0xff]
        %v759 = vld [vmem:[%s283 + $0xc48] sm:$0xff]
        %v760 = vld [vmem:[%s283 + $0xc50] sm:$0xff]
        %v761 = vld [vmem:[%s283 + $0xc58] sm:$0xff]
        %v762 = vld [vmem:[%s283 + $0xc60] sm:$0xff]
        %v763 = vld [vmem:[%s283 + $0xc68] sm:$0xff]
        %v764 = vld [vmem:[%s283 + $0xc70] sm:$0xff]
        %v765 = vld [vmem:[%s283 + $0xc78] sm:$0xff]
        %v766 = vld [vmem:[%s283 + $0xc80] sm:$0xff]
        %v767 = vld [vmem:[%s283 + $0xc88] sm:$0xff]
        %v768 = vld [vmem:[%s283 + $0xc90] sm:$0xff]
        %v769 = vld [vmem:[%s283 + $0xc98] sm:$0xff]
        %v770 = vld [vmem:[%s283 + $0xca0] sm:$0xff]
        %v771 = vld [vmem:[%s283 + $0xca8] sm:$0xff]
        %v772 = vld [vmem:[%s283 + $0xcb0] sm:$0xff]
        %v773 = vld [vmem:[%s283 + $0xcb8] sm:$0xff]
        %v774 = vld [vmem:[%s283 + $0xcc0] sm:$0xff]
        %v775 = vld [vmem:[%s283 + $0xcc8] sm:$0xff]
        %v776 = vld [vmem:[%s283 + $0xcd0] sm:$0xff]
        %v777 = vld [vmem:[%s283 + $0xcd8] sm:$0xff]
        %v778 = vld [vmem:[%s283 + $0xce0] sm:$0xff]
        %v779 = vld [vmem:[%s283 + $0xce8] sm:$0xff]
        %v780 = vld [vmem:[%s283 + $0xcf0] sm:$0xff]
        %v781 = vld [vmem:[%s283 + $0xcf8] sm:$0xff]
        %v782 = vld [vmem:[%s283 + $0xd00] sm:$0xff]
        %v783 = vld [vmem:[%s283 + $0xd08] sm:$0xff]
        %v784 = vld [vmem:[%s283 + $0xd10] sm:$0xff]
        %v785 = vld [vmem:[%s283 + $0xd18] sm:$0xff]
        %v786 = vld [vmem:[%s283 + $0xd20] sm:$0xff]
        %v787 = vld [vmem:[%s283 + $0xd28] sm:$0xff]
        %v788 = vld [vmem:[%s283 + $0xd30] sm:$0xff]
        %v789 = vld [vmem:[%s283 + $0xd38] sm:$0xff]
        %v790 = vld [vmem:[%s283 + $0xd40] sm:$0xff]
        %v791 = vld [vmem:[%s283 + $0xd48] sm:$0xff]
        %v792 = vld [vmem:[%s283 + $0xd50] sm:$0xff]
        %v793 = vld [vmem:[%s283 + $0xd58] sm:$0xff]
        %v794 = vld [vmem:[%s283 + $0xd60] sm:$0xff]
        %v795 = vld [vmem:[%s283 + $0xd68] sm:$0xff]
        %v796 = vld [vmem:[%s283 + $0xd70] sm:$0xff]
        %v797 = vld [vmem:[%s283 + $0xd78] sm:$0xff]
        %v798 = vld [vmem:[%s283 + $0xd80] sm:$0xff]
        %v799 = vld [vmem:[%s283 + $0xd88] sm:$0xff]
        %v800 = vld [vmem:[%s283 + $0xd90] sm:$0xff]
        %v801 = vld [vmem:[%s283 + $0xd98] sm:$0xff]
        %v802 = vld [vmem:[%s283 + $0xda0] sm:$0xff]
        %v803 = vld [vmem:[%s283 + $0xda8] sm:$0xff]
        %v804 = vld [vmem:[%s283 + $0xdb0] sm:$0xff]
        %v805 = vld [vmem:[%s283 + $0xdb8] sm:$0xff]
        %v806 = vld [vmem:[%s283 + $0xdc0] sm:$0xff]
        %v807 = vld [vmem:[%s283 + $0xdc8] sm:$0xff]
        %v808 = vld [vmem:[%s283 + $0xdd0] sm:$0xff]
        %v809 = vld [vmem:[%s283 + $0xdd8] sm:$0xff]
        %v810 = vld [vmem:[%s283 + $0xde0] sm:$0xff]
        %v811 = vld [vmem:[%s283 + $0xde8] sm:$0xff]
        %v812 = vld [vmem:[%s283 + $0xdf0] sm:$0xff]
        %v813 = vld [vmem:[%s283 + $0xdf8] sm:$0xff]
        %v814 = vld [vmem:[%s283 + $0xe00] sm:$0xff]
        %v815 = vld [vmem:[%s283 + $0xe08] sm:$0xff]
        %v816 = vld [vmem:[%s283 + $0xe10] sm:$0xff]
        %v817 = vld [vmem:[%s283 + $0xe18] sm:$0xff]
        %v818 = vld [vmem:[%s283 + $0xe20] sm:$0xff]
        %v819 = vld [vmem:[%s283 + $0xe28] sm:$0xff]
        %v820 = vld [vmem:[%s283 + $0xe30] sm:$0xff]
        %v821 = vld [vmem:[%s283 + $0xe38] sm:$0xff]
        %v822 = vld [vmem:[%s283 + $0xe40] sm:$0xff]
        %v823 = vld [vmem:[%s283 + $0xe48] sm:$0xff]
        %v824 = vld [vmem:[%s283 + $0xe50] sm:$0xff]
        %v825 = vld [vmem:[%s283 + $0xe58] sm:$0xff]
        %v826 = vld [vmem:[%s283 + $0xe60] sm:$0xff]
        %v827 = vld [vmem:[%s283 + $0xe68] sm:$0xff]
        %v828 = vld [vmem:[%s283 + $0xe70] sm:$0xff]
        %v829 = vld [vmem:[%s283 + $0xe78] sm:$0xff]
        %v830 = vld [vmem:[%s283 + $0xe80] sm:$0xff]
        %v831 = vld [vmem:[%s283 + $0xe88] sm:$0xff]
        %v832 = vld [vmem:[%s283 + $0xe90] sm:$0xff]
        %v833 = vld [vmem:[%s283 + $0xe98] sm:$0xff]
        %v834 = vld [vmem:[%s283 + $0xea0] sm:$0xff]
        %v835 = vld [vmem:[%s283 + $0xea8] sm:$0xff]
        %v836 = vld [vmem:[%s283 + $0xeb0] sm:$0xff]
        %v837 = vld [vmem:[%s283 + $0xeb8] sm:$0xff]
        %v838 = vld [vmem:[%s283 + $0xec0] sm:$0xff]
        %v839 = vld [vmem:[%s283 + $0xec8] sm:$0xff]
        %v840 = vld [vmem:[%s283 + $0xed0] sm:$0xff]
        %v841 = vld [vmem:[%s283 + $0xed8] sm:$0xff]
        %v842 = vld [vmem:[%s283 + $0xee0] sm:$0xff]
        %v843 = vld [vmem:[%s283 + $0xee8] sm:$0xff]
        %v844 = vld [vmem:[%s283 + $0xef0] sm:$0xff]
        %v845 = vld [vmem:[%s283 + $0xef8] sm:$0xff]
        %v846 = vld [vmem:[%s283 + $0xf00] sm:$0xff]
        %v847 = vld [vmem:[%s283 + $0xf08] sm:$0xff]
        %v848 = vld [vmem:[%s283 + $0xf10] sm:$0xff]
        %v849 = vld [vmem:[%s283 + $0xf18] sm:$0xff]
        %v850 = vld [vmem:[%s283 + $0xf20] sm:$0xff]
        %v851 = vld [vmem:[%s283 + $0xf28] sm:$0xff]
        %v852 = vld [vmem:[%s283 + $0xf30] sm:$0xff]
        %v853 = vld [vmem:[%s283 + $0xf38] sm:$0xff]
        %v854 = vld [vmem:[%s283 + $0xf40] sm:$0xff]
        %v855 = vld [vmem:[%s283 + $0xf48] sm:$0xff]
        %v856 = vld [vmem:[%s283 + $0xf50] sm:$0xff]
        %v857 = vld [vmem:[%s283 + $0xf58] sm:$0xff]
        %v858 = vld [vmem:[%s283 + $0xf60] sm:$0xff]
        %v859 = vld [vmem:[%s283 + $0xf68] sm:$0xff]
        %v860 = vld [vmem:[%s283 + $0xf70] sm:$0xff]
        %v861 = vld [vmem:[%s283 + $0xf78] sm:$0xff]
        %v862 = vld [vmem:[%s283 + $0xf80] sm:$0xff]
        %v863 = vld [vmem:[%s283 + $0xf88] sm:$0xff]
        %v864 = vld [vmem:[%s283 + $0xf90] sm:$0xff]
        %v865 = vld [vmem:[%s283 + $0xf98] sm:$0xff]
        %v866 = vld [vmem:[%s283 + $0xfa0] sm:$0xff]
        %v867 = vld [vmem:[%s283 + $0xfa8] sm:$0xff]
        %v868 = vld [vmem:[%s283 + $0xfb0] sm:$0xff]
        %v869 = vld [vmem:[%s283 + $0xfb8] sm:$0xff]
        %v870 = vld [vmem:[%s283 + $0xfc0] sm:$0xff]
        %v871 = vld [vmem:[%s283 + $0xfc8] sm:$0xff]
        %v872 = vld [vmem:[%s283 + $0xfd0] sm:$0xff]
        %v873 = vld [vmem:[%s283 + $0xfd8] sm:$0xff]
        %v874 = vld [vmem:[%s283 + $0xfe0] sm:$0xff]
        %v875 = vld [vmem:[%s283 + $0xfe8] sm:$0xff]
        %v876 = vld [vmem:[%s283 + $0xff0] sm:$0xff]
        %v877 = vld [vmem:[%s283 + $0xff8] sm:$0xff]
        %v878 = vld [vmem:[%s283 + $0x1000] sm:$0xff]
        %v879 = vld [vmem:[%s283 + $0x1008] sm:$0xff]
        %v880 = vld [vmem:[%s283 + $0x1010] sm:$0xff]
        %v881 = vld [vmem:[%s283 + $0x1018] sm:$0xff]
        %v882 = vld [vmem:[%s283 + $0x1020] sm:$0xff]
        %v883 = vld [vmem:[%s283 + $0x1028] sm:$0xff]
        %v884 = vld [vmem:[%s283 + $0x1030] sm:$0xff]
        %v885 = vld [vmem:[%s283 + $0x1038] sm:$0xff]
        %v886 = vld [vmem:[%s283 + $0x1040] sm:$0xff]
        %v887 = vld [vmem:[%s283 + $0x1048] sm:$0xff]
        %v888 = vld [vmem:[%s283 + $0x1050] sm:$0xff]
        %v889 = vld [vmem:[%s283 + $0x1058] sm:$0xff]
        %v890 = vld [vmem:[%s283 + $0x1060] sm:$0xff]
        %v891 = vld [vmem:[%s283 + $0x1068] sm:$0xff]
        %v892 = vld [vmem:[%s283 + $0x1070] sm:$0xff]
        %v893 = vld [vmem:[%s283 + $0x1078] sm:$0xff]
        %v894 = vld [vmem:[%s283 + $0x1080] sm:$0xff]
        %v895 = vld [vmem:[%s283 + $0x1088] sm:$0xff]
        %v896 = vld [vmem:[%s283 + $0x1090] sm:$0xff]
        %v897 = vld [vmem:[%s283 + $0x1098] sm:$0xff]
        %v898 = vld [vmem:[%s283 + $0x10a0] sm:$0xff]
        %v899 = vld [vmem:[%s283 + $0x10a8] sm:$0xff]
        %v900 = vld [vmem:[%s283 + $0x10b0] sm:$0xff]
        %v901 = vld [vmem:[%s283 + $0x10b8] sm:$0xff]
        %v902 = vld [vmem:[%s283 + $0x10c0] sm:$0xff]
        %v903 = vld [vmem:[%s283 + $0x10c8] sm:$0xff]
        %v904 = vld [vmem:[%s283 + $0x10d0] sm:$0xff]
        %v905 = vld [vmem:[%s283 + $0x10d8] sm:$0xff]
        %v906 = vld [vmem:[%s283 + $0x10e0] sm:$0xff]
        %v907 = vld [vmem:[%s283 + $0x10e8] sm:$0xff]
        %v908 = vld [vmem:[%s283 + $0x10f0] sm:$0xff]
        %v909 = vld [vmem:[%s283 + $0x10f8] sm:$0xff]
        %v910 = vld [vmem:[%s283 + $0x1100] sm:$0xff]
        %v911 = vld [vmem:[%s283 + $0x1108] sm:$0xff]
        %v912 = vld [vmem:[%s283 + $0x1110] sm:$0xff]
        %v913 = vld [vmem:[%s283 + $0x1118] sm:$0xff]
        %v914 = vld [vmem:[%s283 + $0x1120] sm:$0xff]
        %v915 = vld [vmem:[%s283 + $0x1128] sm:$0xff]
        %v916 = vld [vmem:[%s283 + $0x1130] sm:$0xff]
        %v917 = vld [vmem:[%s283 + $0x1138] sm:$0xff]
        %v918 = vld [vmem:[%s283 + $0x1140] sm:$0xff]
        %v919 = vld [vmem:[%s283 + $0x1148] sm:$0xff]
        %v920 = vld [vmem:[%s283 + $0x1150] sm:$0xff]
        %v921 = vld [vmem:[%s283 + $0x1158] sm:$0xff]
        %v922 = vld [vmem:[%s283 + $0x1160] sm:$0xff]
        %v923 = vld [vmem:[%s283 + $0x1168] sm:$0xff]
        %v924 = vld [vmem:[%s283 + $0x1170] sm:$0xff]
        %v925 = vld [vmem:[%s283 + $0x1178] sm:$0xff]
        %v926 = vld [vmem:[%s283 + $0x1180] sm:$0xff]
        %v927 = vld [vmem:[%s283 + $0x1188] sm:$0xff]
        %v928 = vld [vmem:[%s283 + $0x1190] sm:$0xff]
        %v929 = vld [vmem:[%s283 + $0x1198] sm:$0xff]
        %v930 = vld [vmem:[%s283 + $0x11a0] sm:$0xff]
        %v931 = vld [vmem:[%s283 + $0x11a8] sm:$0xff]
        %v932 = vld [vmem:[%s283 + $0x11b0] sm:$0xff]
        %v933 = vld [vmem:[%s283 + $0x11b8] sm:$0xff]
        %v934 = vld [vmem:[%s283 + $0x11c0] sm:$0xff]
        %v935 = vld [vmem:[%s283 + $0x11c8] sm:$0xff]
        %v936 = vld [vmem:[%s283 + $0x11d0] sm:$0xff]
        %v937 = vld [vmem:[%s283 + $0x11d8] sm:$0xff]
        %v938 = vld [vmem:[%s283 + $0x11e0] sm:$0xff]
        %v939 = vld [vmem:[%s283 + $0x11e8] sm:$0xff]
        %v940 = vld [vmem:[%s283 + $0x11f0] sm:$0xff]
        %v941 = vld [vmem:[%s283 + $0x11f8] sm:$0xff]
        %v942 = vld [vmem:[%s283 + $0x1200] sm:$0xff]
        %v943 = vld [vmem:[%s283 + $0x1208] sm:$0xff]
        %v944 = vld [vmem:[%s283 + $0x1210] sm:$0xff]
        %v945 = vld [vmem:[%s283 + $0x1218] sm:$0xff]
        %v946 = vld [vmem:[%s283 + $0x1220] sm:$0xff]
        %v947 = vld [vmem:[%s283 + $0x1228] sm:$0xff]
        %v948 = vld [vmem:[%s283 + $0x1230] sm:$0xff]
        %v949 = vld [vmem:[%s283 + $0x1238] sm:$0xff]
        %v950 = vld [vmem:[%s283 + $0x1240] sm:$0xff]
        %v951 = vld [vmem:[%s283 + $0x1248] sm:$0xff]
        %v952 = vld [vmem:[%s283 + $0x1250] sm:$0xff]
        %v953 = vld [vmem:[%s283 + $0x1258] sm:$0xff]
        %v954 = vld [vmem:[%s283 + $0x1260] sm:$0xff]
        %v955 = vld [vmem:[%s283 + $0x1268] sm:$0xff]
        %v956 = vld [vmem:[%s283 + $0x1270] sm:$0xff]
        %v957 = vld [vmem:[%s283 + $0x1278] sm:$0xff]
        %v958 = vld [vmem:[%s283 + $0x1280] sm:$0xff]
        %v959 = vld [vmem:[%s283 + $0x1288] sm:$0xff]
        %v960 = vld [vmem:[%s283 + $0x1290] sm:$0xff]
        %v961 = vld [vmem:[%s283 + $0x1298] sm:$0xff]
        %v962 = vld [vmem:[%s283 + $0x12a0] sm:$0xff]
        %v963 = vld [vmem:[%s283 + $0x12a8] sm:$0xff]
        %v964 = vld [vmem:[%s283 + $0x12b0] sm:$0xff]
        %v965 = vld [vmem:[%s283 + $0x12b8] sm:$0xff]
        %v966 = vld [vmem:[%s283 + $0x12c0] sm:$0xff]
        %v967 = vld [vmem:[%s283 + $0x12c8] sm:$0xff]
        %v968 = vld [vmem:[%s283 + $0x12d0] sm:$0xff]
        %v969 = vld [vmem:[%s283 + $0x12d8] sm:$0xff]
        %v970 = vld [vmem:[%s283 + $0x12e0] sm:$0xff]
        %v971 = vld [vmem:[%s283 + $0x12e8] sm:$0xff]
        %v972 = vld [vmem:[%s283 + $0x12f0] sm:$0xff]
        %v973 = vld [vmem:[%s283 + $0x12f8] sm:$0xff]
        %v974 = vld [vmem:[%s283 + $0x1300] sm:$0xff]
        %v975 = vld [vmem:[%s283 + $0x1308] sm:$0xff]
        %v976 = vld [vmem:[%s283 + $0x1310] sm:$0xff]
        %v977 = vld [vmem:[%s283 + $0x1318] sm:$0xff]
        %v978 = vld [vmem:[%s283 + $0x1320] sm:$0xff]
        %v979 = vld [vmem:[%s283 + $0x1328] sm:$0xff]
        %v980 = vld [vmem:[%s283 + $0x1330] sm:$0xff]
        %v981 = vld [vmem:[%s283 + $0x1338] sm:$0xff]
        %v982 = vld [vmem:[%s283 + $0x1340] sm:$0xff]
        %v983 = vld [vmem:[%s283 + $0x1348] sm:$0xff]
        %v984 = vld [vmem:[%s283 + $0x1350] sm:$0xff]
        %v985 = vld [vmem:[%s283 + $0x1358] sm:$0xff]
        %v986 = vld [vmem:[%s283 + $0x1360] sm:$0xff]
        %v987 = vld [vmem:[%s283 + $0x1368] sm:$0xff]
        %v988 = vld [vmem:[%s283 + $0x1370] sm:$0xff]
        %v989 = vld [vmem:[%s283 + $0x1378] sm:$0xff]
        %v990 = vld [vmem:[%s283 + $0x1380] sm:$0xff]
        %v991 = vld [vmem:[%s283 + $0x1388] sm:$0xff]
        %v992 = vld [vmem:[%s283 + $0x1390] sm:$0xff]
        %v993 = vld [vmem:[%s283 + $0x1398] sm:$0xff]
        %v994 = vld [vmem:[%s283 + $0x13a0] sm:$0xff]
        %v995 = vld [vmem:[%s283 + $0x13a8] sm:$0xff]
        %v996 = vld [vmem:[%s283 + $0x13b0] sm:$0xff]
        %v997 = vld [vmem:[%s283 + $0x13b8] sm:$0xff]
        %v998 = vld [vmem:[%s283 + $0x13c0] sm:$0xff]
        %v999 = vld [vmem:[%s283 + $0x13c8] sm:$0xff]
        %v1000 = vld [vmem:[%s283 + $0x13d0] sm:$0xff]
        %v1001 = vld [vmem:[%s283 + $0x13d8] sm:$0xff]
        %v1002 = vld [vmem:[%s283 + $0x13e0] sm:$0xff]
        %v1003 = vld [vmem:[%s283 + $0x13e8] sm:$0xff]
        %v1004 = vld [vmem:[%s283 + $0x13f0] sm:$0xff]
        %v1005 = vld [vmem:[%s283 + $0x13f8] sm:$0xff]
        %v1006 = vld [vmem:[%s283 + $0x1400] sm:$0xff]
        %v1007 = vld [vmem:[%s283 + $0x1408] sm:$0xff]
        %v1008 = vld [vmem:[%s283 + $0x1410] sm:$0xff]
        %v1009 = vld [vmem:[%s283 + $0x1418] sm:$0xff]
        %v1010 = vld [vmem:[%s283 + $0x1420] sm:$0xff]
        %v1011 = vld [vmem:[%s283 + $0x1428] sm:$0xff]
        %v1012 = vld [vmem:[%s283 + $0x1430] sm:$0xff]
        %v1013 = vld [vmem:[%s283 + $0x1438] sm:$0xff]
        %v1014 = vld [vmem:[%s283 + $0x1440] sm:$0xff]
        %v1015 = vld [vmem:[%s283 + $0x1448] sm:$0xff]
        %v1016 = vld [vmem:[%s283 + $0x1450] sm:$0xff]
        %v1017 = vld [vmem:[%s283 + $0x1458] sm:$0xff]
        %v1018 = vld [vmem:[%s283 + $0x1460] sm:$0xff]
        %v1019 = vld [vmem:[%s283 + $0x1468] sm:$0xff]
        %v1020 = vld [vmem:[%s283 + $0x1470] sm:$0xff]
        %v1021 = vld [vmem:[%s283 + $0x1478] sm:$0xff]
        %v1022 = vld [vmem:[%s283 + $0x1480] sm:$0xff]
        %v1023 = vld [vmem:[%s283 + $0x1488] sm:$0xff]
        %v1024 = vld [vmem:[%s283 + $0x1490] sm:$0xff]
        %v1025 = vld [vmem:[%s283 + $0x1498] sm:$0xff]
        %v1026 = vld [vmem:[%s283 + $0x14a0] sm:$0xff]
        %v1027 = vld [vmem:[%s283 + $0x14a8] sm:$0xff]
        %v1028 = vld [vmem:[%s283 + $0x14b0] sm:$0xff]
        %v1029 = vld [vmem:[%s283 + $0x14b8] sm:$0xff]
        %v1030 = vld [vmem:[%s283 + $0x14c0] sm:$0xff]
        %v1031 = vld [vmem:[%s283 + $0x14c8] sm:$0xff]
        %v1032 = vld [vmem:[%s283 + $0x14d0] sm:$0xff]
        %v1033 = vld [vmem:[%s283 + $0x14d8] sm:$0xff]
        %v1034 = vld [vmem:[%s283 + $0x14e0] sm:$0xff]
        %v1035 = vld [vmem:[%s283 + $0x14e8] sm:$0xff]
        %v1036 = vld [vmem:[%s283 + $0x14f0] sm:$0xff]
        %v1037 = vld [vmem:[%s283 + $0x14f8] sm:$0xff]
        %v1038 = vld [vmem:[%s283 + $0x1500] sm:$0xff]
        %v1039 = vld [vmem:[%s283 + $0x1508] sm:$0xff]
        %v1040 = vld [vmem:[%s283 + $0x1510] sm:$0xff]
        %v1041 = vld [vmem:[%s283 + $0x1518] sm:$0xff]
        %v1042 = vld [vmem:[%s283 + $0x1520] sm:$0xff]
        %v1043 = vld [vmem:[%s283 + $0x1528] sm:$0xff]
        %v1044 = vld [vmem:[%s283 + $0x1530] sm:$0xff]
        %v1045 = vld [vmem:[%s283 + $0x1538] sm:$0xff]
        %v1046 = vld [vmem:[%s283 + $0x1540] sm:$0xff]
        %v1047 = vld [vmem:[%s283 + $0x1548] sm:$0xff]
        %v1048 = vld [vmem:[%s283 + $0x1550] sm:$0xff]
        %v1049 = vld [vmem:[%s283 + $0x1558] sm:$0xff]
        %v1050 = vld [vmem:[%s283 + $0x1560] sm:$0xff]
        %v1051 = vld [vmem:[%s283 + $0x1568] sm:$0xff]
        %v1052 = vld [vmem:[%s283 + $0x1570] sm:$0xff]
        %v1053 = vld [vmem:[%s283 + $0x1578] sm:$0xff]
        %v1054 = vld [vmem:[%s283 + $0x1580] sm:$0xff]
        %v1055 = vld [vmem:[%s283 + $0x1588] sm:$0xff]
        %v1056 = vld [vmem:[%s283 + $0x1590] sm:$0xff]
        %v1057 = vld [vmem:[%s283 + $0x1598] sm:$0xff]
        %v1058 = vld [vmem:[%s283 + $0x15a0] sm:$0xff]
        %v1059 = vld [vmem:[%s283 + $0x15a8] sm:$0xff]
        %v1060 = vld [vmem:[%s283 + $0x15b0] sm:$0xff]
        %v1061 = vld [vmem:[%s283 + $0x15b8] sm:$0xff]
        %v1062 = vld [vmem:[%s283 + $0x15c0] sm:$0xff]
        %v1063 = vld [vmem:[%s283 + $0x15c8] sm:$0xff]
        %v1064 = vld [vmem:[%s283 + $0x15d0] sm:$0xff]
        %v1065 = vld [vmem:[%s283 + $0x15d8] sm:$0xff]
        %v1066 = vld [vmem:[%s283 + $0x15e0] sm:$0xff]
        %v1067 = vld [vmem:[%s283 + $0x15e8] sm:$0xff]
        %v1068 = vld [vmem:[%s283 + $0x15f0] sm:$0xff]
        %v1069 = vld [vmem:[%s283 + $0x15f8] sm:$0xff]
        %v1070 = vld [vmem:[%s283 + $0x1600] sm:$0xff]
        %v1071 = vld [vmem:[%s283 + $0x1608] sm:$0xff]
        %v1072 = vld [vmem:[%s283 + $0x1610] sm:$0xff]
        %v1073 = vld [vmem:[%s283 + $0x1618] sm:$0xff]
        %v1074 = vld [vmem:[%s283 + $0x1620] sm:$0xff]
        %v1075 = vld [vmem:[%s283 + $0x1628] sm:$0xff]
        %v1076 = vld [vmem:[%s283 + $0x1630] sm:$0xff]
        %v1077 = vld [vmem:[%s283 + $0x1638] sm:$0xff]
        %v1078 = vld [vmem:[%s283 + $0x1640] sm:$0xff]
        %v1079 = vld [vmem:[%s283 + $0x1648] sm:$0xff]
        %v1080 = vld [vmem:[%s283 + $0x1650] sm:$0xff]
        %v1081 = vld [vmem:[%s283 + $0x1658] sm:$0xff]
        %v1082 = vld [vmem:[%s283 + $0x1660] sm:$0xff]
        %v1083 = vld [vmem:[%s283 + $0x1668] sm:$0xff]
        %v1084 = vld [vmem:[%s283 + $0x1670] sm:$0xff]
        %v1085 = vld [vmem:[%s283 + $0x1678] sm:$0xff]
        %v1086 = vld [vmem:[%s283 + $0x1680] sm:$0xff]
        %v1087 = vld [vmem:[%s283 + $0x1688] sm:$0xff]
        %v1088 = vld [vmem:[%s283 + $0x1690] sm:$0xff]
        %v1089 = vld [vmem:[%s283 + $0x1698] sm:$0xff]
        %v1090 = vld [vmem:[%s283 + $0x16a0] sm:$0xff]
        %v1091 = vld [vmem:[%s283 + $0x16a8] sm:$0xff]
        %v1092 = vld [vmem:[%s283 + $0x16b0] sm:$0xff]
        %v1093 = vld [vmem:[%s283 + $0x16b8] sm:$0xff]
        %v1094 = vld [vmem:[%s283 + $0x16c0] sm:$0xff]
        %v1095 = vld [vmem:[%s283 + $0x16c8] sm:$0xff]
        %v1096 = vld [vmem:[%s283 + $0x16d0] sm:$0xff]
        %v1097 = vld [vmem:[%s283 + $0x16d8] sm:$0xff]
        %v1098 = vld [vmem:[%s283 + $0x16e0] sm:$0xff]
        %v1099 = vld [vmem:[%s283 + $0x16e8] sm:$0xff]
        %v1100 = vld [vmem:[%s283 + $0x16f0] sm:$0xff]
        %v1101 = vld [vmem:[%s283 + $0x16f8] sm:$0xff]
        %v1102 = vld [vmem:[%s283 + $0x1700] sm:$0xff]
        %v1103 = vld [vmem:[%s283 + $0x1708] sm:$0xff]
        %v1104 = vld [vmem:[%s283 + $0x1710] sm:$0xff]
        %v1105 = vld [vmem:[%s283 + $0x1718] sm:$0xff]
        %v1106 = vld [vmem:[%s283 + $0x1720] sm:$0xff]
        %v1107 = vld [vmem:[%s283 + $0x1728] sm:$0xff]
        %v1108 = vld [vmem:[%s283 + $0x1730] sm:$0xff]
        %v1109 = vld [vmem:[%s283 + $0x1738] sm:$0xff]
        %v1110 = vld [vmem:[%s283 + $0x1740] sm:$0xff]
        %v1111 = vld [vmem:[%s283 + $0x1748] sm:$0xff]
        %v1112 = vld [vmem:[%s283 + $0x1750] sm:$0xff]
        %v1113 = vld [vmem:[%s283 + $0x1758] sm:$0xff]
        %v1114 = vld [vmem:[%s283 + $0x1760] sm:$0xff]
        %v1115 = vld [vmem:[%s283 + $0x1768] sm:$0xff]
        %v1116 = vld [vmem:[%s283 + $0x1770] sm:$0xff]
        %v1117 = vld [vmem:[%s283 + $0x1778] sm:$0xff]
        %v1124 = vcombine.high %v360, %v360
        %v1126 = vunpack.c.l.s4 1966171168
        %v1127 = vunpack.c.0.s8 %v1126
        %v1128 = vlaneseq
        %v1129 = vshrl.u32 %v1128, 7
        %v1130 = vsub.s32 %v1127, %v1129
        %v1131 = vrot.slane %v360, %v1130
        %v1133 = vunpack.c.l.s4 1966171168
        %v1134 = vunpack.c.0.s8 %v1133
        %v1135 = vlaneseq
        %v1136 = vshrl.u32 %v1135, 7
        %v1137 = vsub.s32 %v1134, %v1136
        %v1138 = vrot.slane %v1124, %v1137
        %v1139 = vcombine.high %v1131, %v1131
        %v1140 = vcombine.high %v1138, %v1138
        %v1142 = vunpack.c.l.s4 1966171168
        %v1143 = vunpack.c.0.s8 %v1142
        %v1144 = vlaneseq
        %v1145 = vshrl.u32 %v1144, 7
        %v1146 = vsub.s32 %v1143, %v1145
        %v1147 = vrot.slane %v1131, %v1146
        %v1149 = vunpack.c.l.s4 1966171168
        %v1150 = vunpack.c.0.s8 %v1149
        %v1151 = vlaneseq
        %v1152 = vshrl.u32 %v1151, 7
        %v1153 = vsub.s32 %v1150, %v1152
        %v1154 = vrot.slane %v1138, %v1153
        %v1156 = vunpack.c.l.s4 1966171168
        %v1157 = vunpack.c.0.s8 %v1156
        %v1158 = vlaneseq
        %v1159 = vshrl.u32 %v1158, 7
        %v1160 = vsub.s32 %v1157, %v1159
        %v1161 = vrot.slane %v1139, %v1160
        %v1163 = vunpack.c.l.s4 1966171168
        %v1164 = vunpack.c.0.s8 %v1163
        %v1165 = vlaneseq
        %v1166 = vshrl.u32 %v1165, 7
        %v1167 = vsub.s32 %v1164, %v1166
        %v1168 = vrot.slane %v1140, %v1167
        %v1169 = vcombine.high %v1147, %v1147
        %v1170 = vcombine.high %v1154, %v1154
        %v1171 = vcombine.high %v1161, %v1161
        %v1172 = vcombine.high %v1168, %v1168
        %v1173 = vcombine.high %v361, %v361
        %v1175 = vunpack.c.l.s4 1966171168
        %v1176 = vunpack.c.0.s8 %v1175
        %v1177 = vlaneseq
        %v1178 = vshrl.u32 %v1177, 7
        %v1179 = vsub.s32 %v1176, %v1178
        %v1180 = vrot.slane %v361, %v1179
        %v1182 = vunpack.c.l.s4 1966171168
        %v1183 = vunpack.c.0.s8 %v1182
        %v1184 = vlaneseq
        %v1185 = vshrl.u32 %v1184, 7
        %v1186 = vsub.s32 %v1183, %v1185
        %v1187 = vrot.slane %v1173, %v1186
        %v1188 = vcombine.high %v1180, %v1180
        %v1189 = vcombine.high %v1187, %v1187
        %v1191 = vunpack.c.l.s4 1966171168
        %v1192 = vunpack.c.0.s8 %v1191
        %v1193 = vlaneseq
        %v1194 = vshrl.u32 %v1193, 7
        %v1195 = vsub.s32 %v1192, %v1194
        %v1196 = vrot.slane %v1180, %v1195
        %v1198 = vunpack.c.l.s4 1966171168
        %v1199 = vunpack.c.0.s8 %v1198
        %v1200 = vlaneseq
        %v1201 = vshrl.u32 %v1200, 7
        %v1202 = vsub.s32 %v1199, %v1201
        %v1203 = vrot.slane %v1187, %v1202
        %v1205 = vunpack.c.l.s4 1966171168
        %v1206 = vunpack.c.0.s8 %v1205
        %v1207 = vlaneseq
        %v1208 = vshrl.u32 %v1207, 7
        %v1209 = vsub.s32 %v1206, %v1208
        %v1210 = vrot.slane %v1188, %v1209
        %v1212 = vunpack.c.l.s4 1966171168
        %v1213 = vunpack.c.0.s8 %v1212
        %v1214 = vlaneseq
        %v1215 = vshrl.u32 %v1214, 7
        %v1216 = vsub.s32 %v1213, %v1215
        %v1217 = vrot.slane %v1189, %v1216
        %v1218 = vcombine.high %v1196, %v1196
        %v1219 = vcombine.high %v1203, %v1203
        %v1220 = vcombine.high %v1210, %v1210
        %v1221 = vcombine.high %v1217, %v1217
        %v1222 = vcombine.high %v362, %v362
        %v1224 = vunpack.c.l.s4 1966171168
        %v1225 = vunpack.c.0.s8 %v1224
        %v1226 = vlaneseq
        %v1227 = vshrl.u32 %v1226, 7
        %v1228 = vsub.s32 %v1225, %v1227
        %v1229 = vrot.slane %v362, %v1228
        %v1231 = vunpack.c.l.s4 1966171168
        %v1232 = vunpack.c.0.s8 %v1231
        %v1233 = vlaneseq
        %v1234 = vshrl.u32 %v1233, 7
        %v1235 = vsub.s32 %v1232, %v1234
        %v1236 = vrot.slane %v1222, %v1235
        %v1237 = vcombine.high %v1229, %v1229
        %v1238 = vcombine.high %v1236, %v1236
        %v1240 = vunpack.c.l.s4 1966171168
        %v1241 = vunpack.c.0.s8 %v1240
        %v1242 = vlaneseq
        %v1243 = vshrl.u32 %v1242, 7
        %v1244 = vsub.s32 %v1241, %v1243
        %v1245 = vrot.slane %v1229, %v1244
        %v1247 = vunpack.c.l.s4 1966171168
        %v1248 = vunpack.c.0.s8 %v1247
        %v1249 = vlaneseq
        %v1250 = vshrl.u32 %v1249, 7
        %v1251 = vsub.s32 %v1248, %v1250
        %v1252 = vrot.slane %v1236, %v1251
        %v1254 = vunpack.c.l.s4 1966171168
        %v1255 = vunpack.c.0.s8 %v1254
        %v1256 = vlaneseq
        %v1257 = vshrl.u32 %v1256, 7
        %v1258 = vsub.s32 %v1255, %v1257
        %v1259 = vrot.slane %v1237, %v1258
        %v1261 = vunpack.c.l.s4 1966171168
        %v1262 = vunpack.c.0.s8 %v1261
        %v1263 = vlaneseq
        %v1264 = vshrl.u32 %v1263, 7
        %v1265 = vsub.s32 %v1262, %v1264
        %v1266 = vrot.slane %v1238, %v1265
        %v1267 = vcombine.high %v1245, %v1245
        %v1268 = vcombine.high %v1252, %v1252
        %v1269 = vcombine.high %v1259, %v1259
        %v1270 = vcombine.high %v1266, %v1266
        %v1271 = vcombine.high %v363, %v363
        %v1273 = vunpack.c.l.s4 1966171168
        %v1274 = vunpack.c.0.s8 %v1273
        %v1275 = vlaneseq
        %v1276 = vshrl.u32 %v1275, 7
        %v1277 = vsub.s32 %v1274, %v1276
        %v1278 = vrot.slane %v363, %v1277
        %v1280 = vunpack.c.l.s4 1966171168
        %v1281 = vunpack.c.0.s8 %v1280
        %v1282 = vlaneseq
        %v1283 = vshrl.u32 %v1282, 7
        %v1284 = vsub.s32 %v1281, %v1283
        %v1285 = vrot.slane %v1271, %v1284
        %v1286 = vcombine.high %v1278, %v1278
        %v1287 = vcombine.high %v1285, %v1285
        %v1289 = vunpack.c.l.s4 1966171168
        %v1290 = vunpack.c.0.s8 %v1289
        %v1291 = vlaneseq
        %v1292 = vshrl.u32 %v1291, 7
        %v1293 = vsub.s32 %v1290, %v1292
        %v1294 = vrot.slane %v1278, %v1293
        %v1296 = vunpack.c.l.s4 1966171168
        %v1297 = vunpack.c.0.s8 %v1296
        %v1298 = vlaneseq
        %v1299 = vshrl.u32 %v1298, 7
        %v1300 = vsub.s32 %v1297, %v1299
        %v1301 = vrot.slane %v1285, %v1300
        %v1303 = vunpack.c.l.s4 1966171168
        %v1304 = vunpack.c.0.s8 %v1303
        %v1305 = vlaneseq
        %v1306 = vshrl.u32 %v1305, 7
        %v1307 = vsub.s32 %v1304, %v1306
        %v1308 = vrot.slane %v1286, %v1307
        %v1310 = vunpack.c.l.s4 1966171168
        %v1311 = vunpack.c.0.s8 %v1310
        %v1312 = vlaneseq
        %v1313 = vshrl.u32 %v1312, 7
        %v1314 = vsub.s32 %v1311, %v1313
        %v1315 = vrot.slane %v1287, %v1314
        %v1316 = vcombine.high %v1294, %v1294
        %v1317 = vcombine.high %v1301, %v1301
        %v1318 = vcombine.high %v1308, %v1308
        %v1319 = vcombine.high %v1315, %v1315
        %v1320 = vcombine.high %v364, %v364
        %v1322 = vunpack.c.l.s4 1966171168
        %v1323 = vunpack.c.0.s8 %v1322
        %v1324 = vlaneseq
        %v1325 = vshrl.u32 %v1324, 7
        %v1326 = vsub.s32 %v1323, %v1325
        %v1327 = vrot.slane %v364, %v1326
        %v1329 = vunpack.c.l.s4 1966171168
        %v1330 = vunpack.c.0.s8 %v1329
        %v1331 = vlaneseq
        %v1332 = vshrl.u32 %v1331, 7
        %v1333 = vsub.s32 %v1330, %v1332
        %v1334 = vrot.slane %v1320, %v1333
        %v1335 = vcombine.high %v1327, %v1327
        %v1336 = vcombine.high %v1334, %v1334
        %v1338 = vunpack.c.l.s4 1966171168
        %v1339 = vunpack.c.0.s8 %v1338
        %v1340 = vlaneseq
        %v1341 = vshrl.u32 %v1340, 7
        %v1342 = vsub.s32 %v1339, %v1341
        %v1343 = vrot.slane %v1327, %v1342
        %v1345 = vunpack.c.l.s4 1966171168
        %v1346 = vunpack.c.0.s8 %v1345
        %v1347 = vlaneseq
        %v1348 = vshrl.u32 %v1347, 7
        %v1349 = vsub.s32 %v1346, %v1348
        %v1350 = vrot.slane %v1334, %v1349
        %v1352 = vunpack.c.l.s4 1966171168
        %v1353 = vunpack.c.0.s8 %v1352
        %v1354 = vlaneseq
        %v1355 = vshrl.u32 %v1354, 7
        %v1356 = vsub.s32 %v1353, %v1355
        %v1357 = vrot.slane %v1335, %v1356
        %v1359 = vunpack.c.l.s4 1966171168
        %v1360 = vunpack.c.0.s8 %v1359
        %v1361 = vlaneseq
        %v1362 = vshrl.u32 %v1361, 7
        %v1363 = vsub.s32 %v1360, %v1362
        %v1364 = vrot.slane %v1336, %v1363
        %v1365 = vcombine.high %v1343, %v1343
        %v1366 = vcombine.high %v1350, %v1350
        %v1367 = vcombine.high %v1357, %v1357
        %v1368 = vcombine.high %v1364, %v1364
        %v1369 = vcombine.high %v365, %v365
        %v1371 = vunpack.c.l.s4 1966171168
        %v1372 = vunpack.c.0.s8 %v1371
        %v1373 = vlaneseq
        %v1374 = vshrl.u32 %v1373, 7
        %v1375 = vsub.s32 %v1372, %v1374
        %v1376 = vrot.slane %v365, %v1375
        %v1378 = vunpack.c.l.s4 1966171168
        %v1379 = vunpack.c.0.s8 %v1378
        %v1380 = vlaneseq
        %v1381 = vshrl.u32 %v1380, 7
        %v1382 = vsub.s32 %v1379, %v1381
        %v1383 = vrot.slane %v1369, %v1382
        %v1384 = vcombine.high %v1376, %v1376
        %v1385 = vcombine.high %v1383, %v1383
        %v1387 = vunpack.c.l.s4 1966171168
        %v1388 = vunpack.c.0.s8 %v1387
        %v1389 = vlaneseq
        %v1390 = vshrl.u32 %v1389, 7
        %v1391 = vsub.s32 %v1388, %v1390
        %v1392 = vrot.slane %v1376, %v1391
        %v1394 = vunpack.c.l.s4 1966171168
        %v1395 = vunpack.c.0.s8 %v1394
        %v1396 = vlaneseq
        %v1397 = vshrl.u32 %v1396, 7
        %v1398 = vsub.s32 %v1395, %v1397
        %v1399 = vrot.slane %v1383, %v1398
        %v1401 = vunpack.c.l.s4 1966171168
        %v1402 = vunpack.c.0.s8 %v1401
        %v1403 = vlaneseq
        %v1404 = vshrl.u32 %v1403, 7
        %v1405 = vsub.s32 %v1402, %v1404
        %v1406 = vrot.slane %v1384, %v1405
        %v1408 = vunpack.c.l.s4 1966171168
        %v1409 = vunpack.c.0.s8 %v1408
        %v1410 = vlaneseq
        %v1411 = vshrl.u32 %v1410, 7
        %v1412 = vsub.s32 %v1409, %v1411
        %v1413 = vrot.slane %v1385, %v1412
        %v1414 = vcombine.high %v1392, %v1392
        %v1415 = vcombine.high %v1399, %v1399
        %v1416 = vcombine.high %v1406, %v1406
        %v2216 = vunpack.c.l.b16 %v366
        %v2217 = vunpack.c.h.b16 %v366
        %v2218 = vunpack.c.l.b16 %v367
        %v2219 = vunpack.c.h.b16 %v367
        %v2220 = vunpack.c.l.b16 %v368
        %v2221 = vunpack.c.h.b16 %v368
        %v2222 = vunpack.c.l.b16 %v369
        %v2223 = vunpack.c.h.b16 %v369
        %v2224 = vunpack.c.l.b16 %v370
        %v2225 = vunpack.c.h.b16 %v370
        %v2226 = vunpack.c.l.b16 %v371
        %v2227 = vunpack.c.h.b16 %v371
        %v2228 = vunpack.c.l.b16 %v372
        %v2229 = vunpack.c.h.b16 %v372
        %v2230 = vunpack.c.l.b16 %v373
        %v2231 = vunpack.c.h.b16 %v373
        %v2232 = vunpack.c.l.b16 %v374
        %v2233 = vunpack.c.h.b16 %v374
        %v2234 = vunpack.c.l.b16 %v375
        %v2235 = vunpack.c.h.b16 %v375
        %v2236 = vunpack.c.l.b16 %v376
        %v2237 = vunpack.c.h.b16 %v376
        %v2238 = vunpack.c.l.b16 %v377
        %v2239 = vunpack.c.h.b16 %v377
        %v2240 = vunpack.c.l.b16 %v378
        %v2241 = vunpack.c.h.b16 %v378
        %v2242 = vunpack.c.l.b16 %v379
        %v2243 = vunpack.c.h.b16 %v379
        %v2244 = vunpack.c.l.b16 %v380
        %v2245 = vunpack.c.h.b16 %v380
        %v2246 = vunpack.c.l.b16 %v381
        %v2247 = vunpack.c.h.b16 %v381
        %v2248 = vunpack.c.l.b16 %v382
        %v2249 = vunpack.c.h.b16 %v382
        %v2250 = vunpack.c.l.b16 %v383
        %v2251 = vunpack.c.h.b16 %v383
        %v2252 = vunpack.c.l.b16 %v384
        %v2253 = vunpack.c.h.b16 %v384
        %v2254 = vunpack.c.l.b16 %v385
        %v2255 = vunpack.c.h.b16 %v385
        %v2256 = vunpack.c.l.b16 %v386
        %v2257 = vunpack.c.h.b16 %v386
        %v2258 = vunpack.c.l.b16 %v387
        %v2259 = vunpack.c.h.b16 %v387
        %v2260 = vunpack.c.l.b16 %v388
        %v2261 = vunpack.c.h.b16 %v388
        %v2262 = vunpack.c.l.b16 %v389
        %v2263 = vunpack.c.h.b16 %v389
        %v2264 = vunpack.c.l.b16 %v390
        %v2265 = vunpack.c.h.b16 %v390
        %v2266 = vunpack.c.l.b16 %v391
        %v2267 = vunpack.c.h.b16 %v391
        %v2268 = vunpack.c.l.b16 %v392
        %v2269 = vunpack.c.h.b16 %v392
        %v2270 = vunpack.c.l.b16 %v393
        %v2271 = vunpack.c.h.b16 %v393
        %v2272 = vunpack.c.l.b16 %v394
        %v2273 = vunpack.c.h.b16 %v394
        %v2274 = vunpack.c.l.b16 %v395
        %v2275 = vunpack.c.h.b16 %v395
        %v2276 = vunpack.c.l.b16 %v396
        %v2277 = vunpack.c.h.b16 %v396
        %v2278 = vunpack.c.l.b16 %v397
        %v2279 = vunpack.c.h.b16 %v397
        %v2280 = vunpack.c.l.b16 %v398
        %v2281 = vunpack.c.h.b16 %v398
        %v2282 = vunpack.c.l.b16 %v399
        %v2283 = vunpack.c.h.b16 %v399
        %v2284 = vunpack.c.l.b16 %v400
        %v2285 = vunpack.c.h.b16 %v400
        %v2286 = vunpack.c.l.b16 %v401
        %v2287 = vunpack.c.h.b16 %v401
        %v2288 = vunpack.c.l.b16 %v402
        %v2289 = vunpack.c.h.b16 %v402
        %v2290 = vunpack.c.l.b16 %v403
        %v2291 = vunpack.c.h.b16 %v403
        %v2292 = vunpack.c.l.b16 %v404
        %v2293 = vunpack.c.h.b16 %v404
        %v2294 = vunpack.c.l.b16 %v405
        %v2295 = vunpack.c.h.b16 %v405
        %v2296 = vunpack.c.l.b16 %v406
        %v2297 = vunpack.c.h.b16 %v406
        %v2298 = vunpack.c.l.b16 %v407
        %v2299 = vunpack.c.h.b16 %v407
        %v2300 = vunpack.c.l.b16 %v408
        %v2301 = vunpack.c.h.b16 %v408
        %v2302 = vunpack.c.l.b16 %v409
        %v2303 = vunpack.c.h.b16 %v409
        %v2304 = vunpack.c.l.b16 %v410
        %v2305 = vunpack.c.h.b16 %v410
        %v2306 = vunpack.c.l.b16 %v411
        %v2307 = vunpack.c.h.b16 %v411
        %v2308 = vunpack.c.l.b16 %v412
        %v2309 = vunpack.c.h.b16 %v412
        %v2310 = vunpack.c.l.b16 %v413
        %v2311 = vunpack.c.h.b16 %v413
        %v2312 = vunpack.c.l.b16 %v414
        %v2313 = vunpack.c.h.b16 %v414
        %v2314 = vunpack.c.l.b16 %v415
        %v2315 = vunpack.c.h.b16 %v415
        %v2316 = vunpack.c.l.b16 %v416
        %v2317 = vunpack.c.h.b16 %v416
        %v2318 = vunpack.c.l.b16 %v417
        %v2319 = vunpack.c.h.b16 %v417
        %v2320 = vunpack.c.l.b16 %v418
        %v2321 = vunpack.c.h.b16 %v418
        %v2322 = vunpack.c.l.b16 %v419
        %v2323 = vunpack.c.h.b16 %v419
        %v2324 = vunpack.c.l.b16 %v420
        %v2325 = vunpack.c.h.b16 %v420
        %v2326 = vunpack.c.l.b16 %v421
        %v2327 = vunpack.c.h.b16 %v421
        %v2328 = vunpack.c.l.b16 %v422
        %v2329 = vunpack.c.h.b16 %v422
        %v2330 = vunpack.c.l.b16 %v423
        %v2331 = vunpack.c.h.b16 %v423
        %v2332 = vunpack.c.l.b16 %v424
        %v2333 = vunpack.c.h.b16 %v424
        %v2334 = vunpack.c.l.b16 %v425
        %v2335 = vunpack.c.h.b16 %v425
        %v2336 = vunpack.c.l.b16 %v426
        %v2337 = vunpack.c.h.b16 %v426
        %v2338 = vunpack.c.l.b16 %v427
        %v2339 = vunpack.c.h.b16 %v427
        %v2340 = vunpack.c.l.b16 %v428
        %v2341 = vunpack.c.h.b16 %v428
        %v2342 = vunpack.c.l.b16 %v429
        %v2343 = vunpack.c.h.b16 %v429
        %v2344 = vunpack.c.l.b16 %v430
        %v2345 = vunpack.c.h.b16 %v430
        %v2346 = vunpack.c.l.b16 %v431
        %v2347 = vunpack.c.h.b16 %v431
        %v2348 = vunpack.c.l.b16 %v432
        %v2349 = vunpack.c.h.b16 %v432
        %v2350 = vunpack.c.l.b16 %v433
        %v2351 = vunpack.c.h.b16 %v433
        %v2352 = vunpack.c.l.b16 %v434
        %v2353 = vunpack.c.h.b16 %v434
        %v2354 = vunpack.c.l.b16 %v435
        %v2355 = vunpack.c.h.b16 %v435
        %v2356 = vunpack.c.l.b16 %v436
        %v2357 = vunpack.c.h.b16 %v436
        %v2358 = vunpack.c.l.b16 %v437
        %v2359 = vunpack.c.h.b16 %v437
        %v2360 = vunpack.c.l.b16 %v438
        %v2361 = vunpack.c.h.b16 %v438
        %v2362 = vunpack.c.l.b16 %v439
        %v2363 = vunpack.c.h.b16 %v439
        %v2364 = vunpack.c.l.b16 %v440
        %v2365 = vunpack.c.h.b16 %v440
        %v2366 = vunpack.c.l.b16 %v441
        %v2367 = vunpack.c.h.b16 %v441
        %v2368 = vunpack.c.l.b16 %v442
        %v2369 = vunpack.c.h.b16 %v442
        %v2370 = vunpack.c.l.b16 %v443
        %v2371 = vunpack.c.h.b16 %v443
        %v2372 = vunpack.c.l.b16 %v444
        %v2373 = vunpack.c.h.b16 %v444
        %v2374 = vunpack.c.l.b16 %v445
        %v2375 = vunpack.c.h.b16 %v445
        %v2376 = vunpack.c.l.b16 %v446
        %v2377 = vunpack.c.h.b16 %v446
        %v2378 = vunpack.c.l.b16 %v447
        %v2379 = vunpack.c.h.b16 %v447
        %v2380 = vunpack.c.l.b16 %v448
        %v2381 = vunpack.c.h.b16 %v448
        %v2382 = vunpack.c.l.b16 %v449
        %v2383 = vunpack.c.h.b16 %v449
        %v2384 = vunpack.c.l.b16 %v450
        %v2385 = vunpack.c.h.b16 %v450
        %v2386 = vunpack.c.l.b16 %v451
        %v2387 = vunpack.c.h.b16 %v451
        %v2388 = vunpack.c.l.b16 %v452
        %v2389 = vunpack.c.h.b16 %v452
        %v2390 = vunpack.c.l.b16 %v453
        %v2391 = vunpack.c.h.b16 %v453
        %v2392 = vunpack.c.l.b16 %v454
        %v2393 = vunpack.c.h.b16 %v454
        %v2394 = vunpack.c.l.b16 %v455
        %v2395 = vunpack.c.h.b16 %v455
        %v2396 = vunpack.c.l.b16 %v456
        %v2397 = vunpack.c.h.b16 %v456
        %v2398 = vunpack.c.l.b16 %v457
        %v2399 = vunpack.c.h.b16 %v457
        %v2400 = vunpack.c.l.b16 %v458
        %v2401 = vunpack.c.h.b16 %v458
        %v2402 = vunpack.c.l.b16 %v459
        %v2403 = vunpack.c.h.b16 %v459
        %v2404 = vunpack.c.l.b16 %v460
        %v2405 = vunpack.c.h.b16 %v460
        %v2406 = vunpack.c.l.b16 %v461
        %v2407 = vunpack.c.h.b16 %v461
        %v2408 = vunpack.c.l.b16 %v462
        %v2409 = vunpack.c.h.b16 %v462
        %v2410 = vunpack.c.l.b16 %v463
        %v2411 = vunpack.c.h.b16 %v463
        %v2412 = vunpack.c.l.b16 %v464
        %v2413 = vunpack.c.h.b16 %v464
        %v2414 = vunpack.c.l.b16 %v465
        %v2415 = vunpack.c.h.b16 %v465
        %v2416 = vunpack.c.l.b16 %v466
        %v2417 = vunpack.c.h.b16 %v466
        %v2418 = vunpack.c.l.b16 %v467
        %v2419 = vunpack.c.h.b16 %v467
        %v2420 = vunpack.c.l.b16 %v468
        %v2421 = vunpack.c.h.b16 %v468
        %v2422 = vunpack.c.l.b16 %v469
        %v2423 = vunpack.c.h.b16 %v469
        %v2424 = vunpack.c.l.b16 %v470
        %v2425 = vunpack.c.h.b16 %v470
        %v2426 = vunpack.c.l.b16 %v471
        %v2427 = vunpack.c.h.b16 %v471
        %v2428 = vunpack.c.l.b16 %v472
        %v2429 = vunpack.c.h.b16 %v472
        %v2430 = vunpack.c.l.b16 %v473
        %v2431 = vunpack.c.h.b16 %v473
        %v2432 = vunpack.c.l.b16 %v474
        %v2433 = vunpack.c.h.b16 %v474
        %v2434 = vunpack.c.l.b16 %v475
        %v2435 = vunpack.c.h.b16 %v475
        %v2436 = vunpack.c.l.b16 %v476
        %v2437 = vunpack.c.h.b16 %v476
        %v2438 = vunpack.c.l.b16 %v477
        %v2439 = vunpack.c.h.b16 %v477
        %v2440 = vunpack.c.l.b16 %v478
        %v2441 = vunpack.c.h.b16 %v478
        %v2442 = vunpack.c.l.b16 %v479
        %v2443 = vunpack.c.h.b16 %v479
        %v2444 = vunpack.c.l.b16 %v480
        %v2445 = vunpack.c.h.b16 %v480
        %v2446 = vunpack.c.l.b16 %v481
        %v2447 = vunpack.c.h.b16 %v481
        %v2448 = vunpack.c.l.b16 %v482
        %v2449 = vunpack.c.h.b16 %v482
        %v2450 = vunpack.c.l.b16 %v483
        %v2451 = vunpack.c.h.b16 %v483
        %v2452 = vunpack.c.l.b16 %v484
        %v2453 = vunpack.c.h.b16 %v484
        %v2454 = vunpack.c.l.b16 %v485
        %v2455 = vunpack.c.h.b16 %v485
        %v2456 = vunpack.c.l.b16 %v486
        %v2457 = vunpack.c.h.b16 %v486
        %v2458 = vunpack.c.l.b16 %v487
        %v2459 = vunpack.c.h.b16 %v487
        %v2460 = vunpack.c.l.b16 %v488
        %v2461 = vunpack.c.h.b16 %v488
        %v2462 = vunpack.c.l.b16 %v489
        %v2463 = vunpack.c.h.b16 %v489
        %v2464 = vunpack.c.l.b16 %v490
        %v2465 = vunpack.c.h.b16 %v490
        %v2466 = vunpack.c.l.b16 %v491
        %v2467 = vunpack.c.h.b16 %v491
        %v2468 = vunpack.c.l.b16 %v492
        %v2469 = vunpack.c.h.b16 %v492
        %v2470 = vunpack.c.l.b16 %v493
        %v2471 = vunpack.c.h.b16 %v493
        %v2472 = vunpack.c.l.b16 %v494
        %v2473 = vunpack.c.h.b16 %v494
        %v2474 = vunpack.c.l.b16 %v495
        %v2475 = vunpack.c.h.b16 %v495
        %v2476 = vunpack.c.l.b16 %v496
        %v2477 = vunpack.c.h.b16 %v496
        %v2478 = vunpack.c.l.b16 %v497
        %v2479 = vunpack.c.h.b16 %v497
        %v2480 = vunpack.c.l.b16 %v498
        %v2481 = vunpack.c.h.b16 %v498
        %v2482 = vunpack.c.l.b16 %v499
        %v2483 = vunpack.c.h.b16 %v499
        %v2484 = vunpack.c.l.b16 %v500
        %v2485 = vunpack.c.h.b16 %v500
        %v2486 = vunpack.c.l.b16 %v501
        %v2487 = vunpack.c.h.b16 %v501
        %v2488 = vunpack.c.l.b16 %v502
        %v2489 = vunpack.c.h.b16 %v502
        %v2490 = vunpack.c.l.b16 %v503
        %v2491 = vunpack.c.h.b16 %v503
        %v2492 = vunpack.c.l.b16 %v504
        %v2493 = vunpack.c.h.b16 %v504
        %v2494 = vunpack.c.l.b16 %v505
        %v2495 = vunpack.c.h.b16 %v505
        %v2496 = vunpack.c.l.b16 %v506
        %v2497 = vunpack.c.h.b16 %v506
        %v2498 = vunpack.c.l.b16 %v507
        %v2499 = vunpack.c.h.b16 %v507
        %v2500 = vunpack.c.l.b16 %v508
        %v2501 = vunpack.c.h.b16 %v508
        %v2502 = vunpack.c.l.b16 %v509
        %v2503 = vunpack.c.h.b16 %v509
        %v2504 = vunpack.c.l.b16 %v510
        %v2505 = vunpack.c.h.b16 %v510
        %v2506 = vunpack.c.l.b16 %v511
        %v2507 = vunpack.c.h.b16 %v511
        %v2508 = vunpack.c.l.b16 %v512
        %v2509 = vunpack.c.h.b16 %v512
        %v2510 = vunpack.c.l.b16 %v513
        %v2511 = vunpack.c.h.b16 %v513
        %v2512 = vunpack.c.l.b16 %v514
        %v2513 = vunpack.c.h.b16 %v514
        %v2514 = vunpack.c.l.b16 %v515
        %v2515 = vunpack.c.h.b16 %v515
        %v2516 = vunpack.c.l.b16 %v516
        %v2517 = vunpack.c.h.b16 %v516
        %v2518 = vunpack.c.l.b16 %v517
        %v2519 = vunpack.c.h.b16 %v517
        %v2520 = vunpack.c.l.b16 %v518
        %v2521 = vunpack.c.h.b16 %v518
        %v2522 = vunpack.c.l.b16 %v519
        %v2523 = vunpack.c.h.b16 %v519
        %v2524 = vunpack.c.l.b16 %v520
        %v2525 = vunpack.c.h.b16 %v520
        %v2526 = vunpack.c.l.b16 %v521
        %v2527 = vunpack.c.h.b16 %v521
        %v2528 = vunpack.c.l.b16 %v522
        %v2529 = vunpack.c.h.b16 %v522
        %v2530 = vunpack.c.l.b16 %v523
        %v2531 = vunpack.c.h.b16 %v523
        %v2532 = vunpack.c.l.b16 %v524
        %v2533 = vunpack.c.h.b16 %v524
        %v2534 = vunpack.c.l.b16 %v525
        %v2535 = vunpack.c.h.b16 %v525
        %v2536 = vunpack.c.l.b16 %v526
        %v2537 = vunpack.c.h.b16 %v526
        %v2538 = vunpack.c.l.b16 %v527
        %v2539 = vunpack.c.h.b16 %v527
        %v2540 = vunpack.c.l.b16 %v528
        %v2541 = vunpack.c.h.b16 %v528
        %v2542 = vunpack.c.l.b16 %v529
        %v2543 = vunpack.c.h.b16 %v529
        %v2544 = vunpack.c.l.b16 %v530
        %v2545 = vunpack.c.h.b16 %v530
        %v2546 = vunpack.c.l.b16 %v531
        %v2547 = vunpack.c.h.b16 %v531
        %v2548 = vunpack.c.l.b16 %v532
        %v2549 = vunpack.c.h.b16 %v532
        %v2550 = vunpack.c.l.b16 %v533
        %v2551 = vunpack.c.h.b16 %v533
        %v2552 = vunpack.c.l.b16 %v534
        %v2553 = vunpack.c.h.b16 %v534
        %v2554 = vunpack.c.l.b16 %v535
        %v2555 = vunpack.c.h.b16 %v535
        %v2556 = vunpack.c.l.b16 %v536
        %v2557 = vunpack.c.h.b16 %v536
        %v2558 = vunpack.c.l.b16 %v537
        %v2559 = vunpack.c.h.b16 %v537
        %v2560 = vunpack.c.l.b16 %v538
        %v2561 = vunpack.c.h.b16 %v538
        %v2562 = vunpack.c.l.b16 %v539
        %v2563 = vunpack.c.h.b16 %v539
        %v2564 = vunpack.c.l.b16 %v540
        %v2565 = vunpack.c.h.b16 %v540
        %v2566 = vunpack.c.l.b16 %v541
        %v2567 = vunpack.c.h.b16 %v541
        %v2568 = vunpack.c.l.b16 %v542
        %v2569 = vunpack.c.h.b16 %v542
        %v2570 = vunpack.c.l.b16 %v543
        %v2571 = vunpack.c.h.b16 %v543
        %v2572 = vunpack.c.l.b16 %v544
        %v2573 = vunpack.c.h.b16 %v544
        %v2574 = vunpack.c.l.b16 %v545
        %v2575 = vunpack.c.h.b16 %v545
        %v2576 = vunpack.c.l.b16 %v546
        %v2577 = vunpack.c.h.b16 %v546
        %v2578 = vunpack.c.l.b16 %v547
        %v2579 = vunpack.c.h.b16 %v547
        %v2580 = vunpack.c.l.b16 %v548
        %v2581 = vunpack.c.h.b16 %v548
        %v2582 = vunpack.c.l.b16 %v549
        %v2583 = vunpack.c.h.b16 %v549
        %v2584 = vunpack.c.l.b16 %v550
        %v2585 = vunpack.c.h.b16 %v550
        %v2586 = vunpack.c.l.b16 %v551
        %v2587 = vunpack.c.h.b16 %v551
        %v2588 = vunpack.c.l.b16 %v552
        %v2589 = vunpack.c.h.b16 %v552
        %v2590 = vunpack.c.l.b16 %v553
        %v2591 = vunpack.c.h.b16 %v553
        %v2592 = vunpack.c.l.b16 %v554
        %v2593 = vunpack.c.h.b16 %v554
        %v2594 = vunpack.c.l.b16 %v555
        %v2595 = vunpack.c.h.b16 %v555
        %v2596 = vunpack.c.l.b16 %v556
        %v2597 = vunpack.c.h.b16 %v556
        %v2598 = vunpack.c.l.b16 %v557
        %v2599 = vunpack.c.h.b16 %v557
        %v2600 = vunpack.c.l.b16 %v558
        %v2601 = vunpack.c.h.b16 %v558
        %v2602 = vunpack.c.l.b16 %v559
        %v2603 = vunpack.c.h.b16 %v559
        %v2604 = vunpack.c.l.b16 %v560
        %v2605 = vunpack.c.h.b16 %v560
        %v2606 = vunpack.c.l.b16 %v561
        %v2607 = vunpack.c.h.b16 %v561
        %v2608 = vunpack.c.l.b16 %v562
        %v2609 = vunpack.c.h.b16 %v562
        %v2610 = vunpack.c.l.b16 %v563
        %v2611 = vunpack.c.h.b16 %v563
        %v2612 = vunpack.c.l.b16 %v564
        %v2613 = vunpack.c.h.b16 %v564
        %v2614 = vunpack.c.l.b16 %v565
        %v2615 = vunpack.c.h.b16 %v565
        %v2616 = vunpack.c.l.b16 %v566
        %v2617 = vunpack.c.h.b16 %v566
        %v2618 = vunpack.c.l.b16 %v567
        %v2619 = vunpack.c.h.b16 %v567
        %v2620 = vunpack.c.l.b16 %v568
        %v2621 = vunpack.c.h.b16 %v568
        %v2622 = vunpack.c.l.b16 %v569
        %v2623 = vunpack.c.h.b16 %v569
        %v2624 = vunpack.c.l.b16 %v570
        %v2625 = vunpack.c.h.b16 %v570
        %v2626 = vunpack.c.l.b16 %v571
        %v2627 = vunpack.c.h.b16 %v571
        %v2628 = vunpack.c.l.b16 %v572
        %v2629 = vunpack.c.h.b16 %v572
        %v2630 = vunpack.c.l.b16 %v573
        %v2631 = vunpack.c.h.b16 %v573
        %v2632 = vunpack.c.l.b16 %v574
        %v2633 = vunpack.c.h.b16 %v574
        %v2634 = vunpack.c.l.b16 %v575
        %v2635 = vunpack.c.h.b16 %v575
        %v2636 = vunpack.c.l.b16 %v576
        %v2637 = vunpack.c.h.b16 %v576
        %v2638 = vunpack.c.l.b16 %v577
        %v2639 = vunpack.c.h.b16 %v577
        %v2640 = vunpack.c.l.b16 %v578
        %v2641 = vunpack.c.h.b16 %v578
        %v2642 = vunpack.c.l.b16 %v579
        %v2643 = vunpack.c.h.b16 %v579
        %v2644 = vunpack.c.l.b16 %v580
        %v2645 = vunpack.c.h.b16 %v580
        %v2646 = vunpack.c.l.b16 %v581
        %v2647 = vunpack.c.h.b16 %v581
        %v2648 = vunpack.c.l.b16 %v582
        %v2649 = vunpack.c.h.b16 %v582
        %v2650 = vunpack.c.l.b16 %v583
        %v2651 = vunpack.c.h.b16 %v583
        %v2652 = vunpack.c.l.b16 %v584
        %v2653 = vunpack.c.h.b16 %v584
        %v2654 = vunpack.c.l.b16 %v585
        %v2655 = vunpack.c.h.b16 %v585
        %v2656 = vunpack.c.l.b16 %v586
        %v2657 = vunpack.c.h.b16 %v586
        %v2658 = vunpack.c.l.b16 %v587
        %v2659 = vunpack.c.h.b16 %v587
        %v2660 = vunpack.c.l.b16 %v588
        %v2661 = vunpack.c.h.b16 %v588
        %v2662 = vunpack.c.l.b16 %v589
        %v2663 = vunpack.c.h.b16 %v589
        %v2664 = vunpack.c.l.b16 %v590
        %v2665 = vunpack.c.h.b16 %v590
        %v2666 = vunpack.c.l.b16 %v591
        %v2667 = vunpack.c.h.b16 %v591
        %v2668 = vunpack.c.l.b16 %v592
        %v2669 = vunpack.c.h.b16 %v592
        %v2670 = vunpack.c.l.b16 %v593
        %v2671 = vunpack.c.h.b16 %v593
        %v2672 = vunpack.c.l.b16 %v594
        %v2673 = vunpack.c.h.b16 %v594
        %v2674 = vunpack.c.l.b16 %v595
        %v2675 = vunpack.c.h.b16 %v595
        %v2676 = vunpack.c.l.b16 %v596
        %v2677 = vunpack.c.h.b16 %v596
        %v2678 = vunpack.c.l.b16 %v597
        %v2679 = vunpack.c.h.b16 %v597
        %v2680 = vunpack.c.l.b16 %v598
        %v2681 = vunpack.c.h.b16 %v598
        %v2682 = vunpack.c.l.b16 %v599
        %v2683 = vunpack.c.h.b16 %v599
        %v2684 = vunpack.c.l.b16 %v600
        %v2685 = vunpack.c.h.b16 %v600
        %v2686 = vunpack.c.l.b16 %v601
        %v2687 = vunpack.c.h.b16 %v601
        %v2688 = vunpack.c.l.b16 %v602
        %v2689 = vunpack.c.h.b16 %v602
        %v2690 = vunpack.c.l.b16 %v603
        %v2691 = vunpack.c.h.b16 %v603
        %v2692 = vunpack.c.l.b16 %v604
        %v2693 = vunpack.c.h.b16 %v604
        %v2694 = vunpack.c.l.b16 %v605
        %v2695 = vunpack.c.h.b16 %v605
        %v2696 = vunpack.c.l.b16 %v606
        %v2697 = vunpack.c.h.b16 %v606
        %v2698 = vunpack.c.l.b16 %v607
        %v2699 = vunpack.c.h.b16 %v607
        %v2700 = vunpack.c.l.b16 %v608
        %v2701 = vunpack.c.h.b16 %v608
        %v2702 = vunpack.c.l.b16 %v609
        %v2703 = vunpack.c.h.b16 %v609
        %v2704 = vunpack.c.l.b16 %v610
        %v2705 = vunpack.c.h.b16 %v610
        %v2706 = vunpack.c.l.b16 %v611
        %v2707 = vunpack.c.h.b16 %v611
        %v2708 = vunpack.c.l.b16 %v612
        %v2709 = vunpack.c.h.b16 %v612
        %v2710 = vunpack.c.l.b16 %v613
        %v2711 = vunpack.c.h.b16 %v613
        %v2712 = vunpack.c.l.b16 %v614
        %v2713 = vunpack.c.h.b16 %v614
        %v2714 = vunpack.c.l.b16 %v615
        %v2715 = vunpack.c.h.b16 %v615
        %v2716 = vunpack.c.l.b16 %v616
        %v2717 = vunpack.c.h.b16 %v616
        %v2718 = vunpack.c.l.b16 %v617
        %v2719 = vunpack.c.h.b16 %v617
        %v2720 = vunpack.c.l.b16 %v618
        %v2721 = vunpack.c.h.b16 %v618
        %v2722 = vunpack.c.l.b16 %v619
        %v2723 = vunpack.c.h.b16 %v619
        %v2724 = vunpack.c.l.b16 %v620
        %v2725 = vunpack.c.h.b16 %v620
        %v2726 = vunpack.c.l.b16 %v621
        %v2727 = vunpack.c.h.b16 %v621
        %v2728 = vunpack.c.l.b16 %v622
        %v2729 = vunpack.c.h.b16 %v622
        %v2730 = vunpack.c.l.b16 %v623
        %v2731 = vunpack.c.h.b16 %v623
        %v2732 = vunpack.c.l.b16 %v624
        %v2733 = vunpack.c.h.b16 %v624
        %v2734 = vunpack.c.l.b16 %v625
        %v2735 = vunpack.c.h.b16 %v625
        %v2736 = vunpack.c.l.b16 %v626
        %v2737 = vunpack.c.h.b16 %v626
        %v2738 = vunpack.c.l.b16 %v627
        %v2739 = vunpack.c.h.b16 %v627
        %v2740 = vunpack.c.l.b16 %v628
        %v2741 = vunpack.c.h.b16 %v628
        %v2742 = vunpack.c.l.b16 %v629
        %v2743 = vunpack.c.h.b16 %v629
        %v2744 = vunpack.c.l.b16 %v630
        %v2745 = vunpack.c.h.b16 %v630
        %v2746 = vunpack.c.l.b16 %v631
        %v2747 = vunpack.c.h.b16 %v631
        %v2748 = vunpack.c.l.b16 %v632
        %v2749 = vunpack.c.h.b16 %v632
        %v2750 = vunpack.c.l.b16 %v633
        %v2751 = vunpack.c.h.b16 %v633
        %v2752 = vunpack.c.l.b16 %v634
        %v2753 = vunpack.c.h.b16 %v634
        %v2754 = vunpack.c.l.b16 %v635
        %v2755 = vunpack.c.h.b16 %v635
        %v2756 = vunpack.c.l.b16 %v636
        %v2757 = vunpack.c.h.b16 %v636
        %v2758 = vunpack.c.l.b16 %v637
        %v2759 = vunpack.c.h.b16 %v637
        %v2760 = vunpack.c.l.b16 %v638
        %v2761 = vunpack.c.h.b16 %v638
        %v2762 = vunpack.c.l.b16 %v639
        %v2763 = vunpack.c.h.b16 %v639
        %v2764 = vunpack.c.l.b16 %v640
        %v2765 = vunpack.c.h.b16 %v640
        %v2766 = vunpack.c.l.b16 %v641
        %v2767 = vunpack.c.h.b16 %v641
        %v2768 = vunpack.c.l.b16 %v642
        %v2769 = vunpack.c.h.b16 %v642
        %v2770 = vunpack.c.l.b16 %v643
        %v2771 = vunpack.c.h.b16 %v643
        %v2772 = vunpack.c.l.b16 %v644
        %v2773 = vunpack.c.h.b16 %v644
        %v2774 = vunpack.c.l.b16 %v645
        %v2775 = vunpack.c.h.b16 %v645
        %v2776 = vunpack.c.l.b16 %v646
        %v2777 = vunpack.c.h.b16 %v646
        %v2778 = vunpack.c.l.b16 %v647
        %v2779 = vunpack.c.h.b16 %v647
        %v2780 = vunpack.c.l.b16 %v648
        %v2781 = vunpack.c.h.b16 %v648
        %v2782 = vunpack.c.l.b16 %v649
        %v2783 = vunpack.c.h.b16 %v649
        %v2784 = vunpack.c.l.b16 %v650
        %v2785 = vunpack.c.h.b16 %v650
        %v2786 = vunpack.c.l.b16 %v651
        %v2787 = vunpack.c.h.b16 %v651
        %v2788 = vunpack.c.l.b16 %v652
        %v2789 = vunpack.c.h.b16 %v652
        %v2790 = vunpack.c.l.b16 %v653
        %v2791 = vunpack.c.h.b16 %v653
        %v2792 = vunpack.c.l.b16 %v654
        %v2793 = vunpack.c.h.b16 %v654
        %v2794 = vunpack.c.l.b16 %v655
        %v2795 = vunpack.c.h.b16 %v655
        %v2796 = vunpack.c.l.b16 %v656
        %v2797 = vunpack.c.h.b16 %v656
        %v2798 = vunpack.c.l.b16 %v657
        %v2799 = vunpack.c.h.b16 %v657
        %v2800 = vunpack.c.l.b16 %v658
        %v2801 = vunpack.c.h.b16 %v658
        %v2802 = vunpack.c.l.b16 %v659
        %v2803 = vunpack.c.h.b16 %v659
        %v2804 = vunpack.c.l.b16 %v660
        %v2805 = vunpack.c.h.b16 %v660
        %v2806 = vunpack.c.l.b16 %v661
        %v2807 = vunpack.c.h.b16 %v661
        %v2808 = vunpack.c.l.b16 %v662
        %v2809 = vunpack.c.h.b16 %v662
        %v2810 = vunpack.c.l.b16 %v663
        %v2811 = vunpack.c.h.b16 %v663
        %v2812 = vunpack.c.l.b16 %v664
        %v2813 = vunpack.c.h.b16 %v664
        %v2814 = vunpack.c.l.b16 %v665
        %v2815 = vunpack.c.h.b16 %v665
        %v2816 = vunpack.c.l.b16 %v666
        %v2817 = vunpack.c.h.b16 %v666
        %v2818 = vunpack.c.l.b16 %v667
        %v2819 = vunpack.c.h.b16 %v667
        %v2820 = vunpack.c.l.b16 %v668
        %v2821 = vunpack.c.h.b16 %v668
        %v2822 = vunpack.c.l.b16 %v669
        %v2823 = vunpack.c.h.b16 %v669
        %v2824 = vunpack.c.l.b16 %v670
        %v2825 = vunpack.c.h.b16 %v670
        %v2826 = vunpack.c.l.b16 %v671
        %v2827 = vunpack.c.h.b16 %v671
        %v2828 = vunpack.c.l.b16 %v672
        %v2829 = vunpack.c.h.b16 %v672
        %v2830 = vunpack.c.l.b16 %v673
        %v2831 = vunpack.c.h.b16 %v673
        %v2832 = vunpack.c.l.b16 %v674
        %v2833 = vunpack.c.h.b16 %v674
        %v2834 = vunpack.c.l.b16 %v675
        %v2835 = vunpack.c.h.b16 %v675
        %v2836 = vunpack.c.l.b16 %v676
        %v2837 = vunpack.c.h.b16 %v676
        %v2838 = vunpack.c.l.b16 %v677
        %v2839 = vunpack.c.h.b16 %v677
        %v2840 = vunpack.c.l.b16 %v678
        %v2841 = vunpack.c.h.b16 %v678
        %v2842 = vunpack.c.l.b16 %v679
        %v2843 = vunpack.c.h.b16 %v679
        %v2844 = vunpack.c.l.b16 %v680
        %v2845 = vunpack.c.h.b16 %v680
        %v2846 = vunpack.c.l.b16 %v681
        %v2847 = vunpack.c.h.b16 %v681
        %v2848 = vunpack.c.l.b16 %v682
        %v2849 = vunpack.c.h.b16 %v682
        %v2850 = vunpack.c.l.b16 %v683
        %v2851 = vunpack.c.h.b16 %v683
        %v2852 = vunpack.c.l.b16 %v684
        %v2853 = vunpack.c.h.b16 %v684
        %v2854 = vunpack.c.l.b16 %v685
        %v2855 = vunpack.c.h.b16 %v685
        %v2856 = vunpack.c.l.b16 %v686
        %v2857 = vunpack.c.h.b16 %v686
        %v2858 = vunpack.c.l.b16 %v687
        %v2859 = vunpack.c.h.b16 %v687
        %v2860 = vunpack.c.l.b16 %v688
        %v2861 = vunpack.c.h.b16 %v688
        %v2862 = vunpack.c.l.b16 %v689
        %v2863 = vunpack.c.h.b16 %v689
        %v2864 = vunpack.c.l.b16 %v690
        %v2865 = vunpack.c.h.b16 %v690
        %v2866 = vunpack.c.l.b16 %v691
        %v2867 = vunpack.c.h.b16 %v691
        %v2868 = vunpack.c.l.b16 %v692
        %v2869 = vunpack.c.h.b16 %v692
        %v2870 = vunpack.c.l.b16 %v693
        %v2871 = vunpack.c.h.b16 %v693
        %v2872 = vunpack.c.l.b16 %v694
        %v2873 = vunpack.c.h.b16 %v694
        %v2874 = vunpack.c.l.b16 %v695
        %v2875 = vunpack.c.h.b16 %v695
        %v2876 = vunpack.c.l.b16 %v696
        %v2877 = vunpack.c.h.b16 %v696
        %v2878 = vunpack.c.l.b16 %v697
        %v2879 = vunpack.c.h.b16 %v697
        %v2880 = vunpack.c.l.b16 %v698
        %v2881 = vunpack.c.h.b16 %v698
        %v2882 = vunpack.c.l.b16 %v699
        %v2883 = vunpack.c.h.b16 %v699
        %v2884 = vunpack.c.l.b16 %v700
        %v2885 = vunpack.c.h.b16 %v700
        %v2886 = vunpack.c.l.b16 %v701
        %v2887 = vunpack.c.h.b16 %v701
        %v2888 = vunpack.c.l.b16 %v702
        %v2889 = vunpack.c.h.b16 %v702
        %v2890 = vunpack.c.l.b16 %v703
        %v2891 = vunpack.c.h.b16 %v703
        %v2892 = vunpack.c.l.b16 %v704
        %v2893 = vunpack.c.h.b16 %v704
        %v2894 = vunpack.c.l.b16 %v705
        %v2895 = vunpack.c.h.b16 %v705
        %v2896 = vunpack.c.l.b16 %v706
        %v2897 = vunpack.c.h.b16 %v706
        %v2898 = vunpack.c.l.b16 %v707
        %v2899 = vunpack.c.h.b16 %v707
        %v2900 = vunpack.c.l.b16 %v708
        %v2901 = vunpack.c.h.b16 %v708
        %v2902 = vunpack.c.l.b16 %v709
        %v2903 = vunpack.c.h.b16 %v709
        %v2904 = vunpack.c.l.b16 %v710
        %v2905 = vunpack.c.h.b16 %v710
        %v2906 = vunpack.c.l.b16 %v711
        %v2907 = vunpack.c.h.b16 %v711
        %v2908 = vunpack.c.l.b16 %v712
        %v2909 = vunpack.c.h.b16 %v712
        %v2910 = vunpack.c.l.b16 %v713
        %v2911 = vunpack.c.h.b16 %v713
        %v2912 = vunpack.c.l.b16 %v714
        %v2913 = vunpack.c.h.b16 %v714
        %v2914 = vunpack.c.l.b16 %v715
        %v2915 = vunpack.c.h.b16 %v715
        %v2916 = vunpack.c.l.b16 %v716
        %v2917 = vunpack.c.h.b16 %v716
        %v2918 = vunpack.c.l.b16 %v717
        %v2919 = vunpack.c.h.b16 %v717
        %v2920 = vunpack.c.l.b16 %v718
        %v2921 = vunpack.c.h.b16 %v718
        %v2922 = vunpack.c.l.b16 %v719
        %v2923 = vunpack.c.h.b16 %v719
        %v2924 = vunpack.c.l.b16 %v720
        %v2925 = vunpack.c.h.b16 %v720
        %v2926 = vunpack.c.l.b16 %v721
        %v2927 = vunpack.c.h.b16 %v721
        %v2928 = vunpack.c.l.b16 %v722
        %v2929 = vunpack.c.h.b16 %v722
        %v2930 = vunpack.c.l.b16 %v723
        %v2931 = vunpack.c.h.b16 %v723
        %v2932 = vunpack.c.l.b16 %v724
        %v2933 = vunpack.c.h.b16 %v724
        %v2934 = vunpack.c.l.b16 %v725
        %v2935 = vunpack.c.h.b16 %v725
        %v2936 = vunpack.c.l.b16 %v726
        %v2937 = vunpack.c.h.b16 %v726
        %v2938 = vunpack.c.l.b16 %v727
        %v2939 = vunpack.c.h.b16 %v727
        %v2940 = vunpack.c.l.b16 %v728
        %v2941 = vunpack.c.h.b16 %v728
        %v2942 = vunpack.c.l.b16 %v729
        %v2943 = vunpack.c.h.b16 %v729
        %v2944 = vunpack.c.l.b16 %v730
        %v2945 = vunpack.c.h.b16 %v730
        %v2946 = vunpack.c.l.b16 %v731
        %v2947 = vunpack.c.h.b16 %v731
        %v2948 = vunpack.c.l.b16 %v732
        %v2949 = vunpack.c.h.b16 %v732
        %v2950 = vunpack.c.l.b16 %v733
        %v2951 = vunpack.c.h.b16 %v733
        %v2952 = vunpack.c.l.b16 %v734
        %v2953 = vunpack.c.h.b16 %v734
        %v2954 = vunpack.c.l.b16 %v735
        %v2955 = vunpack.c.h.b16 %v735
        %v2956 = vunpack.c.l.b16 %v736
        %v2957 = vunpack.c.h.b16 %v736
        %v2958 = vunpack.c.l.b16 %v737
        %v2959 = vunpack.c.h.b16 %v737
        %v2960 = vunpack.c.l.b16 %v738
        %v2961 = vunpack.c.h.b16 %v738
        %v2962 = vunpack.c.l.b16 %v739
        %v2963 = vunpack.c.h.b16 %v739
        %v2964 = vunpack.c.l.b16 %v740
        %v2965 = vunpack.c.h.b16 %v740
        %v2966 = vunpack.c.l.b16 %v741
        %v2967 = vunpack.c.h.b16 %v741
        %v2968 = vunpack.c.l.b16 %v742
        %v2969 = vunpack.c.h.b16 %v742
        %v2970 = vunpack.c.l.b16 %v743
        %v2971 = vunpack.c.h.b16 %v743
        %v2972 = vunpack.c.l.b16 %v744
        %v2973 = vunpack.c.h.b16 %v744
        %v2974 = vunpack.c.l.b16 %v745
        %v2975 = vunpack.c.h.b16 %v745
        %v2976 = vunpack.c.l.b16 %v746
        %v2977 = vunpack.c.h.b16 %v746
        %v2978 = vunpack.c.l.b16 %v747
        %v2979 = vunpack.c.h.b16 %v747
        %v2980 = vunpack.c.l.b16 %v748
        %v2981 = vunpack.c.h.b16 %v748
        %v2982 = vunpack.c.l.b16 %v749
        %v2983 = vunpack.c.h.b16 %v749
        %v2984 = vunpack.c.l.b16 %v750
        %v2985 = vunpack.c.h.b16 %v750
        %v2986 = vunpack.c.l.b16 %v751
        %v2987 = vunpack.c.h.b16 %v751
        %v2988 = vunpack.c.l.b16 %v752
        %v2989 = vunpack.c.h.b16 %v752
        %v2990 = vunpack.c.l.b16 %v753
        %v2991 = vunpack.c.h.b16 %v753
        %v2992 = vunpack.c.l.b16 %v754
        %v2993 = vunpack.c.h.b16 %v754
        %v2994 = vunpack.c.l.b16 %v755
        %v2995 = vunpack.c.h.b16 %v755
        %v2996 = vunpack.c.l.b16 %v756
        %v2997 = vunpack.c.h.b16 %v756
        %v2998 = vunpack.c.l.b16 %v757
        %v2999 = vunpack.c.h.b16 %v757
        %v3000 = vunpack.c.l.b16 %v758
        %v3001 = vunpack.c.h.b16 %v758
        %v3002 = vunpack.c.l.b16 %v759
        %v3003 = vunpack.c.h.b16 %v759
        %v3004 = vunpack.c.l.b16 %v760
        %v3005 = vunpack.c.h.b16 %v760
        %v3006 = vunpack.c.l.b16 %v761
        %v3007 = vunpack.c.h.b16 %v761
        %v3008 = vunpack.c.l.b16 %v762
        %v3009 = vunpack.c.h.b16 %v762
        %v3010 = vunpack.c.l.b16 %v763
        %v3011 = vunpack.c.h.b16 %v763
        %v3012 = vunpack.c.l.b16 %v764
        %v3013 = vunpack.c.h.b16 %v764
        %v3014 = vunpack.c.l.b16 %v765
        %v3015 = vunpack.c.h.b16 %v765
        %v3016 = vunpack.c.l.b16 %v766
        %v3017 = vunpack.c.h.b16 %v766
        %v3018 = vunpack.c.l.b16 %v767
        %v3019 = vunpack.c.h.b16 %v767
        %v3020 = vunpack.c.l.b16 %v768
        %v3021 = vunpack.c.h.b16 %v768
        %v3022 = vunpack.c.l.b16 %v769
        %v3023 = vunpack.c.h.b16 %v769
        %v3024 = vunpack.c.l.b16 %v770
        %v3025 = vunpack.c.h.b16 %v770
        %v3026 = vunpack.c.l.b16 %v771
        %v3027 = vunpack.c.h.b16 %v771
        %v3028 = vunpack.c.l.b16 %v772
        %v3029 = vunpack.c.h.b16 %v772
        %v3030 = vunpack.c.l.b16 %v773
        %v3031 = vunpack.c.h.b16 %v773
        %v3032 = vunpack.c.l.b16 %v774
        %v3033 = vunpack.c.h.b16 %v774
        %v3034 = vunpack.c.l.b16 %v775
        %v3035 = vunpack.c.h.b16 %v775
        %v3036 = vunpack.c.l.b16 %v776
        %v3037 = vunpack.c.h.b16 %v776
        %v3038 = vunpack.c.l.b16 %v777
        %v3039 = vunpack.c.h.b16 %v777
        %v3040 = vunpack.c.l.b16 %v778
        %v3041 = vunpack.c.h.b16 %v778
        %v3042 = vunpack.c.l.b16 %v779
        %v3043 = vunpack.c.h.b16 %v779
        %v3044 = vunpack.c.l.b16 %v780
        %v3045 = vunpack.c.h.b16 %v780
        %v3046 = vunpack.c.l.b16 %v781
        %v3047 = vunpack.c.h.b16 %v781
        %v3048 = vunpack.c.l.b16 %v782
        %v3049 = vunpack.c.h.b16 %v782
        %v3050 = vunpack.c.l.b16 %v783
        %v3051 = vunpack.c.h.b16 %v783
        %v3052 = vunpack.c.l.b16 %v784
        %v3053 = vunpack.c.h.b16 %v784
        %v3054 = vunpack.c.l.b16 %v785
        %v3055 = vunpack.c.h.b16 %v785
        %v3056 = vunpack.c.l.b16 %v786
        %v3057 = vunpack.c.h.b16 %v786
        %v3058 = vunpack.c.l.b16 %v787
        %v3059 = vunpack.c.h.b16 %v787
        %v3060 = vunpack.c.l.b16 %v788
        %v3061 = vunpack.c.h.b16 %v788
        %v3062 = vunpack.c.l.b16 %v789
        %v3063 = vunpack.c.h.b16 %v789
        %v3064 = vunpack.c.l.b16 %v790
        %v3065 = vunpack.c.h.b16 %v790
        %v3066 = vunpack.c.l.b16 %v791
        %v3067 = vunpack.c.h.b16 %v791
        %v3068 = vunpack.c.l.b16 %v792
        %v3069 = vunpack.c.h.b16 %v792
        %v3070 = vunpack.c.l.b16 %v793
        %v3071 = vunpack.c.h.b16 %v793
        %v3072 = vunpack.c.l.b16 %v794
        %v3073 = vunpack.c.h.b16 %v794
        %v3074 = vunpack.c.l.b16 %v795
        %v3075 = vunpack.c.h.b16 %v795
        %v3076 = vunpack.c.l.b16 %v796
        %v3077 = vunpack.c.h.b16 %v796
        %v3078 = vunpack.c.l.b16 %v797
        %v3079 = vunpack.c.h.b16 %v797
        %v3080 = vunpack.c.l.b16 %v798
        %v3081 = vunpack.c.h.b16 %v798
        %v3082 = vunpack.c.l.b16 %v799
        %v3083 = vunpack.c.h.b16 %v799
        %v3084 = vunpack.c.l.b16 %v800
        %v3085 = vunpack.c.h.b16 %v800
        %v3086 = vunpack.c.l.b16 %v801
        %v3087 = vunpack.c.h.b16 %v801
        %v3088 = vunpack.c.l.b16 %v802
        %v3089 = vunpack.c.h.b16 %v802
        %v3090 = vunpack.c.l.b16 %v803
        %v3091 = vunpack.c.h.b16 %v803
        %v3092 = vunpack.c.l.b16 %v804
        %v3093 = vunpack.c.h.b16 %v804
        %v3094 = vunpack.c.l.b16 %v805
        %v3095 = vunpack.c.h.b16 %v805
        %v3096 = vunpack.c.l.b16 %v806
        %v3097 = vunpack.c.h.b16 %v806
        %v3098 = vunpack.c.l.b16 %v807
        %v3099 = vunpack.c.h.b16 %v807
        %v3100 = vunpack.c.l.b16 %v808
        %v3101 = vunpack.c.h.b16 %v808
        %v3102 = vunpack.c.l.b16 %v809
        %v3103 = vunpack.c.h.b16 %v809
        %v3104 = vunpack.c.l.b16 %v810
        %v3105 = vunpack.c.h.b16 %v810
        %v3106 = vunpack.c.l.b16 %v811
        %v3107 = vunpack.c.h.b16 %v811
        %v3108 = vunpack.c.l.b16 %v812
        %v3109 = vunpack.c.h.b16 %v812
        %v3110 = vunpack.c.l.b16 %v813
        %v3111 = vunpack.c.h.b16 %v813
        %v3112 = vunpack.c.l.b16 %v814
        %v3113 = vunpack.c.h.b16 %v814
        %v3114 = vunpack.c.l.b16 %v815
        %v3115 = vunpack.c.h.b16 %v815
        %v3116 = vunpack.c.l.b16 %v816
        %v3117 = vunpack.c.h.b16 %v816
        %v3118 = vunpack.c.l.b16 %v817
        %v3119 = vunpack.c.h.b16 %v817
        %v3120 = vunpack.c.l.b16 %v818
        %v3121 = vunpack.c.h.b16 %v818
        %v3122 = vunpack.c.l.b16 %v819
        %v3123 = vunpack.c.h.b16 %v819
        %v3124 = vunpack.c.l.b16 %v820
        %v3125 = vunpack.c.h.b16 %v820
        %v3126 = vunpack.c.l.b16 %v821
        %v3127 = vunpack.c.h.b16 %v821
        %v3128 = vunpack.c.l.b16 %v822
        %v3129 = vunpack.c.h.b16 %v822
        %v3130 = vunpack.c.l.b16 %v823
        %v3131 = vunpack.c.h.b16 %v823
        %v3132 = vunpack.c.l.b16 %v824
        %v3133 = vunpack.c.h.b16 %v824
        %v3134 = vunpack.c.l.b16 %v825
        %v3135 = vunpack.c.h.b16 %v825
        %v3136 = vunpack.c.l.b16 %v826
        %v3137 = vunpack.c.h.b16 %v826
        %v3138 = vunpack.c.l.b16 %v827
        %v3139 = vunpack.c.h.b16 %v827
        %v3140 = vunpack.c.l.b16 %v828
        %v3141 = vunpack.c.h.b16 %v828
        %v3142 = vunpack.c.l.b16 %v829
        %v3143 = vunpack.c.h.b16 %v829
        %v3144 = vunpack.c.l.b16 %v830
        %v3145 = vunpack.c.h.b16 %v830
        %v3146 = vunpack.c.l.b16 %v831
        %v3147 = vunpack.c.h.b16 %v831
        %v3148 = vunpack.c.l.b16 %v832
        %v3149 = vunpack.c.h.b16 %v832
        %v3150 = vunpack.c.l.b16 %v833
        %v3151 = vunpack.c.h.b16 %v833
        %v3152 = vunpack.c.l.b16 %v834
        %v3153 = vunpack.c.h.b16 %v834
        %v3154 = vunpack.c.l.b16 %v835
        %v3155 = vunpack.c.h.b16 %v835
        %v3156 = vunpack.c.l.b16 %v836
        %v3157 = vunpack.c.h.b16 %v836
        %v3158 = vunpack.c.l.b16 %v837
        %v3159 = vunpack.c.h.b16 %v837
        %v3160 = vunpack.c.l.b16 %v838
        %v3161 = vunpack.c.h.b16 %v838
        %v3162 = vunpack.c.l.b16 %v839
        %v3163 = vunpack.c.h.b16 %v839
        %v3164 = vunpack.c.l.b16 %v840
        %v3165 = vunpack.c.h.b16 %v840
        %v3166 = vunpack.c.l.b16 %v841
        %v3167 = vunpack.c.h.b16 %v841
        %v3168 = vunpack.c.l.b16 %v842
        %v3169 = vunpack.c.h.b16 %v842
        %v3170 = vunpack.c.l.b16 %v843
        %v3171 = vunpack.c.h.b16 %v843
        %v3172 = vunpack.c.l.b16 %v844
        %v3173 = vunpack.c.h.b16 %v844
        %v3174 = vunpack.c.l.b16 %v845
        %v3175 = vunpack.c.h.b16 %v845
        %v3176 = vunpack.c.l.b16 %v846
        %v3177 = vunpack.c.h.b16 %v846
        %v3178 = vunpack.c.l.b16 %v847
        %v3179 = vunpack.c.h.b16 %v847
        %v3180 = vunpack.c.l.b16 %v848
        %v3181 = vunpack.c.h.b16 %v848
        %v3182 = vunpack.c.l.b16 %v849
        %v3183 = vunpack.c.h.b16 %v849
        %v3184 = vunpack.c.l.b16 %v850
        %v3185 = vunpack.c.h.b16 %v850
        %v3186 = vunpack.c.l.b16 %v851
        %v3187 = vunpack.c.h.b16 %v851
        %v3188 = vunpack.c.l.b16 %v852
        %v3189 = vunpack.c.h.b16 %v852
        %v3190 = vunpack.c.l.b16 %v853
        %v3191 = vunpack.c.h.b16 %v853
        %v3192 = vunpack.c.l.b16 %v854
        %v3193 = vunpack.c.h.b16 %v854
        %v3194 = vunpack.c.l.b16 %v855
        %v3195 = vunpack.c.h.b16 %v855
        %v3196 = vunpack.c.l.b16 %v856
        %v3197 = vunpack.c.h.b16 %v856
        %v3198 = vunpack.c.l.b16 %v857
        %v3199 = vunpack.c.h.b16 %v857
        %v3200 = vunpack.c.l.b16 %v858
        %v3201 = vunpack.c.h.b16 %v858
        %v3202 = vunpack.c.l.b16 %v859
        %v3203 = vunpack.c.h.b16 %v859
        %v3204 = vunpack.c.l.b16 %v860
        %v3205 = vunpack.c.h.b16 %v860
        %v3206 = vunpack.c.l.b16 %v861
        %v3207 = vunpack.c.h.b16 %v861
        %v3208 = vunpack.c.l.b16 %v862
        %v3209 = vunpack.c.h.b16 %v862
        %v3210 = vunpack.c.l.b16 %v863
        %v3211 = vunpack.c.h.b16 %v863
        %v3212 = vunpack.c.l.b16 %v864
        %v3213 = vunpack.c.h.b16 %v864
        %v3214 = vunpack.c.l.b16 %v865
        %v3215 = vunpack.c.h.b16 %v865
        %v3216 = vunpack.c.l.b16 %v866
        %v3217 = vunpack.c.h.b16 %v866
        %v3218 = vunpack.c.l.b16 %v867
        %v3219 = vunpack.c.h.b16 %v867
        %v3220 = vunpack.c.l.b16 %v868
        %v3221 = vunpack.c.h.b16 %v868
        %v3222 = vunpack.c.l.b16 %v869
        %v3223 = vunpack.c.h.b16 %v869
        %v3224 = vunpack.c.l.b16 %v870
        %v3225 = vunpack.c.h.b16 %v870
        %v3226 = vunpack.c.l.b16 %v871
        %v3227 = vunpack.c.h.b16 %v871
        %v3228 = vunpack.c.l.b16 %v872
        %v3229 = vunpack.c.h.b16 %v872
        %v3230 = vunpack.c.l.b16 %v873
        %v3231 = vunpack.c.h.b16 %v873
        %v3232 = vunpack.c.l.b16 %v874
        %v3233 = vunpack.c.h.b16 %v874
        %v3234 = vunpack.c.l.b16 %v875
        %v3235 = vunpack.c.h.b16 %v875
        %v3236 = vunpack.c.l.b16 %v876
        %v3237 = vunpack.c.h.b16 %v876
        %v3238 = vunpack.c.l.b16 %v877
        %v3239 = vunpack.c.h.b16 %v877
        %v3240 = vunpack.c.l.b16 %v878
        %v3241 = vunpack.c.h.b16 %v878
        %v3242 = vunpack.c.l.b16 %v879
        %v3243 = vunpack.c.h.b16 %v879
        %v3244 = vunpack.c.l.b16 %v880
        %v3245 = vunpack.c.h.b16 %v880
        %v3246 = vunpack.c.l.b16 %v881
        %v3247 = vunpack.c.h.b16 %v881
        %v3248 = vunpack.c.l.b16 %v882
        %v3249 = vunpack.c.h.b16 %v882
        %v3250 = vunpack.c.l.b16 %v883
        %v3251 = vunpack.c.h.b16 %v883
        %v3252 = vunpack.c.l.b16 %v884
        %v3253 = vunpack.c.h.b16 %v884
        %v3254 = vunpack.c.l.b16 %v885
        %v3255 = vunpack.c.h.b16 %v885
        %v3256 = vunpack.c.l.b16 %v886
        %v3257 = vunpack.c.h.b16 %v886
        %v3258 = vunpack.c.l.b16 %v887
        %v3259 = vunpack.c.h.b16 %v887
        %v3260 = vunpack.c.l.b16 %v888
        %v3261 = vunpack.c.h.b16 %v888
        %v3262 = vunpack.c.l.b16 %v889
        %v3263 = vunpack.c.h.b16 %v889
        %v3264 = vunpack.c.l.b16 %v890
        %v3265 = vunpack.c.h.b16 %v890
        %v3266 = vunpack.c.l.b16 %v891
        %v3267 = vunpack.c.h.b16 %v891
        %v3268 = vunpack.c.l.b16 %v892
        %v3269 = vunpack.c.h.b16 %v892
        %v3270 = vunpack.c.l.b16 %v893
        %v3271 = vunpack.c.h.b16 %v893
        %v3272 = vunpack.c.l.b16 %v894
        %v3273 = vunpack.c.h.b16 %v894
        %v3274 = vunpack.c.l.b16 %v895
        %v3275 = vunpack.c.h.b16 %v895
        %v3276 = vunpack.c.l.b16 %v896
        %v3277 = vunpack.c.h.b16 %v896
        %v3278 = vunpack.c.l.b16 %v897
        %v3279 = vunpack.c.h.b16 %v897
        %v3280 = vunpack.c.l.b16 %v898
        %v3281 = vunpack.c.h.b16 %v898
        %v3282 = vunpack.c.l.b16 %v899
        %v3283 = vunpack.c.h.b16 %v899
        %v3284 = vunpack.c.l.b16 %v900
        %v3285 = vunpack.c.h.b16 %v900
        %v3286 = vunpack.c.l.b16 %v901
        %v3287 = vunpack.c.h.b16 %v901
        %v3288 = vunpack.c.l.b16 %v902
        %v3289 = vunpack.c.h.b16 %v902
        %v3290 = vunpack.c.l.b16 %v903
        %v3291 = vunpack.c.h.b16 %v903
        %v3292 = vunpack.c.l.b16 %v904
        %v3293 = vunpack.c.h.b16 %v904
        %v3294 = vunpack.c.l.b16 %v905
        %v3295 = vunpack.c.h.b16 %v905
        %v3296 = vunpack.c.l.b16 %v906
        %v3297 = vunpack.c.h.b16 %v906
        %v3298 = vunpack.c.l.b16 %v907
        %v3299 = vunpack.c.h.b16 %v907
        %v3300 = vunpack.c.l.b16 %v908
        %v3301 = vunpack.c.h.b16 %v908
        %v3302 = vunpack.c.l.b16 %v909
        %v3303 = vunpack.c.h.b16 %v909
        %v3304 = vunpack.c.l.b16 %v910
        %v3305 = vunpack.c.h.b16 %v910
        %v3306 = vunpack.c.l.b16 %v911
        %v3307 = vunpack.c.h.b16 %v911
        %v3308 = vunpack.c.l.b16 %v912
        %v3309 = vunpack.c.h.b16 %v912
        %v3310 = vunpack.c.l.b16 %v913
        %v3311 = vunpack.c.h.b16 %v913
        %v3312 = vunpack.c.l.b16 %v914
        %v3313 = vunpack.c.h.b16 %v914
        %v3314 = vunpack.c.l.b16 %v915
        %v3315 = vunpack.c.h.b16 %v915
        %v3316 = vunpack.c.l.b16 %v916
        %v3317 = vunpack.c.h.b16 %v916
        %v3318 = vunpack.c.l.b16 %v917
        %v3319 = vunpack.c.h.b16 %v917
        %v3320 = vunpack.c.l.b16 %v918
        %v3321 = vunpack.c.h.b16 %v918
        %v3322 = vunpack.c.l.b16 %v919
        %v3323 = vunpack.c.h.b16 %v919
        %v3324 = vunpack.c.l.b16 %v920
        %v3325 = vunpack.c.h.b16 %v920
        %v3326 = vunpack.c.l.b16 %v921
        %v3327 = vunpack.c.h.b16 %v921
        %v3328 = vunpack.c.l.b16 %v922
        %v3329 = vunpack.c.h.b16 %v922
        %v3330 = vunpack.c.l.b16 %v923
        %v3331 = vunpack.c.h.b16 %v923
        %v3332 = vunpack.c.l.b16 %v924
        %v3333 = vunpack.c.h.b16 %v924
        %v3334 = vunpack.c.l.b16 %v925
        %v3335 = vunpack.c.h.b16 %v925
        %v3336 = vunpack.c.l.b16 %v926
        %v3337 = vunpack.c.h.b16 %v926
        %v3338 = vunpack.c.l.b16 %v927
        %v3339 = vunpack.c.h.b16 %v927
        %v3340 = vunpack.c.l.b16 %v928
        %v3341 = vunpack.c.h.b16 %v928
        %v3342 = vunpack.c.l.b16 %v929
        %v3343 = vunpack.c.h.b16 %v929
        %v3344 = vunpack.c.l.b16 %v930
        %v3345 = vunpack.c.h.b16 %v930
        %v3346 = vunpack.c.l.b16 %v931
        %v3347 = vunpack.c.h.b16 %v931
        %v3348 = vunpack.c.l.b16 %v932
        %v3349 = vunpack.c.h.b16 %v932
        %v3350 = vunpack.c.l.b16 %v933
        %v3351 = vunpack.c.h.b16 %v933
        %v3352 = vunpack.c.l.b16 %v934
        %v3353 = vunpack.c.h.b16 %v934
        %v3354 = vunpack.c.l.b16 %v935
        %v3355 = vunpack.c.h.b16 %v935
        %v3356 = vunpack.c.l.b16 %v936
        %v3357 = vunpack.c.h.b16 %v936
        %v3358 = vunpack.c.l.b16 %v937
        %v3359 = vunpack.c.h.b16 %v937
        %v3360 = vunpack.c.l.b16 %v938
        %v3361 = vunpack.c.h.b16 %v938
        %v3362 = vunpack.c.l.b16 %v939
        %v3363 = vunpack.c.h.b16 %v939
        %v3364 = vunpack.c.l.b16 %v940
        %v3365 = vunpack.c.h.b16 %v940
        %v3366 = vunpack.c.l.b16 %v941
        %v3367 = vunpack.c.h.b16 %v941
        %v3368 = vunpack.c.l.b16 %v942
        %v3369 = vunpack.c.h.b16 %v942
        %v3370 = vunpack.c.l.b16 %v943
        %v3371 = vunpack.c.h.b16 %v943
        %v3372 = vunpack.c.l.b16 %v944
        %v3373 = vunpack.c.h.b16 %v944
        %v3374 = vunpack.c.l.b16 %v945
        %v3375 = vunpack.c.h.b16 %v945
        %v3376 = vunpack.c.l.b16 %v946
        %v3377 = vunpack.c.h.b16 %v946
        %v3378 = vunpack.c.l.b16 %v947
        %v3379 = vunpack.c.h.b16 %v947
        %v3380 = vunpack.c.l.b16 %v948
        %v3381 = vunpack.c.h.b16 %v948
        %v3382 = vunpack.c.l.b16 %v949
        %v3383 = vunpack.c.h.b16 %v949
        %v3384 = vunpack.c.l.b16 %v950
        %v3385 = vunpack.c.h.b16 %v950
        %v3386 = vunpack.c.l.b16 %v951
        %v3387 = vunpack.c.h.b16 %v951
        %v3388 = vunpack.c.l.b16 %v952
        %v3389 = vunpack.c.h.b16 %v952
        %v3390 = vunpack.c.l.b16 %v953
        %v3391 = vunpack.c.h.b16 %v953
        %v3392 = vunpack.c.l.b16 %v954
        %v3393 = vunpack.c.h.b16 %v954
        %v3394 = vunpack.c.l.b16 %v955
        %v3395 = vunpack.c.h.b16 %v955
        %v3396 = vunpack.c.l.b16 %v956
        %v3397 = vunpack.c.h.b16 %v956
        %v3398 = vunpack.c.l.b16 %v957
        %v3399 = vunpack.c.h.b16 %v957
        %v3400 = vunpack.c.l.b16 %v958
        %v3401 = vunpack.c.h.b16 %v958
        %v3402 = vunpack.c.l.b16 %v959
        %v3403 = vunpack.c.h.b16 %v959
        %v3404 = vunpack.c.l.b16 %v960
        %v3405 = vunpack.c.h.b16 %v960
        %v3406 = vunpack.c.l.b16 %v961
        %v3407 = vunpack.c.h.b16 %v961
        %v3408 = vunpack.c.l.b16 %v962
        %v3409 = vunpack.c.h.b16 %v962
        %v3410 = vunpack.c.l.b16 %v963
        %v3411 = vunpack.c.h.b16 %v963
        %v3412 = vunpack.c.l.b16 %v964
        %v3413 = vunpack.c.h.b16 %v964
        %v3414 = vunpack.c.l.b16 %v965
        %v3415 = vunpack.c.h.b16 %v965
        %v3416 = vunpack.c.l.b16 %v966
        %v3417 = vunpack.c.h.b16 %v966
        %v3418 = vunpack.c.l.b16 %v967
        %v3419 = vunpack.c.h.b16 %v967
        %v3420 = vunpack.c.l.b16 %v968
        %v3421 = vunpack.c.h.b16 %v968
        %v3422 = vunpack.c.l.b16 %v969
        %v3423 = vunpack.c.h.b16 %v969
        %v3424 = vunpack.c.l.b16 %v970
        %v3425 = vunpack.c.h.b16 %v970
        %v3426 = vunpack.c.l.b16 %v971
        %v3427 = vunpack.c.h.b16 %v971
        %v3428 = vunpack.c.l.b16 %v972
        %v3429 = vunpack.c.h.b16 %v972
        %v3430 = vunpack.c.l.b16 %v973
        %v3431 = vunpack.c.h.b16 %v973
        %v3432 = vunpack.c.l.b16 %v974
        %v3433 = vunpack.c.h.b16 %v974
        %v3434 = vunpack.c.l.b16 %v975
        %v3435 = vunpack.c.h.b16 %v975
        %v3436 = vunpack.c.l.b16 %v976
        %v3437 = vunpack.c.h.b16 %v976
        %v3438 = vunpack.c.l.b16 %v977
        %v3439 = vunpack.c.h.b16 %v977
        %v3440 = vunpack.c.l.b16 %v978
        %v3441 = vunpack.c.h.b16 %v978
        %v3442 = vunpack.c.l.b16 %v979
        %v3443 = vunpack.c.h.b16 %v979
        %v3444 = vunpack.c.l.b16 %v980
        %v3445 = vunpack.c.h.b16 %v980
        %v3446 = vunpack.c.l.b16 %v981
        %v3447 = vunpack.c.h.b16 %v981
        %v3448 = vunpack.c.l.b16 %v982
        %v3449 = vunpack.c.h.b16 %v982
        %v3450 = vunpack.c.l.b16 %v983
        %v3451 = vunpack.c.h.b16 %v983
        %v3452 = vunpack.c.l.b16 %v984
        %v3453 = vunpack.c.h.b16 %v984
        %v3454 = vunpack.c.l.b16 %v985
        %v3455 = vunpack.c.h.b16 %v985
        %v3456 = vunpack.c.l.b16 %v986
        %v3457 = vunpack.c.h.b16 %v986
        %v3458 = vunpack.c.l.b16 %v987
        %v3459 = vunpack.c.h.b16 %v987
        %v3460 = vunpack.c.l.b16 %v988
        %v3461 = vunpack.c.h.b16 %v988
        %v3462 = vunpack.c.l.b16 %v989
        %v3463 = vunpack.c.h.b16 %v989
        %v3464 = vunpack.c.l.b16 %v990
        %v3465 = vunpack.c.h.b16 %v990
        %v3466 = vunpack.c.l.b16 %v991
        %v3467 = vunpack.c.h.b16 %v991
        %v3468 = vunpack.c.l.b16 %v992
        %v3469 = vunpack.c.h.b16 %v992
        %v3470 = vunpack.c.l.b16 %v993
        %v3471 = vunpack.c.h.b16 %v993
        %v3472 = vunpack.c.l.b16 %v994
        %v3473 = vunpack.c.h.b16 %v994
        %v3474 = vunpack.c.l.b16 %v995
        %v3475 = vunpack.c.h.b16 %v995
        %v3476 = vunpack.c.l.b16 %v996
        %v3477 = vunpack.c.h.b16 %v996
        %v3478 = vunpack.c.l.b16 %v997
        %v3479 = vunpack.c.h.b16 %v997
        %v3480 = vunpack.c.l.b16 %v998
        %v3481 = vunpack.c.h.b16 %v998
        %v3482 = vunpack.c.l.b16 %v999
        %v3483 = vunpack.c.h.b16 %v999
        %v3484 = vunpack.c.l.b16 %v1000
        %v3485 = vunpack.c.h.b16 %v1000
        %v3486 = vunpack.c.l.b16 %v1001
        %v3487 = vunpack.c.h.b16 %v1001
        %v3488 = vunpack.c.l.b16 %v1002
        %v3489 = vunpack.c.h.b16 %v1002
        %v3490 = vunpack.c.l.b16 %v1003
        %v3491 = vunpack.c.h.b16 %v1003
        %v3492 = vunpack.c.l.b16 %v1004
        %v3493 = vunpack.c.h.b16 %v1004
        %v3494 = vunpack.c.l.b16 %v1005
        %v3495 = vunpack.c.h.b16 %v1005
        %v3496 = vunpack.c.l.b16 %v1006
        %v3497 = vunpack.c.h.b16 %v1006
        %v3498 = vunpack.c.l.b16 %v1007
        %v3499 = vunpack.c.h.b16 %v1007
        %v3500 = vunpack.c.l.b16 %v1008
        %v3501 = vunpack.c.h.b16 %v1008
        %v3502 = vunpack.c.l.b16 %v1009
        %v3503 = vunpack.c.h.b16 %v1009
        %v3504 = vunpack.c.l.b16 %v1010
        %v3505 = vunpack.c.h.b16 %v1010
        %v3506 = vunpack.c.l.b16 %v1011
        %v3507 = vunpack.c.h.b16 %v1011
        %v3508 = vunpack.c.l.b16 %v1012
        %v3509 = vunpack.c.h.b16 %v1012
        %v3510 = vunpack.c.l.b16 %v1013
        %v3511 = vunpack.c.h.b16 %v1013
        %v3512 = vunpack.c.l.b16 %v1014
        %v3513 = vunpack.c.h.b16 %v1014
        %v3514 = vunpack.c.l.b16 %v1015
        %v3515 = vunpack.c.h.b16 %v1015
        %v3516 = vunpack.c.l.b16 %v1016
        %v3517 = vunpack.c.h.b16 %v1016
        %v3518 = vunpack.c.l.b16 %v1017
        %v3519 = vunpack.c.h.b16 %v1017
        %v3520 = vunpack.c.l.b16 %v1018
        %v3521 = vunpack.c.h.b16 %v1018
        %v3522 = vunpack.c.l.b16 %v1019
        %v3523 = vunpack.c.h.b16 %v1019
        %v3524 = vunpack.c.l.b16 %v1020
        %v3525 = vunpack.c.h.b16 %v1020
        %v3526 = vunpack.c.l.b16 %v1021
        %v3527 = vunpack.c.h.b16 %v1021
        %v3528 = vunpack.c.l.b16 %v1022
        %v3529 = vunpack.c.h.b16 %v1022
        %v3530 = vunpack.c.l.b16 %v1023
        %v3531 = vunpack.c.h.b16 %v1023
        %v3532 = vunpack.c.l.b16 %v1024
        %v3533 = vunpack.c.h.b16 %v1024
        %v3534 = vunpack.c.l.b16 %v1025
        %v3535 = vunpack.c.h.b16 %v1025
        %v3536 = vunpack.c.l.b16 %v1026
        %v3537 = vunpack.c.h.b16 %v1026
        %v3538 = vunpack.c.l.b16 %v1027
        %v3539 = vunpack.c.h.b16 %v1027
        %v3540 = vunpack.c.l.b16 %v1028
        %v3541 = vunpack.c.h.b16 %v1028
        %v3542 = vunpack.c.l.b16 %v1029
        %v3543 = vunpack.c.h.b16 %v1029
        %v3544 = vunpack.c.l.b16 %v1030
        %v3545 = vunpack.c.h.b16 %v1030
        %v3546 = vunpack.c.l.b16 %v1031
        %v3547 = vunpack.c.h.b16 %v1031
        %v3548 = vunpack.c.l.b16 %v1032
        %v3549 = vunpack.c.h.b16 %v1032
        %v3550 = vunpack.c.l.b16 %v1033
        %v3551 = vunpack.c.h.b16 %v1033
        %v3552 = vunpack.c.l.b16 %v1034
        %v3553 = vunpack.c.h.b16 %v1034
        %v3554 = vunpack.c.l.b16 %v1035
        %v3555 = vunpack.c.h.b16 %v1035
        %v3556 = vunpack.c.l.b16 %v1036
        %v3557 = vunpack.c.h.b16 %v1036
        %v3558 = vunpack.c.l.b16 %v1037
        %v3559 = vunpack.c.h.b16 %v1037
        %v3560 = vunpack.c.l.b16 %v1038
        %v3561 = vunpack.c.h.b16 %v1038
        %v3562 = vunpack.c.l.b16 %v1039
        %v3563 = vunpack.c.h.b16 %v1039
        %v3564 = vunpack.c.l.b16 %v1040
        %v3565 = vunpack.c.h.b16 %v1040
        %v3566 = vunpack.c.l.b16 %v1041
        %v3567 = vunpack.c.h.b16 %v1041
        %v3568 = vunpack.c.l.b16 %v1042
        %v3569 = vunpack.c.h.b16 %v1042
        %v3570 = vunpack.c.l.b16 %v1043
        %v3571 = vunpack.c.h.b16 %v1043
        %v3572 = vunpack.c.l.b16 %v1044
        %v3573 = vunpack.c.h.b16 %v1044
        %v3574 = vunpack.c.l.b16 %v1045
        %v3575 = vunpack.c.h.b16 %v1045
        %v3576 = vunpack.c.l.b16 %v1046
        %v3577 = vunpack.c.h.b16 %v1046
        %v3578 = vunpack.c.l.b16 %v1047
        %v3579 = vunpack.c.h.b16 %v1047
        %v3580 = vunpack.c.l.b16 %v1048
        %v3581 = vunpack.c.h.b16 %v1048
        %v3582 = vunpack.c.l.b16 %v1049
        %v3583 = vunpack.c.h.b16 %v1049
        %v3584 = vunpack.c.l.b16 %v1050
        %v3585 = vunpack.c.h.b16 %v1050
        %v3586 = vunpack.c.l.b16 %v1051
        %v3587 = vunpack.c.h.b16 %v1051
        %v3588 = vunpack.c.l.b16 %v1052
        %v3589 = vunpack.c.h.b16 %v1052
        %v3590 = vunpack.c.l.b16 %v1053
        %v3591 = vunpack.c.h.b16 %v1053
        %v3592 = vunpack.c.l.b16 %v1054
        %v3593 = vunpack.c.h.b16 %v1054
        %v3594 = vunpack.c.l.b16 %v1055
        %v3595 = vunpack.c.h.b16 %v1055
        %v3596 = vunpack.c.l.b16 %v1056
        %v3597 = vunpack.c.h.b16 %v1056
        %v3598 = vunpack.c.l.b16 %v1057
        %v3599 = vunpack.c.h.b16 %v1057
        %v3600 = vunpack.c.l.b16 %v1058
        %v3601 = vunpack.c.h.b16 %v1058
        %v3602 = vunpack.c.l.b16 %v1059
        %v3603 = vunpack.c.h.b16 %v1059
        %v3604 = vunpack.c.l.b16 %v1060
        %v3605 = vunpack.c.h.b16 %v1060
        %v3606 = vunpack.c.l.b16 %v1061
        %v3607 = vunpack.c.h.b16 %v1061
        %v3608 = vunpack.c.l.b16 %v1062
        %v3609 = vunpack.c.h.b16 %v1062
        %v3610 = vunpack.c.l.b16 %v1063
        %v3611 = vunpack.c.h.b16 %v1063
        %v3612 = vunpack.c.l.b16 %v1064
        %v3613 = vunpack.c.h.b16 %v1064
        %v3614 = vunpack.c.l.b16 %v1065
        %v3615 = vunpack.c.h.b16 %v1065
        %v3616 = vunpack.c.l.b16 %v1066
        %v3617 = vunpack.c.h.b16 %v1066
        %v3618 = vunpack.c.l.b16 %v1067
        %v3619 = vunpack.c.h.b16 %v1067
        %v3620 = vunpack.c.l.b16 %v1068
        %v3621 = vunpack.c.h.b16 %v1068
        %v3622 = vunpack.c.l.b16 %v1069
        %v3623 = vunpack.c.h.b16 %v1069
        %v3624 = vunpack.c.l.b16 %v1070
        %v3625 = vunpack.c.h.b16 %v1070
        %v3626 = vunpack.c.l.b16 %v1071
        %v3627 = vunpack.c.h.b16 %v1071
        %v3628 = vunpack.c.l.b16 %v1072
        %v3629 = vunpack.c.h.b16 %v1072
        %v3630 = vunpack.c.l.b16 %v1073
        %v3631 = vunpack.c.h.b16 %v1073
        %v3632 = vunpack.c.l.b16 %v1074
        %v3633 = vunpack.c.h.b16 %v1074
        %v3634 = vunpack.c.l.b16 %v1075
        %v3635 = vunpack.c.h.b16 %v1075
        %v3636 = vunpack.c.l.b16 %v1076
        %v3637 = vunpack.c.h.b16 %v1076
        %v3638 = vunpack.c.l.b16 %v1077
        %v3639 = vunpack.c.h.b16 %v1077
        %v3640 = vunpack.c.l.b16 %v1078
        %v3641 = vunpack.c.h.b16 %v1078
        %v3642 = vunpack.c.l.b16 %v1079
        %v3643 = vunpack.c.h.b16 %v1079
        %v3644 = vunpack.c.l.b16 %v1080
        %v3645 = vunpack.c.h.b16 %v1080
        %v3646 = vunpack.c.l.b16 %v1081
        %v3647 = vunpack.c.h.b16 %v1081
        %v3648 = vunpack.c.l.b16 %v1082
        %v3649 = vunpack.c.h.b16 %v1082
        %v3650 = vunpack.c.l.b16 %v1083
        %v3651 = vunpack.c.h.b16 %v1083
        %v3652 = vunpack.c.l.b16 %v1084
        %v3653 = vunpack.c.h.b16 %v1084
        %v3654 = vunpack.c.l.b16 %v1085
        %v3655 = vunpack.c.h.b16 %v1085
        %v3656 = vunpack.c.l.b16 %v1086
        %v3657 = vunpack.c.h.b16 %v1086
        %v3658 = vunpack.c.l.b16 %v1087
        %v3659 = vunpack.c.h.b16 %v1087
        %v3660 = vunpack.c.l.b16 %v1088
        %v3661 = vunpack.c.h.b16 %v1088
        %v3662 = vunpack.c.l.b16 %v1089
        %v3663 = vunpack.c.h.b16 %v1089
        %v3664 = vunpack.c.l.b16 %v1090
        %v3665 = vunpack.c.h.b16 %v1090
        %v3666 = vunpack.c.l.b16 %v1091
        %v3667 = vunpack.c.h.b16 %v1091
        %v3668 = vunpack.c.l.b16 %v1092
        %v3669 = vunpack.c.h.b16 %v1092
        %v3670 = vunpack.c.l.b16 %v1093
        %v3671 = vunpack.c.h.b16 %v1093
        %v3672 = vunpack.c.l.b16 %v1094
        %v3673 = vunpack.c.h.b16 %v1094
        %v3674 = vunpack.c.l.b16 %v1095
        %v3675 = vunpack.c.h.b16 %v1095
        %v3676 = vunpack.c.l.b16 %v1096
        %v3677 = vunpack.c.h.b16 %v1096
        %v3678 = vunpack.c.l.b16 %v1097
        %v3679 = vunpack.c.h.b16 %v1097
        %v3680 = vunpack.c.l.b16 %v1098
        %v3681 = vunpack.c.h.b16 %v1098
        %v3682 = vunpack.c.l.b16 %v1099
        %v3683 = vunpack.c.h.b16 %v1099
        %v3684 = vunpack.c.l.b16 %v1100
        %v3685 = vunpack.c.h.b16 %v1100
        %v3686 = vunpack.c.l.b16 %v1101
        %v3687 = vunpack.c.h.b16 %v1101
        %v3688 = vunpack.c.l.b16 %v1102
        %v3689 = vunpack.c.h.b16 %v1102
        %v3690 = vunpack.c.l.b16 %v1103
        %v3691 = vunpack.c.h.b16 %v1103
        %v3692 = vunpack.c.l.b16 %v1104
        %v3693 = vunpack.c.h.b16 %v1104
        %v3694 = vunpack.c.l.b16 %v1105
        %v3695 = vunpack.c.h.b16 %v1105
        %v3696 = vunpack.c.l.b16 %v1106
        %v3697 = vunpack.c.h.b16 %v1106
        %v3698 = vunpack.c.l.b16 %v1107
        %v3699 = vunpack.c.h.b16 %v1107
        %v3700 = vunpack.c.l.b16 %v1108
        %v3701 = vunpack.c.h.b16 %v1108
        %v3702 = vunpack.c.l.b16 %v1109
        %v3703 = vunpack.c.h.b16 %v1109
        %v3704 = vunpack.c.l.b16 %v1110
        %v3705 = vunpack.c.h.b16 %v1110
        %v3706 = vunpack.c.l.b16 %v1111
        %v3707 = vunpack.c.h.b16 %v1111
        %v3708 = vunpack.c.l.b16 %v1112
        %v3709 = vunpack.c.h.b16 %v1112
        %v3710 = vunpack.c.l.b16 %v1113
        %v3711 = vunpack.c.h.b16 %v1113
        %v3712 = vunpack.c.l.b16 %v1114
        %v3713 = vunpack.c.h.b16 %v1114
        %v3714 = vunpack.c.l.b16 %v1115
        %v3715 = vunpack.c.h.b16 %v1115
        %v3716 = vunpack.c.l.b16 %v1116
        %v3717 = vunpack.c.h.b16 %v1116
        %v3718 = vunpack.c.l.b16 %v1117
        %v3719 = vunpack.c.h.b16 %v1117
        %v3720 = vpack.c.b16 %v2218, %v2216
        %v3721 = vpack.c.b16 %v2219, %v2217
        %v3722 = vpack.c.b16 %v2222, %v2220
        %v3723 = vpack.c.b16 %v2223, %v2221
        %v3724 = vpack.c.b16 %v2226, %v2224
        %v3725 = vpack.c.b16 %v2227, %v2225
        %v3726 = vpack.c.b16 %v2230, %v2228
        %v3727 = vpack.c.b16 %v2231, %v2229
        %v3728 = vpack.c.b16 %v2234, %v2232
        %v3729 = vpack.c.b16 %v2235, %v2233
        %v3730 = vpack.c.b16 %v2238, %v2236
        %v3731 = vpack.c.b16 %v2239, %v2237
        %v3732 = vpack.c.b16 %v2242, %v2240
        %v3733 = vpack.c.b16 %v2243, %v2241
        %v3734 = vpack.c.b16 %v2246, %v2244
        %v3735 = vpack.c.b16 %v2247, %v2245
        %v3736 = vpack.c.b16 %v2250, %v2248
        %v3737 = vpack.c.b16 %v2251, %v2249
        %v3738 = vpack.c.b16 %v2254, %v2252
        %v3739 = vpack.c.b16 %v2255, %v2253
        %v3740 = vpack.c.b16 %v2258, %v2256
        %v3741 = vpack.c.b16 %v2259, %v2257
        %v3742 = vpack.c.b16 %v2262, %v2260
        %v3743 = vpack.c.b16 %v2263, %v2261
        %v3744 = vpack.c.b16 %v2266, %v2264
        %v3745 = vpack.c.b16 %v2267, %v2265
        %v3746 = vpack.c.b16 %v2270, %v2268
        %v3747 = vpack.c.b16 %v2271, %v2269
        %v3748 = vpack.c.b16 %v2274, %v2272
        %v3749 = vpack.c.b16 %v2275, %v2273
        %v3750 = vpack.c.b16 %v2278, %v2276
        %v3751 = vpack.c.b16 %v2279, %v2277
        %v3752 = vpack.c.b16 %v2282, %v2280
        %v3753 = vpack.c.b16 %v2283, %v2281
        %v3754 = vpack.c.b16 %v2286, %v2284
        %v3755 = vpack.c.b16 %v2287, %v2285
        %v3756 = vpack.c.b16 %v2290, %v2288
        %v3757 = vpack.c.b16 %v2291, %v2289
        %v3758 = vpack.c.b16 %v2294, %v2292
        %v3759 = vpack.c.b16 %v2295, %v2293
        %v3760 = vpack.c.b16 %v2298, %v2296
        %v3761 = vpack.c.b16 %v2299, %v2297
        %v3762 = vpack.c.b16 %v2302, %v2300
        %v3763 = vpack.c.b16 %v2303, %v2301
        %v3764 = vpack.c.b16 %v2306, %v2304
        %v3765 = vpack.c.b16 %v2307, %v2305
        %v3766 = vpack.c.b16 %v2310, %v2308
        %v3767 = vpack.c.b16 %v2311, %v2309
        %v3768 = vpack.c.b16 %v2314, %v2312
        %v3769 = vpack.c.b16 %v2315, %v2313
        %v3770 = vpack.c.b16 %v2318, %v2316
        %v3771 = vpack.c.b16 %v2319, %v2317
        %v3772 = vpack.c.b16 %v2322, %v2320
        %v3773 = vpack.c.b16 %v2323, %v2321
        %v3774 = vpack.c.b16 %v2326, %v2324
        %v3775 = vpack.c.b16 %v2327, %v2325
        %v3776 = vpack.c.b16 %v2330, %v2328
        %v3777 = vpack.c.b16 %v2331, %v2329
        %v3778 = vpack.c.b16 %v2334, %v2332
        %v3779 = vpack.c.b16 %v2335, %v2333
        %v3780 = vpack.c.b16 %v2338, %v2336
        %v3781 = vpack.c.b16 %v2339, %v2337
        %v3782 = vpack.c.b16 %v2342, %v2340
        %v3783 = vpack.c.b16 %v2343, %v2341
        %v3784 = vpack.c.b16 %v2346, %v2344
        %v3785 = vpack.c.b16 %v2347, %v2345
        %v3786 = vpack.c.b16 %v2350, %v2348
        %v3787 = vpack.c.b16 %v2351, %v2349
        %v3788 = vpack.c.b16 %v2354, %v2352
        %v3789 = vpack.c.b16 %v2355, %v2353
        %v3790 = vpack.c.b16 %v2358, %v2356
        %v3791 = vpack.c.b16 %v2359, %v2357
        %v3792 = vpack.c.b16 %v2362, %v2360
        %v3793 = vpack.c.b16 %v2363, %v2361
        %v3794 = vpack.c.b16 %v2366, %v2364
        %v3795 = vpack.c.b16 %v2367, %v2365
        %v3796 = vpack.c.b16 %v2370, %v2368
        %v3797 = vpack.c.b16 %v2371, %v2369
        %v3798 = vpack.c.b16 %v2374, %v2372
        %v3799 = vpack.c.b16 %v2375, %v2373
        %v3800 = vpack.c.b16 %v2378, %v2376
        %v3801 = vpack.c.b16 %v2379, %v2377
        %v3802 = vpack.c.b16 %v2382, %v2380
        %v3803 = vpack.c.b16 %v2383, %v2381
        %v3804 = vpack.c.b16 %v2386, %v2384
        %v3805 = vpack.c.b16 %v2387, %v2385
        %v3806 = vpack.c.b16 %v2390, %v2388
        %v3807 = vpack.c.b16 %v2391, %v2389
        %v3808 = vpack.c.b16 %v2394, %v2392
        %v3809 = vpack.c.b16 %v2395, %v2393
        %v3810 = vpack.c.b16 %v2398, %v2396
        %v3811 = vpack.c.b16 %v2399, %v2397
        %v3812 = vpack.c.b16 %v2402, %v2400
        %v3813 = vpack.c.b16 %v2403, %v2401
        %v3814 = vpack.c.b16 %v2406, %v2404
        %v3815 = vpack.c.b16 %v2407, %v2405
        %v3816 = vpack.c.b16 %v2410, %v2408
        %v3817 = vpack.c.b16 %v2411, %v2409
        %v3818 = vpack.c.b16 %v2414, %v2412
        %v3819 = vpack.c.b16 %v2415, %v2413
        %v3820 = vpack.c.b16 %v2418, %v2416
        %v3821 = vpack.c.b16 %v2419, %v2417
        %v3822 = vpack.c.b16 %v2422, %v2420
        %v3823 = vpack.c.b16 %v2423, %v2421
        %v3824 = vpack.c.b16 %v2426, %v2424
        %v3825 = vpack.c.b16 %v2427, %v2425
        %v3826 = vpack.c.b16 %v2430, %v2428
        %v3827 = vpack.c.b16 %v2431, %v2429
        %v3828 = vpack.c.b16 %v2434, %v2432
        %v3829 = vpack.c.b16 %v2435, %v2433
        %v3830 = vpack.c.b16 %v2438, %v2436
        %v3831 = vpack.c.b16 %v2439, %v2437
        %v3832 = vpack.c.b16 %v2442, %v2440
        %v3833 = vpack.c.b16 %v2443, %v2441
        %v3834 = vpack.c.b16 %v2446, %v2444
        %v3835 = vpack.c.b16 %v2447, %v2445
        %v3836 = vpack.c.b16 %v2450, %v2448
        %v3837 = vpack.c.b16 %v2451, %v2449
        %v3838 = vpack.c.b16 %v2454, %v2452
        %v3839 = vpack.c.b16 %v2455, %v2453
        %v3840 = vpack.c.b16 %v2458, %v2456
        %v3841 = vpack.c.b16 %v2459, %v2457
        %v3842 = vpack.c.b16 %v2462, %v2460
        %v3843 = vpack.c.b16 %v2463, %v2461
        %v3844 = vpack.c.b16 %v2466, %v2464
        %v3845 = vpack.c.b16 %v2467, %v2465
        %v3846 = vpack.c.b16 %v2470, %v2468
        %v3847 = vpack.c.b16 %v2471, %v2469
        %v3848 = vpack.c.b16 %v2474, %v2472
        %v3849 = vpack.c.b16 %v2475, %v2473
        %v3850 = vpack.c.b16 %v2478, %v2476
        %v3851 = vpack.c.b16 %v2479, %v2477
        %v3852 = vpack.c.b16 %v2482, %v2480
        %v3853 = vpack.c.b16 %v2483, %v2481
        %v3854 = vpack.c.b16 %v2486, %v2484
        %v3855 = vpack.c.b16 %v2487, %v2485
        %v3856 = vpack.c.b16 %v2490, %v2488
        %v3857 = vpack.c.b16 %v2491, %v2489
        %v3858 = vpack.c.b16 %v2494, %v2492
        %v3859 = vpack.c.b16 %v2495, %v2493
        %v3860 = vpack.c.b16 %v2498, %v2496
        %v3861 = vpack.c.b16 %v2499, %v2497
        %v3862 = vpack.c.b16 %v2502, %v2500
        %v3863 = vpack.c.b16 %v2503, %v2501
        %v3864 = vpack.c.b16 %v2506, %v2504
        %v3865 = vpack.c.b16 %v2507, %v2505
        %v3866 = vpack.c.b16 %v2510, %v2508
        %v3867 = vpack.c.b16 %v2511, %v2509
        %v3868 = vpack.c.b16 %v2514, %v2512
        %v3869 = vpack.c.b16 %v2515, %v2513
        %v3870 = vpack.c.b16 %v2518, %v2516
        %v3871 = vpack.c.b16 %v2519, %v2517
        %v3872 = vpack.c.b16 %v2522, %v2520
        %v3873 = vpack.c.b16 %v2523, %v2521
        %v3874 = vpack.c.b16 %v2526, %v2524
        %v3875 = vpack.c.b16 %v2527, %v2525
        %v3876 = vpack.c.b16 %v2530, %v2528
        %v3877 = vpack.c.b16 %v2531, %v2529
        %v3878 = vpack.c.b16 %v2534, %v2532
        %v3879 = vpack.c.b16 %v2535, %v2533
        %v3880 = vpack.c.b16 %v2538, %v2536
        %v3881 = vpack.c.b16 %v2539, %v2537
        %v3882 = vpack.c.b16 %v2542, %v2540
        %v3883 = vpack.c.b16 %v2543, %v2541
        %v3884 = vpack.c.b16 %v2546, %v2544
        %v3885 = vpack.c.b16 %v2547, %v2545
        %v3886 = vpack.c.b16 %v2550, %v2548
        %v3887 = vpack.c.b16 %v2551, %v2549
        %v3888 = vpack.c.b16 %v2554, %v2552
        %v3889 = vpack.c.b16 %v2555, %v2553
        %v3890 = vpack.c.b16 %v2558, %v2556
        %v3891 = vpack.c.b16 %v2559, %v2557
        %v3892 = vpack.c.b16 %v2562, %v2560
        %v3893 = vpack.c.b16 %v2563, %v2561
        %v3894 = vpack.c.b16 %v2566, %v2564
        %v3895 = vpack.c.b16 %v2567, %v2565
        %v3896 = vpack.c.b16 %v2570, %v2568
        %v3897 = vpack.c.b16 %v2571, %v2569
        %v3898 = vpack.c.b16 %v2574, %v2572
        %v3899 = vpack.c.b16 %v2575, %v2573
        %v3900 = vpack.c.b16 %v2578, %v2576
        %v3901 = vpack.c.b16 %v2579, %v2577
        %v3902 = vpack.c.b16 %v2582, %v2580
        %v3903 = vpack.c.b16 %v2583, %v2581
        %v3904 = vpack.c.b16 %v2586, %v2584
        %v3905 = vpack.c.b16 %v2587, %v2585
        %v3906 = vpack.c.b16 %v2590, %v2588
        %v3907 = vpack.c.b16 %v2591, %v2589
        %v3908 = vpack.c.b16 %v2594, %v2592
        %v3909 = vpack.c.b16 %v2595, %v2593
        %v3910 = vpack.c.b16 %v2598, %v2596
        %v3911 = vpack.c.b16 %v2599, %v2597
        %v3912 = vpack.c.b16 %v2602, %v2600
        %v3913 = vpack.c.b16 %v2603, %v2601
        %v3914 = vpack.c.b16 %v2606, %v2604
        %v3915 = vpack.c.b16 %v2607, %v2605
        %v3916 = vpack.c.b16 %v2610, %v2608
        %v3917 = vpack.c.b16 %v2611, %v2609
        %v3918 = vpack.c.b16 %v2614, %v2612
        %v3919 = vpack.c.b16 %v2615, %v2613
        %v3920 = vpack.c.b16 %v2618, %v2616
        %v3921 = vpack.c.b16 %v2619, %v2617
        %v3922 = vpack.c.b16 %v2622, %v2620
        %v3923 = vpack.c.b16 %v2623, %v2621
        %v3924 = vpack.c.b16 %v2626, %v2624
        %v3925 = vpack.c.b16 %v2627, %v2625
        %v3926 = vpack.c.b16 %v2630, %v2628
        %v3927 = vpack.c.b16 %v2631, %v2629
        %v3928 = vpack.c.b16 %v2634, %v2632
        %v3929 = vpack.c.b16 %v2635, %v2633
        %v3930 = vpack.c.b16 %v2638, %v2636
        %v3931 = vpack.c.b16 %v2639, %v2637
        %v3932 = vpack.c.b16 %v2642, %v2640
        %v3933 = vpack.c.b16 %v2643, %v2641
        %v3934 = vpack.c.b16 %v2646, %v2644
        %v3935 = vpack.c.b16 %v2647, %v2645
        %v3936 = vpack.c.b16 %v2650, %v2648
        %v3937 = vpack.c.b16 %v2651, %v2649
        %v3938 = vpack.c.b16 %v2654, %v2652
        %v3939 = vpack.c.b16 %v2655, %v2653
        %v3940 = vpack.c.b16 %v2658, %v2656
        %v3941 = vpack.c.b16 %v2659, %v2657
        %v3942 = vpack.c.b16 %v2662, %v2660
        %v3943 = vpack.c.b16 %v2663, %v2661
        %v3944 = vpack.c.b16 %v2666, %v2664
        %v3945 = vpack.c.b16 %v2667, %v2665
        %v3946 = vpack.c.b16 %v2670, %v2668
        %v3947 = vpack.c.b16 %v2671, %v2669
        %v3948 = vpack.c.b16 %v2674, %v2672
        %v3949 = vpack.c.b16 %v2675, %v2673
        %v3950 = vpack.c.b16 %v2678, %v2676
        %v3951 = vpack.c.b16 %v2679, %v2677
        %v3952 = vpack.c.b16 %v2682, %v2680
        %v3953 = vpack.c.b16 %v2683, %v2681
        %v3954 = vpack.c.b16 %v2686, %v2684
        %v3955 = vpack.c.b16 %v2687, %v2685
        %v3956 = vpack.c.b16 %v2690, %v2688
        %v3957 = vpack.c.b16 %v2691, %v2689
        %v3958 = vpack.c.b16 %v2694, %v2692
        %v3959 = vpack.c.b16 %v2695, %v2693
        %v3960 = vpack.c.b16 %v2698, %v2696
        %v3961 = vpack.c.b16 %v2699, %v2697
        %v3962 = vpack.c.b16 %v2702, %v2700
        %v3963 = vpack.c.b16 %v2703, %v2701
        %v3964 = vpack.c.b16 %v2706, %v2704
        %v3965 = vpack.c.b16 %v2707, %v2705
        %v3966 = vpack.c.b16 %v2710, %v2708
        %v3967 = vpack.c.b16 %v2711, %v2709
        %v3968 = vpack.c.b16 %v2714, %v2712
        %v3969 = vpack.c.b16 %v2715, %v2713
        %v3970 = vpack.c.b16 %v2718, %v2716
        %v3971 = vpack.c.b16 %v2719, %v2717
        %v3972 = vpack.c.b16 %v2722, %v2720
        %v3973 = vpack.c.b16 %v2723, %v2721
        %v3974 = vpack.c.b16 %v2726, %v2724
        %v3975 = vpack.c.b16 %v2727, %v2725
        %v3976 = vpack.c.b16 %v2730, %v2728
        %v3977 = vpack.c.b16 %v2731, %v2729
        %v3978 = vpack.c.b16 %v2734, %v2732
        %v3979 = vpack.c.b16 %v2735, %v2733
        %v3980 = vpack.c.b16 %v2738, %v2736
        %v3981 = vpack.c.b16 %v2739, %v2737
        %v3982 = vpack.c.b16 %v2742, %v2740
        %v3983 = vpack.c.b16 %v2743, %v2741
        %v3984 = vpack.c.b16 %v2746, %v2744
        %v3985 = vpack.c.b16 %v2747, %v2745
        %v3986 = vpack.c.b16 %v2750, %v2748
        %v3987 = vpack.c.b16 %v2751, %v2749
        %v3988 = vpack.c.b16 %v2754, %v2752
        %v3989 = vpack.c.b16 %v2755, %v2753
        %v3990 = vpack.c.b16 %v2758, %v2756
        %v3991 = vpack.c.b16 %v2759, %v2757
        %v3992 = vpack.c.b16 %v2762, %v2760
        %v3993 = vpack.c.b16 %v2763, %v2761
        %v3994 = vpack.c.b16 %v2766, %v2764
        %v3995 = vpack.c.b16 %v2767, %v2765
        %v3996 = vpack.c.b16 %v2770, %v2768
        %v3997 = vpack.c.b16 %v2771, %v2769
        %v3998 = vpack.c.b16 %v2774, %v2772
        %v3999 = vpack.c.b16 %v2775, %v2773
        %v4000 = vpack.c.b16 %v2778, %v2776
        %v4001 = vpack.c.b16 %v2779, %v2777
        %v4002 = vpack.c.b16 %v2782, %v2780
        %v4003 = vpack.c.b16 %v2783, %v2781
        %v4004 = vpack.c.b16 %v2786, %v2784
        %v4005 = vpack.c.b16 %v2787, %v2785
        %v4006 = vpack.c.b16 %v2790, %v2788
        %v4007 = vpack.c.b16 %v2791, %v2789
        %v4008 = vpack.c.b16 %v2794, %v2792
        %v4009 = vpack.c.b16 %v2795, %v2793
        %v4010 = vpack.c.b16 %v2798, %v2796
        %v4011 = vpack.c.b16 %v2799, %v2797
        %v4012 = vpack.c.b16 %v2802, %v2800
        %v4013 = vpack.c.b16 %v2803, %v2801
        %v4014 = vpack.c.b16 %v2806, %v2804
        %v4015 = vpack.c.b16 %v2807, %v2805
        %v4016 = vpack.c.b16 %v2810, %v2808
        %v4017 = vpack.c.b16 %v2811, %v2809
        %v4018 = vpack.c.b16 %v2814, %v2812
        %v4019 = vpack.c.b16 %v2815, %v2813
        %v4020 = vpack.c.b16 %v2818, %v2816
        %v4021 = vpack.c.b16 %v2819, %v2817
        %v4022 = vpack.c.b16 %v2822, %v2820
        %v4023 = vpack.c.b16 %v2823, %v2821
        %v4024 = vpack.c.b16 %v2826, %v2824
        %v4025 = vpack.c.b16 %v2827, %v2825
        %v4026 = vpack.c.b16 %v2830, %v2828
        %v4027 = vpack.c.b16 %v2831, %v2829
        %v4028 = vpack.c.b16 %v2834, %v2832
        %v4029 = vpack.c.b16 %v2835, %v2833
        %v4030 = vpack.c.b16 %v2838, %v2836
        %v4031 = vpack.c.b16 %v2839, %v2837
        %v4032 = vpack.c.b16 %v2842, %v2840
        %v4033 = vpack.c.b16 %v2843, %v2841
        %v4034 = vpack.c.b16 %v2846, %v2844
        %v4035 = vpack.c.b16 %v2847, %v2845
        %v4036 = vpack.c.b16 %v2850, %v2848
        %v4037 = vpack.c.b16 %v2851, %v2849
        %v4038 = vpack.c.b16 %v2854, %v2852
        %v4039 = vpack.c.b16 %v2855, %v2853
        %v4040 = vpack.c.b16 %v2858, %v2856
        %v4041 = vpack.c.b16 %v2859, %v2857
        %v4042 = vpack.c.b16 %v2862, %v2860
        %v4043 = vpack.c.b16 %v2863, %v2861
        %v4044 = vpack.c.b16 %v2866, %v2864
        %v4045 = vpack.c.b16 %v2867, %v2865
        %v4046 = vpack.c.b16 %v2870, %v2868
        %v4047 = vpack.c.b16 %v2871, %v2869
        %v4048 = vpack.c.b16 %v2874, %v2872
        %v4049 = vpack.c.b16 %v2875, %v2873
        %v4050 = vpack.c.b16 %v2878, %v2876
        %v4051 = vpack.c.b16 %v2879, %v2877
        %v4052 = vpack.c.b16 %v2882, %v2880
        %v4053 = vpack.c.b16 %v2883, %v2881
        %v4054 = vpack.c.b16 %v2886, %v2884
        %v4055 = vpack.c.b16 %v2887, %v2885
        %v4056 = vpack.c.b16 %v2890, %v2888
        %v4057 = vpack.c.b16 %v2891, %v2889
        %v4058 = vpack.c.b16 %v2894, %v2892
        %v4059 = vpack.c.b16 %v2895, %v2893
        %v4060 = vpack.c.b16 %v2898, %v2896
        %v4061 = vpack.c.b16 %v2899, %v2897
        %v4062 = vpack.c.b16 %v2902, %v2900
        %v4063 = vpack.c.b16 %v2903, %v2901
        %v4064 = vpack.c.b16 %v2906, %v2904
        %v4065 = vpack.c.b16 %v2907, %v2905
        %v4066 = vpack.c.b16 %v2910, %v2908
        %v4067 = vpack.c.b16 %v2911, %v2909
        %v4068 = vpack.c.b16 %v2914, %v2912
        %v4069 = vpack.c.b16 %v2915, %v2913
        %v4070 = vpack.c.b16 %v2918, %v2916
        %v4071 = vpack.c.b16 %v2919, %v2917
        %v4072 = vpack.c.b16 %v2922, %v2920
        %v4073 = vpack.c.b16 %v2923, %v2921
        %v4074 = vpack.c.b16 %v2926, %v2924
        %v4075 = vpack.c.b16 %v2927, %v2925
        %v4076 = vpack.c.b16 %v2930, %v2928
        %v4077 = vpack.c.b16 %v2931, %v2929
        %v4078 = vpack.c.b16 %v2934, %v2932
        %v4079 = vpack.c.b16 %v2935, %v2933
        %v4080 = vpack.c.b16 %v2938, %v2936
        %v4081 = vpack.c.b16 %v2939, %v2937
        %v4082 = vpack.c.b16 %v2942, %v2940
        %v4083 = vpack.c.b16 %v2943, %v2941
        %v4084 = vpack.c.b16 %v2946, %v2944
        %v4085 = vpack.c.b16 %v2947, %v2945
        %v4086 = vpack.c.b16 %v2950, %v2948
        %v4087 = vpack.c.b16 %v2951, %v2949
        %v4088 = vpack.c.b16 %v2954, %v2952
        %v4089 = vpack.c.b16 %v2955, %v2953
        %v4090 = vpack.c.b16 %v2958, %v2956
        %v4091 = vpack.c.b16 %v2959, %v2957
        %v4092 = vpack.c.b16 %v2962, %v2960
        %v4093 = vpack.c.b16 %v2963, %v2961
        %v4094 = vpack.c.b16 %v2966, %v2964
        %v4095 = vpack.c.b16 %v2967, %v2965
        %v4096 = vpack.c.b16 %v2970, %v2968
        %v4097 = vpack.c.b16 %v2971, %v2969
        %v4098 = vpack.c.b16 %v2974, %v2972
        %v4099 = vpack.c.b16 %v2975, %v2973
        %v4100 = vpack.c.b16 %v2978, %v2976
        %v4101 = vpack.c.b16 %v2979, %v2977
        %v4102 = vpack.c.b16 %v2982, %v2980
        %v4103 = vpack.c.b16 %v2983, %v2981
        %v4104 = vpack.c.b16 %v2986, %v2984
        %v4105 = vpack.c.b16 %v2987, %v2985
        %v4106 = vpack.c.b16 %v2990, %v2988
        %v4107 = vpack.c.b16 %v2991, %v2989
        %v4108 = vpack.c.b16 %v2994, %v2992
        %v4109 = vpack.c.b16 %v2995, %v2993
        %v4110 = vpack.c.b16 %v2998, %v2996
        %v4111 = vpack.c.b16 %v2999, %v2997
        %v4112 = vpack.c.b16 %v3002, %v3000
        %v4113 = vpack.c.b16 %v3003, %v3001
        %v4114 = vpack.c.b16 %v3006, %v3004
        %v4115 = vpack.c.b16 %v3007, %v3005
        %v4116 = vpack.c.b16 %v3010, %v3008
        %v4117 = vpack.c.b16 %v3011, %v3009
        %v4118 = vpack.c.b16 %v3014, %v3012
        %v4119 = vpack.c.b16 %v3015, %v3013
        %v4120 = vpack.c.b16 %v3018, %v3016
        %v4121 = vpack.c.b16 %v3019, %v3017
        %v4122 = vpack.c.b16 %v3022, %v3020
        %v4123 = vpack.c.b16 %v3023, %v3021
        %v4124 = vpack.c.b16 %v3026, %v3024
        %v4125 = vpack.c.b16 %v3027, %v3025
        %v4126 = vpack.c.b16 %v3030, %v3028
        %v4127 = vpack.c.b16 %v3031, %v3029
        %v4128 = vpack.c.b16 %v3034, %v3032
        %v4129 = vpack.c.b16 %v3035, %v3033
        %v4130 = vpack.c.b16 %v3038, %v3036
        %v4131 = vpack.c.b16 %v3039, %v3037
        %v4132 = vpack.c.b16 %v3042, %v3040
        %v4133 = vpack.c.b16 %v3043, %v3041
        %v4134 = vpack.c.b16 %v3046, %v3044
        %v4135 = vpack.c.b16 %v3047, %v3045
        %v4136 = vpack.c.b16 %v3050, %v3048
        %v4137 = vpack.c.b16 %v3051, %v3049
        %v4138 = vpack.c.b16 %v3054, %v3052
        %v4139 = vpack.c.b16 %v3055, %v3053
        %v4140 = vpack.c.b16 %v3058, %v3056
        %v4141 = vpack.c.b16 %v3059, %v3057
        %v4142 = vpack.c.b16 %v3062, %v3060
        %v4143 = vpack.c.b16 %v3063, %v3061
        %v4144 = vpack.c.b16 %v3066, %v3064
        %v4145 = vpack.c.b16 %v3067, %v3065
        %v4146 = vpack.c.b16 %v3070, %v3068
        %v4147 = vpack.c.b16 %v3071, %v3069
        %v4148 = vpack.c.b16 %v3074, %v3072
        %v4149 = vpack.c.b16 %v3075, %v3073
        %v4150 = vpack.c.b16 %v3078, %v3076
        %v4151 = vpack.c.b16 %v3079, %v3077
        %v4152 = vpack.c.b16 %v3082, %v3080
        %v4153 = vpack.c.b16 %v3083, %v3081
        %v4154 = vpack.c.b16 %v3086, %v3084
        %v4155 = vpack.c.b16 %v3087, %v3085
        %v4156 = vpack.c.b16 %v3090, %v3088
        %v4157 = vpack.c.b16 %v3091, %v3089
        %v4158 = vpack.c.b16 %v3094, %v3092
        %v4159 = vpack.c.b16 %v3095, %v3093
        %v4160 = vpack.c.b16 %v3098, %v3096
        %v4161 = vpack.c.b16 %v3099, %v3097
        %v4162 = vpack.c.b16 %v3102, %v3100
        %v4163 = vpack.c.b16 %v3103, %v3101
        %v4164 = vpack.c.b16 %v3106, %v3104
        %v4165 = vpack.c.b16 %v3107, %v3105
        %v4166 = vpack.c.b16 %v3110, %v3108
        %v4167 = vpack.c.b16 %v3111, %v3109
        %v4168 = vpack.c.b16 %v3114, %v3112
        %v4169 = vpack.c.b16 %v3115, %v3113
        %v4170 = vpack.c.b16 %v3118, %v3116
        %v4171 = vpack.c.b16 %v3119, %v3117
        %v4172 = vpack.c.b16 %v3122, %v3120
        %v4173 = vpack.c.b16 %v3123, %v3121
        %v4174 = vpack.c.b16 %v3126, %v3124
        %v4175 = vpack.c.b16 %v3127, %v3125
        %v4176 = vpack.c.b16 %v3130, %v3128
        %v4177 = vpack.c.b16 %v3131, %v3129
        %v4178 = vpack.c.b16 %v3134, %v3132
        %v4179 = vpack.c.b16 %v3135, %v3133
        %v4180 = vpack.c.b16 %v3138, %v3136
        %v4181 = vpack.c.b16 %v3139, %v3137
        %v4182 = vpack.c.b16 %v3142, %v3140
        %v4183 = vpack.c.b16 %v3143, %v3141
        %v4184 = vpack.c.b16 %v3146, %v3144
        %v4185 = vpack.c.b16 %v3147, %v3145
        %v4186 = vpack.c.b16 %v3150, %v3148
        %v4187 = vpack.c.b16 %v3151, %v3149
        %v4188 = vpack.c.b16 %v3154, %v3152
        %v4189 = vpack.c.b16 %v3155, %v3153
        %v4190 = vpack.c.b16 %v3158, %v3156
        %v4191 = vpack.c.b16 %v3159, %v3157
        %v4192 = vpack.c.b16 %v3162, %v3160
        %v4193 = vpack.c.b16 %v3163, %v3161
        %v4194 = vpack.c.b16 %v3166, %v3164
        %v4195 = vpack.c.b16 %v3167, %v3165
        %v4196 = vpack.c.b16 %v3170, %v3168
        %v4197 = vpack.c.b16 %v3171, %v3169
        %v4198 = vpack.c.b16 %v3174, %v3172
        %v4199 = vpack.c.b16 %v3175, %v3173
        %v4200 = vpack.c.b16 %v3178, %v3176
        %v4201 = vpack.c.b16 %v3179, %v3177
        %v4202 = vpack.c.b16 %v3182, %v3180
        %v4203 = vpack.c.b16 %v3183, %v3181
        %v4204 = vpack.c.b16 %v3186, %v3184
        %v4205 = vpack.c.b16 %v3187, %v3185
        %v4206 = vpack.c.b16 %v3190, %v3188
        %v4207 = vpack.c.b16 %v3191, %v3189
        %v4208 = vpack.c.b16 %v3194, %v3192
        %v4209 = vpack.c.b16 %v3195, %v3193
        %v4210 = vpack.c.b16 %v3198, %v3196
        %v4211 = vpack.c.b16 %v3199, %v3197
        %v4212 = vpack.c.b16 %v3202, %v3200
        %v4213 = vpack.c.b16 %v3203, %v3201
        %v4214 = vpack.c.b16 %v3206, %v3204
        %v4215 = vpack.c.b16 %v3207, %v3205
        %v4216 = vpack.c.b16 %v3210, %v3208
        %v4217 = vpack.c.b16 %v3211, %v3209
        %v4218 = vpack.c.b16 %v3214, %v3212
        %v4219 = vpack.c.b16 %v3215, %v3213
        %v4220 = vpack.c.b16 %v3218, %v3216
        %v4221 = vpack.c.b16 %v3219, %v3217
        %v4222 = vpack.c.b16 %v3222, %v3220
        %v4223 = vpack.c.b16 %v3223, %v3221
        %v4224 = vpack.c.b16 %v3226, %v3224
        %v4225 = vpack.c.b16 %v3227, %v3225
        %v4226 = vpack.c.b16 %v3230, %v3228
        %v4227 = vpack.c.b16 %v3231, %v3229
        %v4228 = vpack.c.b16 %v3234, %v3232
        %v4229 = vpack.c.b16 %v3235, %v3233
        %v4230 = vpack.c.b16 %v3238, %v3236
        %v4231 = vpack.c.b16 %v3239, %v3237
        %v4232 = vpack.c.b16 %v3242, %v3240
        %v4233 = vpack.c.b16 %v3243, %v3241
        %v4234 = vpack.c.b16 %v3246, %v3244
        %v4235 = vpack.c.b16 %v3247, %v3245
        %v4236 = vpack.c.b16 %v3250, %v3248
        %v4237 = vpack.c.b16 %v3251, %v3249
        %v4238 = vpack.c.b16 %v3254, %v3252
        %v4239 = vpack.c.b16 %v3255, %v3253
        %v4240 = vpack.c.b16 %v3258, %v3256
        %v4241 = vpack.c.b16 %v3259, %v3257
        %v4242 = vpack.c.b16 %v3262, %v3260
        %v4243 = vpack.c.b16 %v3263, %v3261
        %v4244 = vpack.c.b16 %v3266, %v3264
        %v4245 = vpack.c.b16 %v3267, %v3265
        %v4246 = vpack.c.b16 %v3270, %v3268
        %v4247 = vpack.c.b16 %v3271, %v3269
        %v4248 = vpack.c.b16 %v3274, %v3272
        %v4249 = vpack.c.b16 %v3275, %v3273
        %v4250 = vpack.c.b16 %v3278, %v3276
        %v4251 = vpack.c.b16 %v3279, %v3277
        %v4252 = vpack.c.b16 %v3282, %v3280
        %v4253 = vpack.c.b16 %v3283, %v3281
        %v4254 = vpack.c.b16 %v3286, %v3284
        %v4255 = vpack.c.b16 %v3287, %v3285
        %v4256 = vpack.c.b16 %v3290, %v3288
        %v4257 = vpack.c.b16 %v3291, %v3289
        %v4258 = vpack.c.b16 %v3294, %v3292
        %v4259 = vpack.c.b16 %v3295, %v3293
        %v4260 = vpack.c.b16 %v3298, %v3296
        %v4261 = vpack.c.b16 %v3299, %v3297
        %v4262 = vpack.c.b16 %v3302, %v3300
        %v4263 = vpack.c.b16 %v3303, %v3301
        %v4264 = vpack.c.b16 %v3306, %v3304
        %v4265 = vpack.c.b16 %v3307, %v3305
        %v4266 = vpack.c.b16 %v3310, %v3308
        %v4267 = vpack.c.b16 %v3311, %v3309
        %v4268 = vpack.c.b16 %v3314, %v3312
        %v4269 = vpack.c.b16 %v3315, %v3313
        %v4270 = vpack.c.b16 %v3318, %v3316
        %v4271 = vpack.c.b16 %v3319, %v3317
        %v4272 = vpack.c.b16 %v3322, %v3320
        %v4273 = vpack.c.b16 %v3323, %v3321
        %v4274 = vpack.c.b16 %v3326, %v3324
        %v4275 = vpack.c.b16 %v3327, %v3325
        %v4276 = vpack.c.b16 %v3330, %v3328
        %v4277 = vpack.c.b16 %v3331, %v3329
        %v4278 = vpack.c.b16 %v3334, %v3332
        %v4279 = vpack.c.b16 %v3335, %v3333
        %v4280 = vpack.c.b16 %v3338, %v3336
        %v4281 = vpack.c.b16 %v3339, %v3337
        %v4282 = vpack.c.b16 %v3342, %v3340
        %v4283 = vpack.c.b16 %v3343, %v3341
        %v4284 = vpack.c.b16 %v3346, %v3344
        %v4285 = vpack.c.b16 %v3347, %v3345
        %v4286 = vpack.c.b16 %v3350, %v3348
        %v4287 = vpack.c.b16 %v3351, %v3349
        %v4288 = vpack.c.b16 %v3354, %v3352
        %v4289 = vpack.c.b16 %v3355, %v3353
        %v4290 = vpack.c.b16 %v3358, %v3356
        %v4291 = vpack.c.b16 %v3359, %v3357
        %v4292 = vpack.c.b16 %v3362, %v3360
        %v4293 = vpack.c.b16 %v3363, %v3361
        %v4294 = vpack.c.b16 %v3366, %v3364
        %v4295 = vpack.c.b16 %v3367, %v3365
        %v4296 = vpack.c.b16 %v3370, %v3368
        %v4297 = vpack.c.b16 %v3371, %v3369
        %v4298 = vpack.c.b16 %v3374, %v3372
        %v4299 = vpack.c.b16 %v3375, %v3373
        %v4300 = vpack.c.b16 %v3378, %v3376
        %v4301 = vpack.c.b16 %v3379, %v3377
        %v4302 = vpack.c.b16 %v3382, %v3380
        %v4303 = vpack.c.b16 %v3383, %v3381
        %v4304 = vpack.c.b16 %v3386, %v3384
        %v4305 = vpack.c.b16 %v3387, %v3385
        %v4306 = vpack.c.b16 %v3390, %v3388
        %v4307 = vpack.c.b16 %v3391, %v3389
        %v4308 = vpack.c.b16 %v3394, %v3392
        %v4309 = vpack.c.b16 %v3395, %v3393
        %v4310 = vpack.c.b16 %v3398, %v3396
        %v4311 = vpack.c.b16 %v3399, %v3397
        %v4312 = vpack.c.b16 %v3402, %v3400
        %v4313 = vpack.c.b16 %v3403, %v3401
        %v4314 = vpack.c.b16 %v3406, %v3404
        %v4315 = vpack.c.b16 %v3407, %v3405
        %v4316 = vpack.c.b16 %v3410, %v3408
        %v4317 = vpack.c.b16 %v3411, %v3409
        %v4318 = vpack.c.b16 %v3414, %v3412
        %v4319 = vpack.c.b16 %v3415, %v3413
        %v4320 = vpack.c.b16 %v3418, %v3416
        %v4321 = vpack.c.b16 %v3419, %v3417
        %v4322 = vpack.c.b16 %v3422, %v3420
        %v4323 = vpack.c.b16 %v3423, %v3421
        %v4324 = vpack.c.b16 %v3426, %v3424
        %v4325 = vpack.c.b16 %v3427, %v3425
        %v4326 = vpack.c.b16 %v3430, %v3428
        %v4327 = vpack.c.b16 %v3431, %v3429
        %v4328 = vpack.c.b16 %v3434, %v3432
        %v4329 = vpack.c.b16 %v3435, %v3433
        %v4330 = vpack.c.b16 %v3438, %v3436
        %v4331 = vpack.c.b16 %v3439, %v3437
        %v4332 = vpack.c.b16 %v3442, %v3440
        %v4333 = vpack.c.b16 %v3443, %v3441
        %v4334 = vpack.c.b16 %v3446, %v3444
        %v4335 = vpack.c.b16 %v3447, %v3445
        %v4336 = vpack.c.b16 %v3450, %v3448
        %v4337 = vpack.c.b16 %v3451, %v3449
        %v4338 = vpack.c.b16 %v3454, %v3452
        %v4339 = vpack.c.b16 %v3455, %v3453
        %v4340 = vpack.c.b16 %v3458, %v3456
        %v4341 = vpack.c.b16 %v3459, %v3457
        %v4342 = vpack.c.b16 %v3462, %v3460
        %v4343 = vpack.c.b16 %v3463, %v3461
        %v4344 = vpack.c.b16 %v3466, %v3464
        %v4345 = vpack.c.b16 %v3467, %v3465
        %v4346 = vpack.c.b16 %v3470, %v3468
        %v4347 = vpack.c.b16 %v3471, %v3469
        %v4348 = vpack.c.b16 %v3474, %v3472
        %v4349 = vpack.c.b16 %v3475, %v3473
        %v4350 = vpack.c.b16 %v3478, %v3476
        %v4351 = vpack.c.b16 %v3479, %v3477
        %v4352 = vpack.c.b16 %v3482, %v3480
        %v4353 = vpack.c.b16 %v3483, %v3481
        %v4354 = vpack.c.b16 %v3486, %v3484
        %v4355 = vpack.c.b16 %v3487, %v3485
        %v4356 = vpack.c.b16 %v3490, %v3488
        %v4357 = vpack.c.b16 %v3491, %v3489
        %v4358 = vpack.c.b16 %v3494, %v3492
        %v4359 = vpack.c.b16 %v3495, %v3493
        %v4360 = vpack.c.b16 %v3498, %v3496
        %v4361 = vpack.c.b16 %v3499, %v3497
        %v4362 = vpack.c.b16 %v3502, %v3500
        %v4363 = vpack.c.b16 %v3503, %v3501
        %v4364 = vpack.c.b16 %v3506, %v3504
        %v4365 = vpack.c.b16 %v3507, %v3505
        %v4366 = vpack.c.b16 %v3510, %v3508
        %v4367 = vpack.c.b16 %v3511, %v3509
        %v4368 = vpack.c.b16 %v3514, %v3512
        %v4369 = vpack.c.b16 %v3515, %v3513
        %v4370 = vpack.c.b16 %v3518, %v3516
        %v4371 = vpack.c.b16 %v3519, %v3517
        %v4372 = vpack.c.b16 %v3522, %v3520
        %v4373 = vpack.c.b16 %v3523, %v3521
        %v4374 = vpack.c.b16 %v3526, %v3524
        %v4375 = vpack.c.b16 %v3527, %v3525
        %v4376 = vpack.c.b16 %v3530, %v3528
        %v4377 = vpack.c.b16 %v3531, %v3529
        %v4378 = vpack.c.b16 %v3534, %v3532
        %v4379 = vpack.c.b16 %v3535, %v3533
        %v4380 = vpack.c.b16 %v3538, %v3536
        %v4381 = vpack.c.b16 %v3539, %v3537
        %v4382 = vpack.c.b16 %v3542, %v3540
        %v4383 = vpack.c.b16 %v3543, %v3541
        %v4384 = vpack.c.b16 %v3546, %v3544
        %v4385 = vpack.c.b16 %v3547, %v3545
        %v4386 = vpack.c.b16 %v3550, %v3548
        %v4387 = vpack.c.b16 %v3551, %v3549
        %v4388 = vpack.c.b16 %v3554, %v3552
        %v4389 = vpack.c.b16 %v3555, %v3553
        %v4390 = vpack.c.b16 %v3558, %v3556
        %v4391 = vpack.c.b16 %v3559, %v3557
        %v4392 = vpack.c.b16 %v3562, %v3560
        %v4393 = vpack.c.b16 %v3563, %v3561
        %v4394 = vpack.c.b16 %v3566, %v3564
        %v4395 = vpack.c.b16 %v3567, %v3565
        %v4396 = vpack.c.b16 %v3570, %v3568
        %v4397 = vpack.c.b16 %v3571, %v3569
        %v4398 = vpack.c.b16 %v3574, %v3572
        %v4399 = vpack.c.b16 %v3575, %v3573
        %v4400 = vpack.c.b16 %v3578, %v3576
        %v4401 = vpack.c.b16 %v3579, %v3577
        %v4402 = vpack.c.b16 %v3582, %v3580
        %v4403 = vpack.c.b16 %v3583, %v3581
        %v4404 = vpack.c.b16 %v3586, %v3584
        %v4405 = vpack.c.b16 %v3587, %v3585
        %v4406 = vpack.c.b16 %v3590, %v3588
        %v4407 = vpack.c.b16 %v3591, %v3589
        %v4408 = vpack.c.b16 %v3594, %v3592
        %v4409 = vpack.c.b16 %v3595, %v3593
        %v4410 = vpack.c.b16 %v3598, %v3596
        %v4411 = vpack.c.b16 %v3599, %v3597
        %v4412 = vpack.c.b16 %v3602, %v3600
        %v4413 = vpack.c.b16 %v3603, %v3601
        %v4414 = vpack.c.b16 %v3606, %v3604
        %v4415 = vpack.c.b16 %v3607, %v3605
        %v4416 = vpack.c.b16 %v3610, %v3608
        %v4417 = vpack.c.b16 %v3611, %v3609
        %v4418 = vpack.c.b16 %v3614, %v3612
        %v4419 = vpack.c.b16 %v3615, %v3613
        %v4420 = vpack.c.b16 %v3618, %v3616
        %v4421 = vpack.c.b16 %v3619, %v3617
        %v4422 = vpack.c.b16 %v3622, %v3620
        %v4423 = vpack.c.b16 %v3623, %v3621
        %v4424 = vpack.c.b16 %v3626, %v3624
        %v4425 = vpack.c.b16 %v3627, %v3625
        %v4426 = vpack.c.b16 %v3630, %v3628
        %v4427 = vpack.c.b16 %v3631, %v3629
        %v4428 = vpack.c.b16 %v3634, %v3632
        %v4429 = vpack.c.b16 %v3635, %v3633
        %v4430 = vpack.c.b16 %v3638, %v3636
        %v4431 = vpack.c.b16 %v3639, %v3637
        %v4432 = vpack.c.b16 %v3642, %v3640
        %v4433 = vpack.c.b16 %v3643, %v3641
        %v4434 = vpack.c.b16 %v3646, %v3644
        %v4435 = vpack.c.b16 %v3647, %v3645
        %v4436 = vpack.c.b16 %v3650, %v3648
        %v4437 = vpack.c.b16 %v3651, %v3649
        %v4438 = vpack.c.b16 %v3654, %v3652
        %v4439 = vpack.c.b16 %v3655, %v3653
        %v4440 = vpack.c.b16 %v3658, %v3656
        %v4441 = vpack.c.b16 %v3659, %v3657
        %v4442 = vpack.c.b16 %v3662, %v3660
        %v4443 = vpack.c.b16 %v3663, %v3661
        %v4444 = vpack.c.b16 %v3666, %v3664
        %v4445 = vpack.c.b16 %v3667, %v3665
        %v4446 = vpack.c.b16 %v3670, %v3668
        %v4447 = vpack.c.b16 %v3671, %v3669
        %v4448 = vpack.c.b16 %v3674, %v3672
        %v4449 = vpack.c.b16 %v3675, %v3673
        %v4450 = vpack.c.b16 %v3678, %v3676
        %v4451 = vpack.c.b16 %v3679, %v3677
        %v4452 = vpack.c.b16 %v3682, %v3680
        %v4453 = vpack.c.b16 %v3683, %v3681
        %v4454 = vpack.c.b16 %v3686, %v3684
        %v4455 = vpack.c.b16 %v3687, %v3685
        %v4456 = vpack.c.b16 %v3690, %v3688
        %v4457 = vpack.c.b16 %v3691, %v3689
        %v4458 = vpack.c.b16 %v3694, %v3692
        %v4459 = vpack.c.b16 %v3695, %v3693
        %v4460 = vpack.c.b16 %v3698, %v3696
        %v4461 = vpack.c.b16 %v3699, %v3697
        %v4462 = vpack.c.b16 %v3702, %v3700
        %v4463 = vpack.c.b16 %v3703, %v3701
        %v4464 = vpack.c.b16 %v3706, %v3704
        %v4465 = vpack.c.b16 %v3707, %v3705
        %v4466 = vpack.c.b16 %v3710, %v3708
        %v4467 = vpack.c.b16 %v3711, %v3709
        %v4468 = vpack.c.b16 %v3714, %v3712
        %v4469 = vpack.c.b16 %v3715, %v3713
        %v4470 = vpack.c.b16 %v3718, %v3716
        %v4471 = vpack.c.b16 %v3719, %v3717
        %5224 = vmatprep.subr.bf16.mxu0 %v3721
        %5225 = vmatpush1.bf16.msra.mxu0 %v3720
        %5226 = vmatprep.subr.bf16.mxu0 %v3723
        %5227 = vmatpush1.bf16.msra.mxu0 %v3722
        %5228 = vmatprep.subr.bf16.mxu0 %v3725
        %5229 = vmatpush1.bf16.msra.mxu0 %v3724
        %5230 = vmatprep.subr.bf16.mxu0 %v3727
        %5231 = vmatpush1.bf16.msra.mxu0 %v3726
        %5232 = vmatprep.subr.bf16.mxu0 %v3729
        %5233 = vmatpush1.bf16.msra.mxu0 %v3728
        %5234 = vmatprep.subr.bf16.mxu0 %v3731
        %5235 = vmatpush1.bf16.msra.mxu0 %v3730
        %5236 = vmatprep.subr.bf16.mxu0 %v3733
        %5237 = vmatpush1.bf16.msra.mxu0 %v3732
        %5238 = vmatprep.subr.bf16.mxu0 %v3735
        %5239 = vmatpush1.bf16.msra.mxu0 %v3734
        %5240 = vmatprep.subr.bf16.mxu0 %v3737
        %5241 = vmatpush1.bf16.msra.mxu0 %v3736
        %5242 = vmatprep.subr.bf16.mxu0 %v3739
        %5243 = vmatpush1.bf16.msra.mxu0 %v3738
        %5244 = vmatprep.subr.bf16.mxu0 %v3741
        %5245 = vmatpush1.bf16.msra.mxu0 %v3740
        %5246 = vmatprep.subr.bf16.mxu0 %v3743
        %5247 = vmatpush1.bf16.msra.mxu0 %v3742
        %5248 = vmatprep.subr.bf16.mxu0 %v3745
        %5249 = vmatpush1.bf16.msra.mxu0 %v3744
        %5250 = vmatprep.subr.bf16.mxu0 %v3747
        %5251 = vmatpush1.bf16.msra.mxu0 %v3746
        %5252 = vmatprep.subr.bf16.mxu0 %v3749
        %5253 = vmatpush1.bf16.msra.mxu0 %v3748
        %5254 = vmatprep.subr.bf16.mxu0 %v3751
        %5255 = vmatpush1.bf16.msra.mxu0 %v3750
        %5256 = vmatprep.mubr.bf16.mxu0 %v1161
        %5257 = vmatmul.mubr.bf16.gmra.mrb[0].mxu0 %v1147
        %v5258 = vpop.f32.mrb[0].mxu0
        %v5259 = vadd.f32 0.0, %v5258
        %v5260 = vpop.f32.mrb[0].mxu0
        %v5261 = vadd.f32 0.0, %v5260
        %v5262 = vpop.f32.mrb[0].mxu0
        %v5263 = vpop.f32.mrb[0].mxu0
        %5264 = vdwg.mxu0
        %5265 = vmatprep.subr.bf16.mxu0 %v3753
        %5266 = vmatpush1.bf16.msra.mxu0 %v3752
        %5267 = vmatprep.subr.bf16.mxu0 %v3755
        %5268 = vmatpush1.bf16.msra.mxu0 %v3754
        %5269 = vmatprep.subr.bf16.mxu0 %v3757
        %5270 = vmatpush1.bf16.msra.mxu0 %v3756
        %5271 = vmatprep.subr.bf16.mxu0 %v3759
        %5272 = vmatpush1.bf16.msra.mxu0 %v3758
        %5273 = vmatprep.subr.bf16.mxu0 %v3761
        %5274 = vmatpush1.bf16.msra.mxu0 %v3760
        %5275 = vmatprep.subr.bf16.mxu0 %v3763
        %5276 = vmatpush1.bf16.msra.mxu0 %v3762
        %5277 = vmatprep.subr.bf16.mxu0 %v3765
        %5278 = vmatpush1.bf16.msra.mxu0 %v3764
        %5279 = vmatprep.subr.bf16.mxu0 %v3767
        %5280 = vmatpush1.bf16.msra.mxu0 %v3766
        %5281 = vmatprep.subr.bf16.mxu0 %v3769
        %5282 = vmatpush1.bf16.msra.mxu0 %v3768
        %5283 = vmatprep.subr.bf16.mxu0 %v3771
        %5284 = vmatpush1.bf16.msra.mxu0 %v3770
        %5285 = vmatprep.subr.bf16.mxu0 %v3773
        %5286 = vmatpush1.bf16.msra.mxu0 %v3772
        %5287 = vmatprep.subr.bf16.mxu0 %v3775
        %5288 = vmatpush1.bf16.msra.mxu0 %v3774
        %5289 = vmatprep.subr.bf16.mxu0 %v3777
        %5290 = vmatpush1.bf16.msra.mxu0 %v3776
        %5291 = vmatprep.subr.bf16.mxu0 %v3779
        %5292 = vmatpush1.bf16.msra.mxu0 %v3778
        %5293 = vmatprep.subr.bf16.mxu0 %v3781
        %5294 = vmatpush1.bf16.msra.mxu0 %v3780
        %5295 = vmatprep.subr.bf16.mxu0 %v3783
        %5296 = vmatpush1.bf16.msra.mxu0 %v3782
        %5297 = vmatprep.mubr.bf16.mxu0 %v1171
        %5298 = vmatmul.mubr.bf16.gmra.mrb[0].mxu0 %v1169
        %v5299 = vpop.f32.mrb[0].mxu0
        %v5300 = vadd.f32 %v5259, %v5299
        %v5301 = vpop.f32.mrb[0].mxu0
        %v5302 = vadd.f32 %v5261, %v5301
        %v5303 = vpop.f32.mrb[0].mxu0
        %v5304 = vpop.f32.mrb[0].mxu0
        %5305 = vdwg.mxu0
        %5306 = vmatprep.subr.bf16.mxu0 %v3785
        %5307 = vmatpush1.bf16.msra.mxu0 %v3784
        %5308 = vmatprep.subr.bf16.mxu0 %v3787
        %5309 = vmatpush1.bf16.msra.mxu0 %v3786
        %5310 = vmatprep.subr.bf16.mxu0 %v3789
        %5311 = vmatpush1.bf16.msra.mxu0 %v3788
        %5312 = vmatprep.subr.bf16.mxu0 %v3791
        %5313 = vmatpush1.bf16.msra.mxu0 %v3790
        %5314 = vmatprep.subr.bf16.mxu0 %v3793
        %5315 = vmatpush1.bf16.msra.mxu0 %v3792
        %5316 = vmatprep.subr.bf16.mxu0 %v3795
        %5317 = vmatpush1.bf16.msra.mxu0 %v3794
        %5318 = vmatprep.subr.bf16.mxu0 %v3797
        %5319 = vmatpush1.bf16.msra.mxu0 %v3796
        %5320 = vmatprep.subr.bf16.mxu0 %v3799
        %5321 = vmatpush1.bf16.msra.mxu0 %v3798
        %5322 = vmatprep.subr.bf16.mxu0 %v3801
        %5323 = vmatpush1.bf16.msra.mxu0 %v3800
        %5324 = vmatprep.subr.bf16.mxu0 %v3803
        %5325 = vmatpush1.bf16.msra.mxu0 %v3802
        %5326 = vmatprep.subr.bf16.mxu0 %v3805
        %5327 = vmatpush1.bf16.msra.mxu0 %v3804
        %5328 = vmatprep.subr.bf16.mxu0 %v3807
        %5329 = vmatpush1.bf16.msra.mxu0 %v3806
        %5330 = vmatprep.subr.bf16.mxu0 %v3809
        %5331 = vmatpush1.bf16.msra.mxu0 %v3808
        %5332 = vmatprep.subr.bf16.mxu0 %v3811
        %5333 = vmatpush1.bf16.msra.mxu0 %v3810
        %5334 = vmatprep.subr.bf16.mxu0 %v3813
        %5335 = vmatpush1.bf16.msra.mxu0 %v3812
        %5336 = vmatprep.subr.bf16.mxu0 %v3815
        %5337 = vmatpush1.bf16.msra.mxu0 %v3814
        %5338 = vmatprep.mubr.bf16.mxu0 %v1168
        %5339 = vmatmul.mubr.bf16.gmra.mrb[0].mxu0 %v1154
        %v5340 = vpop.f32.mrb[0].mxu0
        %v5341 = vadd.f32 %v5300, %v5340
        %v5342 = vpop.f32.mrb[0].mxu0
        %v5343 = vadd.f32 %v5302, %v5342
        %v5344 = vpop.f32.mrb[0].mxu0
        %v5345 = vpop.f32.mrb[0].mxu0
        %5346 = vdwg.mxu0
        %5347 = vmatprep.subr.bf16.mxu0 %v3817
        %5348 = vmatpush1.bf16.msra.mxu0 %v3816
        %5349 = vmatprep.subr.bf16.mxu0 %v3819
        %5350 = vmatpush1.bf16.msra.mxu0 %v3818
        %5351 = vmatprep.subr.bf16.mxu0 %v3821
        %5352 = vmatpush1.bf16.msra.mxu0 %v3820
        %5353 = vmatprep.subr.bf16.mxu0 %v3823
        %5354 = vmatpush1.bf16.msra.mxu0 %v3822
        %5355 = vmatprep.subr.bf16.mxu0 %v3825
        %5356 = vmatpush1.bf16.msra.mxu0 %v3824
        %5357 = vmatprep.subr.bf16.mxu0 %v3827
        %5358 = vmatpush1.bf16.msra.mxu0 %v3826
        %5359 = vmatprep.subr.bf16.mxu0 %v3829
        %5360 = vmatpush1.bf16.msra.mxu0 %v3828
        %5361 = vmatprep.subr.bf16.mxu0 %v3831
        %5362 = vmatpush1.bf16.msra.mxu0 %v3830
        %5363 = vmatprep.subr.bf16.mxu0 %v3833
        %5364 = vmatpush1.bf16.msra.mxu0 %v3832
        %5365 = vmatprep.subr.bf16.mxu0 %v3835
        %5366 = vmatpush1.bf16.msra.mxu0 %v3834
        %5367 = vmatprep.subr.bf16.mxu0 %v3837
        %5368 = vmatpush1.bf16.msra.mxu0 %v3836
        %5369 = vmatprep.subr.bf16.mxu0 %v3839
        %5370 = vmatpush1.bf16.msra.mxu0 %v3838
        %5371 = vmatprep.subr.bf16.mxu0 %v3841
        %5372 = vmatpush1.bf16.msra.mxu0 %v3840
        %5373 = vmatprep.subr.bf16.mxu0 %v3843
        %5374 = vmatpush1.bf16.msra.mxu0 %v3842
        %5375 = vmatprep.subr.bf16.mxu0 %v3845
        %5376 = vmatpush1.bf16.msra.mxu0 %v3844
        %5377 = vmatprep.subr.bf16.mxu0 %v3847
        %5378 = vmatpush1.bf16.msra.mxu0 %v3846
        %5379 = vmatprep.mubr.bf16.mxu0 %v1172
        %5380 = vmatmul.mubr.bf16.gmra.mrb[0].mxu0 %v1170
        %v5381 = vpop.f32.mrb[0].mxu0
        %v5382 = vadd.f32 %v5341, %v5381
        %v5383 = vpop.f32.mrb[0].mxu0
        %v5384 = vadd.f32 %v5343, %v5383
        %v5385 = vpop.f32.mrb[0].mxu0
        %v5386 = vpop.f32.mrb[0].mxu0
        %5387 = vdwg.mxu0
        %5388 = vmatprep.subr.bf16.mxu0 %v3849
        %5389 = vmatpush1.bf16.msra.mxu0 %v3848
        %5390 = vmatprep.subr.bf16.mxu0 %v3851
        %5391 = vmatpush1.bf16.msra.mxu0 %v3850
        %5392 = vmatprep.subr.bf16.mxu0 %v3853
        %5393 = vmatpush1.bf16.msra.mxu0 %v3852
        %5394 = vmatprep.subr.bf16.mxu0 %v3855
        %5395 = vmatpush1.bf16.msra.mxu0 %v3854
        %5396 = vmatprep.subr.bf16.mxu0 %v3857
        %5397 = vmatpush1.bf16.msra.mxu0 %v3856
        %5398 = vmatprep.subr.bf16.mxu0 %v3859
        %5399 = vmatpush1.bf16.msra.mxu0 %v3858
        %5400 = vmatprep.subr.bf16.mxu0 %v3861
        %5401 = vmatpush1.bf16.msra.mxu0 %v3860
        %5402 = vmatprep.subr.bf16.mxu0 %v3863
        %5403 = vmatpush1.bf16.msra.mxu0 %v3862
        %5404 = vmatprep.subr.bf16.mxu0 %v3865
        %5405 = vmatpush1.bf16.msra.mxu0 %v3864
        %5406 = vmatprep.subr.bf16.mxu0 %v3867
        %5407 = vmatpush1.bf16.msra.mxu0 %v3866
        %5408 = vmatprep.subr.bf16.mxu0 %v3869
        %5409 = vmatpush1.bf16.msra.mxu0 %v3868
        %5410 = vmatprep.subr.bf16.mxu0 %v3871
        %5411 = vmatpush1.bf16.msra.mxu0 %v3870
        %5412 = vmatprep.subr.bf16.mxu0 %v3873
        %5413 = vmatpush1.bf16.msra.mxu0 %v3872
        %5414 = vmatprep.subr.bf16.mxu0 %v3875
        %5415 = vmatpush1.bf16.msra.mxu0 %v3874
        %5416 = vmatprep.subr.bf16.mxu0 %v3877
        %5417 = vmatpush1.bf16.msra.mxu0 %v3876
        %5418 = vmatprep.subr.bf16.mxu0 %v3879
        %5419 = vmatpush1.bf16.msra.mxu0 %v3878
        %5420 = vmatprep.mubr.bf16.mxu0 %v1210
        %5421 = vmatmul.mubr.bf16.gmra.mrb[0].mxu0 %v1196
        %v5422 = vpop.f32.mrb[0].mxu0
        %v5423 = vadd.f32 %v5382, %v5422
        %v5424 = vpop.f32.mrb[0].mxu0
        %v5425 = vadd.f32 %v5384, %v5424
        %v5426 = vpop.f32.mrb[0].mxu0
        %v5427 = vpop.f32.mrb[0].mxu0
        %5428 = vdwg.mxu0
        %5429 = vmatprep.subr.bf16.mxu0 %v3881
        %5430 = vmatpush1.bf16.msra.mxu0 %v3880
        %5431 = vmatprep.subr.bf16.mxu0 %v3883
        %5432 = vmatpush1.bf16.msra.mxu0 %v3882
        %5433 = vmatprep.subr.bf16.mxu0 %v3885
        %5434 = vmatpush1.bf16.msra.mxu0 %v3884
        %5435 = vmatprep.subr.bf16.mxu0 %v3887
        %5436 = vmatpush1.bf16.msra.mxu0 %v3886
        %5437 = vmatprep.subr.bf16.mxu0 %v3889
        %5438 = vmatpush1.bf16.msra.mxu0 %v3888
        %5439 = vmatprep.subr.bf16.mxu0 %v3891
        %5440 = vmatpush1.bf16.msra.mxu0 %v3890
        %5441 = vmatprep.subr.bf16.mxu0 %v3893
        %5442 = vmatpush1.bf16.msra.mxu0 %v3892
        %5443 = vmatprep.subr.bf16.mxu0 %v3895
        %5444 = vmatpush1.bf16.msra.mxu0 %v3894
        %5445 = vmatprep.subr.bf16.mxu0 %v3897
        %5446 = vmatpush1.bf16.msra.mxu0 %v3896
        %5447 = vmatprep.subr.bf16.mxu0 %v3899
        %5448 = vmatpush1.bf16.msra.mxu0 %v3898
        %5449 = vmatprep.subr.bf16.mxu0 %v3901
        %5450 = vmatpush1.bf16.msra.mxu0 %v3900
        %5451 = vmatprep.subr.bf16.mxu0 %v3903
        %5452 = vmatpush1.bf16.msra.mxu0 %v3902
        %5453 = vmatprep.subr.bf16.mxu0 %v3905
        %5454 = vmatpush1.bf16.msra.mxu0 %v3904
        %5455 = vmatprep.subr.bf16.mxu0 %v3907
        %5456 = vmatpush1.bf16.msra.mxu0 %v3906
        %5457 = vmatprep.subr.bf16.mxu0 %v3909
        %5458 = vmatpush1.bf16.msra.mxu0 %v3908
        %5459 = vmatprep.subr.bf16.mxu0 %v3911
        %5460 = vmatpush1.bf16.msra.mxu0 %v3910
        %5461 = vmatprep.mubr.bf16.mxu0 %v1220
        %5462 = vmatmul.mubr.bf16.gmra.mrb[0].mxu0 %v1218
        %v5463 = vpop.f32.mrb[0].mxu0
        %v5464 = vadd.f32 %v5423, %v5463
        %v5465 = vpop.f32.mrb[0].mxu0
        %v5466 = vadd.f32 %v5425, %v5465
        %v5467 = vpop.f32.mrb[0].mxu0
        %v5468 = vpop.f32.mrb[0].mxu0
        %5469 = vdwg.mxu0
        %5470 = vmatprep.subr.bf16.mxu0 %v3913
        %5471 = vmatpush1.bf16.msra.mxu0 %v3912
        %5472 = vmatprep.subr.bf16.mxu0 %v3915
        %5473 = vmatpush1.bf16.msra.mxu0 %v3914
        %5474 = vmatprep.subr.bf16.mxu0 %v3917
        %5475 = vmatpush1.bf16.msra.mxu0 %v3916
        %5476 = vmatprep.subr.bf16.mxu0 %v3919
        %5477 = vmatpush1.bf16.msra.mxu0 %v3918
        %5478 = vmatprep.subr.bf16.mxu0 %v3921
        %5479 = vmatpush1.bf16.msra.mxu0 %v3920
        %5480 = vmatprep.subr.bf16.mxu0 %v3923
        %5481 = vmatpush1.bf16.msra.mxu0 %v3922
        %5482 = vmatprep.subr.bf16.mxu0 %v3925
        %5483 = vmatpush1.bf16.msra.mxu0 %v3924
        %5484 = vmatprep.subr.bf16.mxu0 %v3927
        %5485 = vmatpush1.bf16.msra.mxu0 %v3926
        %5486 = vmatprep.subr.bf16.mxu0 %v3929
        %5487 = vmatpush1.bf16.msra.mxu0 %v3928
        %5488 = vmatprep.subr.bf16.mxu0 %v3931
        %5489 = vmatpush1.bf16.msra.mxu0 %v3930
        %5490 = vmatprep.subr.bf16.mxu0 %v3933
        %5491 = vmatpush1.bf16.msra.mxu0 %v3932
        %5492 = vmatprep.subr.bf16.mxu0 %v3935
        %5493 = vmatpush1.bf16.msra.mxu0 %v3934
        %5494 = vmatprep.subr.bf16.mxu0 %v3937
        %5495 = vmatpush1.bf16.msra.mxu0 %v3936
        %5496 = vmatprep.subr.bf16.mxu0 %v3939
        %5497 = vmatpush1.bf16.msra.mxu0 %v3938
        %5498 = vmatprep.subr.bf16.mxu0 %v3941
        %5499 = vmatpush1.bf16.msra.mxu0 %v3940
        %5500 = vmatprep.subr.bf16.mxu0 %v3943
        %5501 = vmatpush1.bf16.msra.mxu0 %v3942
        %5502 = vmatprep.mubr.bf16.mxu0 %v1217
        %5503 = vmatmul.mubr.bf16.gmra.mrb[0].mxu0 %v1203
        %v5504 = vpop.f32.mrb[0].mxu0
        %v5505 = vadd.f32 %v5464, %v5504
        %v5506 = vpop.f32.mrb[0].mxu0
        %v5507 = vadd.f32 %v5466, %v5506
        %v5508 = vpop.f32.mrb[0].mxu0
        %v5509 = vpop.f32.mrb[0].mxu0
        %5510 = vdwg.mxu0
        %5511 = vmatprep.subr.bf16.mxu0 %v3945
        %5512 = vmatpush1.bf16.msra.mxu0 %v3944
        %5513 = vmatprep.subr.bf16.mxu0 %v3947
        %5514 = vmatpush1.bf16.msra.mxu0 %v3946
        %5515 = vmatprep.subr.bf16.mxu0 %v3949
        %5516 = vmatpush1.bf16.msra.mxu0 %v3948
        %5517 = vmatprep.subr.bf16.mxu0 %v3951
        %5518 = vmatpush1.bf16.msra.mxu0 %v3950
        %5519 = vmatprep.subr.bf16.mxu0 %v3953
        %5520 = vmatpush1.bf16.msra.mxu0 %v3952
        %5521 = vmatprep.subr.bf16.mxu0 %v3955
        %5522 = vmatpush1.bf16.msra.mxu0 %v3954
        %5523 = vmatprep.subr.bf16.mxu0 %v3957
        %5524 = vmatpush1.bf16.msra.mxu0 %v3956
        %5525 = vmatprep.subr.bf16.mxu0 %v3959
        %5526 = vmatpush1.bf16.msra.mxu0 %v3958
        %5527 = vmatprep.subr.bf16.mxu0 %v3961
        %5528 = vmatpush1.bf16.msra.mxu0 %v3960
        %5529 = vmatprep.subr.bf16.mxu0 %v3963
        %5530 = vmatpush1.bf16.msra.mxu0 %v3962
        %5531 = vmatprep.subr.bf16.mxu0 %v3965
        %5532 = vmatpush1.bf16.msra.mxu0 %v3964
        %5533 = vmatprep.subr.bf16.mxu0 %v3967
        %5534 = vmatpush1.bf16.msra.mxu0 %v3966
        %5535 = vmatprep.subr.bf16.mxu0 %v3969
        %5536 = vmatpush1.bf16.msra.mxu0 %v3968
        %5537 = vmatprep.subr.bf16.mxu0 %v3971
        %5538 = vmatpush1.bf16.msra.mxu0 %v3970
        %5539 = vmatprep.subr.bf16.mxu0 %v3973
        %5540 = vmatpush1.bf16.msra.mxu0 %v3972
        %5541 = vmatprep.subr.bf16.mxu0 %v3975
        %5542 = vmatpush1.bf16.msra.mxu0 %v3974
        %5543 = vmatprep.mubr.bf16.mxu0 %v1221
        %5544 = vmatmul.mubr.bf16.gmra.mrb[0].mxu0 %v1219
        %v5545 = vpop.f32.mrb[0].mxu0
        %v5546 = vadd.f32 %v5505, %v5545
        %v5547 = vpop.f32.mrb[0].mxu0
        %v5548 = vadd.f32 %v5507, %v5547
        %v5549 = vpop.f32.mrb[0].mxu0
        %v5550 = vpop.f32.mrb[0].mxu0
        %5551 = vdwg.mxu0
        %5552 = vmatprep.subr.bf16.mxu0 %v3977
        %5553 = vmatpush1.bf16.msra.mxu0 %v3976
        %5554 = vmatprep.subr.bf16.mxu0 %v3979
        %5555 = vmatpush1.bf16.msra.mxu0 %v3978
        %5556 = vmatprep.subr.bf16.mxu0 %v3981
        %5557 = vmatpush1.bf16.msra.mxu0 %v3980
        %5558 = vmatprep.subr.bf16.mxu0 %v3983
        %5559 = vmatpush1.bf16.msra.mxu0 %v3982
        %5560 = vmatprep.subr.bf16.mxu0 %v3985
        %5561 = vmatpush1.bf16.msra.mxu0 %v3984
        %5562 = vmatprep.subr.bf16.mxu0 %v3987
        %5563 = vmatpush1.bf16.msra.mxu0 %v3986
        %5564 = vmatprep.subr.bf16.mxu0 %v3989
        %5565 = vmatpush1.bf16.msra.mxu0 %v3988
        %5566 = vmatprep.subr.bf16.mxu0 %v3991
        %5567 = vmatpush1.bf16.msra.mxu0 %v3990
        %5568 = vmatprep.subr.bf16.mxu0 %v3993
        %5569 = vmatpush1.bf16.msra.mxu0 %v3992
        %5570 = vmatprep.subr.bf16.mxu0 %v3995
        %5571 = vmatpush1.bf16.msra.mxu0 %v3994
        %5572 = vmatprep.subr.bf16.mxu0 %v3997
        %5573 = vmatpush1.bf16.msra.mxu0 %v3996
        %5574 = vmatprep.subr.bf16.mxu0 %v3999
        %5575 = vmatpush1.bf16.msra.mxu0 %v3998
        %5576 = vmatprep.subr.bf16.mxu0 %v4001
        %5577 = vmatpush1.bf16.msra.mxu0 %v4000
        %5578 = vmatprep.subr.bf16.mxu0 %v4003
        %5579 = vmatpush1.bf16.msra.mxu0 %v4002
        %5580 = vmatprep.subr.bf16.mxu0 %v4005
        %5581 = vmatpush1.bf16.msra.mxu0 %v4004
        %5582 = vmatprep.subr.bf16.mxu0 %v4007
        %5583 = vmatpush1.bf16.msra.mxu0 %v4006
        %5584 = vmatprep.mubr.bf16.mxu0 %v1259
        %5585 = vmatmul.mubr.bf16.gmra.mrb[0].mxu0 %v1245
        %v5586 = vpop.f32.mrb[0].mxu0
        %v5587 = vadd.f32 %v5546, %v5586
        %v5588 = vpop.f32.mrb[0].mxu0
        %v5589 = vadd.f32 %v5548, %v5588
        %v5590 = vpop.f32.mrb[0].mxu0
        %v5591 = vpop.f32.mrb[0].mxu0
        %5592 = vdwg.mxu0
        %5593 = vmatprep.subr.bf16.mxu0 %v4009
        %5594 = vmatpush1.bf16.msra.mxu0 %v4008
        %5595 = vmatprep.subr.bf16.mxu0 %v4011
        %5596 = vmatpush1.bf16.msra.mxu0 %v4010
        %5597 = vmatprep.subr.bf16.mxu0 %v4013
        %5598 = vmatpush1.bf16.msra.mxu0 %v4012
        %5599 = vmatprep.subr.bf16.mxu0 %v4015
        %5600 = vmatpush1.bf16.msra.mxu0 %v4014
        %5601 = vmatprep.subr.bf16.mxu0 %v4017
        %5602 = vmatpush1.bf16.msra.mxu0 %v4016
        %5603 = vmatprep.subr.bf16.mxu0 %v4019
        %5604 = vmatpush1.bf16.msra.mxu0 %v4018
        %5605 = vmatprep.subr.bf16.mxu0 %v4021
        %5606 = vmatpush1.bf16.msra.mxu0 %v4020
        %5607 = vmatprep.subr.bf16.mxu0 %v4023
        %5608 = vmatpush1.bf16.msra.mxu0 %v4022
        %5609 = vmatprep.subr.bf16.mxu0 %v4025
        %5610 = vmatpush1.bf16.msra.mxu0 %v4024
        %5611 = vmatprep.subr.bf16.mxu0 %v4027
        %5612 = vmatpush1.bf16.msra.mxu0 %v4026
        %5613 = vmatprep.subr.bf16.mxu0 %v4029
        %5614 = vmatpush1.bf16.msra.mxu0 %v4028
        %5615 = vmatprep.subr.bf16.mxu0 %v4031
        %5616 = vmatpush1.bf16.msra.mxu0 %v4030
        %5617 = vmatprep.subr.bf16.mxu0 %v4033
        %5618 = vmatpush1.bf16.msra.mxu0 %v4032
        %5619 = vmatprep.subr.bf16.mxu0 %v4035
        %5620 = vmatpush1.bf16.msra.mxu0 %v4034
        %5621 = vmatprep.subr.bf16.mxu0 %v4037
        %5622 = vmatpush1.bf16.msra.mxu0 %v4036
        %5623 = vmatprep.subr.bf16.mxu0 %v4039
        %5624 = vmatpush1.bf16.msra.mxu0 %v4038
        %5625 = vmatprep.mubr.bf16.mxu0 %v1269
        %5626 = vmatmul.mubr.bf16.gmra.mrb[0].mxu0 %v1267
        %v5627 = vpop.f32.mrb[0].mxu0
        %v5628 = vadd.f32 %v5587, %v5627
        %v5629 = vpop.f32.mrb[0].mxu0
        %v5630 = vadd.f32 %v5589, %v5629
        %v5631 = vpop.f32.mrb[0].mxu0
        %v5632 = vpop.f32.mrb[0].mxu0
        %5633 = vdwg.mxu0
        %5634 = vmatprep.subr.bf16.mxu0 %v4041
        %5635 = vmatpush1.bf16.msra.mxu0 %v4040
        %5636 = vmatprep.subr.bf16.mxu0 %v4043
        %5637 = vmatpush1.bf16.msra.mxu0 %v4042
        %5638 = vmatprep.subr.bf16.mxu0 %v4045
        %5639 = vmatpush1.bf16.msra.mxu0 %v4044
        %5640 = vmatprep.subr.bf16.mxu0 %v4047
        %5641 = vmatpush1.bf16.msra.mxu0 %v4046
        %5642 = vmatprep.subr.bf16.mxu0 %v4049
        %5643 = vmatpush1.bf16.msra.mxu0 %v4048
        %5644 = vmatprep.subr.bf16.mxu0 %v4051
        %5645 = vmatpush1.bf16.msra.mxu0 %v4050
        %5646 = vmatprep.subr.bf16.mxu0 %v4053
        %5647 = vmatpush1.bf16.msra.mxu0 %v4052
        %5648 = vmatprep.subr.bf16.mxu0 %v4055
        %5649 = vmatpush1.bf16.msra.mxu0 %v4054
        %5650 = vmatprep.subr.bf16.mxu0 %v4057
        %5651 = vmatpush1.bf16.msra.mxu0 %v4056
        %5652 = vmatprep.subr.bf16.mxu0 %v4059
        %5653 = vmatpush1.bf16.msra.mxu0 %v4058
        %5654 = vmatprep.subr.bf16.mxu0 %v4061
        %5655 = vmatpush1.bf16.msra.mxu0 %v4060
        %5656 = vmatprep.subr.bf16.mxu0 %v4063
        %5657 = vmatpush1.bf16.msra.mxu0 %v4062
        %5658 = vmatprep.subr.bf16.mxu0 %v4065
        %5659 = vmatpush1.bf16.msra.mxu0 %v4064
        %5660 = vmatprep.subr.bf16.mxu0 %v4067
        %5661 = vmatpush1.bf16.msra.mxu0 %v4066
        %5662 = vmatprep.subr.bf16.mxu0 %v4069
        %5663 = vmatpush1.bf16.msra.mxu0 %v4068
        %5664 = vmatprep.subr.bf16.mxu0 %v4071
        %5665 = vmatpush1.bf16.msra.mxu0 %v4070
        %5666 = vmatprep.mubr.bf16.mxu0 %v1266
        %5667 = vmatmul.mubr.bf16.gmra.mrb[0].mxu0 %v1252
        %v5668 = vpop.f32.mrb[0].mxu0
        %v5669 = vadd.f32 %v5628, %v5668
        %v5670 = vpop.f32.mrb[0].mxu0
        %v5671 = vadd.f32 %v5630, %v5670
        %v5672 = vpop.f32.mrb[0].mxu0
        %v5673 = vpop.f32.mrb[0].mxu0
        %5674 = vdwg.mxu0
        %5675 = vmatprep.subr.bf16.mxu0 %v4073
        %5676 = vmatpush1.bf16.msra.mxu0 %v4072
        %5677 = vmatprep.subr.bf16.mxu0 %v4075
        %5678 = vmatpush1.bf16.msra.mxu0 %v4074
        %5679 = vmatprep.subr.bf16.mxu0 %v4077
        %5680 = vmatpush1.bf16.msra.mxu0 %v4076
        %5681 = vmatprep.subr.bf16.mxu0 %v4079
        %5682 = vmatpush1.bf16.msra.mxu0 %v4078
        %5683 = vmatprep.subr.bf16.mxu0 %v4081
        %5684 = vmatpush1.bf16.msra.mxu0 %v4080
        %5685 = vmatprep.subr.bf16.mxu0 %v4083
        %5686 = vmatpush1.bf16.msra.mxu0 %v4082
        %5687 = vmatprep.subr.bf16.mxu0 %v4085
        %5688 = vmatpush1.bf16.msra.mxu0 %v4084
        %5689 = vmatprep.subr.bf16.mxu0 %v4087
        %5690 = vmatpush1.bf16.msra.mxu0 %v4086
        %5691 = vmatprep.subr.bf16.mxu0 %v4089
        %5692 = vmatpush1.bf16.msra.mxu0 %v4088
        %5693 = vmatprep.subr.bf16.mxu0 %v4091
        %5694 = vmatpush1.bf16.msra.mxu0 %v4090
        %5695 = vmatprep.subr.bf16.mxu0 %v4093
        %5696 = vmatpush1.bf16.msra.mxu0 %v4092
        %5697 = vmatprep.subr.bf16.mxu0 %v4095
        %5698 = vmatpush1.bf16.msra.mxu0 %v4094
        %5699 = vmatprep.subr.bf16.mxu0 %v4097
        %5700 = vmatpush1.bf16.msra.mxu0 %v4096
        %5701 = vmatprep.subr.bf16.mxu0 %v4099
        %5702 = vmatpush1.bf16.msra.mxu0 %v4098
        %5703 = vmatprep.subr.bf16.mxu0 %v4101
        %5704 = vmatpush1.bf16.msra.mxu0 %v4100
        %5705 = vmatprep.subr.bf16.mxu0 %v4103
        %5706 = vmatpush1.bf16.msra.mxu0 %v4102
        %5707 = vmatprep.mubr.bf16.mxu0 %v1270
        %5708 = vmatmul.mubr.bf16.gmra.mrb[0].mxu0 %v1268
        %v5709 = vpop.f32.mrb[0].mxu0
        %v5710 = vadd.f32 %v5669, %v5709
        %v5711 = vpop.f32.mrb[0].mxu0
        %v5712 = vadd.f32 %v5671, %v5711
        %v5713 = vpop.f32.mrb[0].mxu0
        %v5714 = vpop.f32.mrb[0].mxu0
        %5715 = vdwg.mxu0
        %5716 = vmatprep.subr.bf16.mxu0 %v4105
        %5717 = vmatpush1.bf16.msra.mxu0 %v4104
        %5718 = vmatprep.subr.bf16.mxu0 %v4107
        %5719 = vmatpush1.bf16.msra.mxu0 %v4106
        %5720 = vmatprep.subr.bf16.mxu0 %v4109
        %5721 = vmatpush1.bf16.msra.mxu0 %v4108
        %5722 = vmatprep.subr.bf16.mxu0 %v4111
        %5723 = vmatpush1.bf16.msra.mxu0 %v4110
        %5724 = vmatprep.subr.bf16.mxu0 %v4113
        %5725 = vmatpush1.bf16.msra.mxu0 %v4112
        %5726 = vmatprep.subr.bf16.mxu0 %v4115
        %5727 = vmatpush1.bf16.msra.mxu0 %v4114
        %5728 = vmatprep.subr.bf16.mxu0 %v4117
        %5729 = vmatpush1.bf16.msra.mxu0 %v4116
        %5730 = vmatprep.subr.bf16.mxu0 %v4119
        %5731 = vmatpush1.bf16.msra.mxu0 %v4118
        %5732 = vmatprep.subr.bf16.mxu0 %v4121
        %5733 = vmatpush1.bf16.msra.mxu0 %v4120
        %5734 = vmatprep.subr.bf16.mxu0 %v4123
        %5735 = vmatpush1.bf16.msra.mxu0 %v4122
        %5736 = vmatprep.subr.bf16.mxu0 %v4125
        %5737 = vmatpush1.bf16.msra.mxu0 %v4124
        %5738 = vmatprep.subr.bf16.mxu0 %v4127
        %5739 = vmatpush1.bf16.msra.mxu0 %v4126
        %5740 = vmatprep.subr.bf16.mxu0 %v4129
        %5741 = vmatpush1.bf16.msra.mxu0 %v4128
        %5742 = vmatprep.subr.bf16.mxu0 %v4131
        %5743 = vmatpush1.bf16.msra.mxu0 %v4130
        %5744 = vmatprep.subr.bf16.mxu0 %v4133
        %5745 = vmatpush1.bf16.msra.mxu0 %v4132
        %5746 = vmatprep.subr.bf16.mxu0 %v4135
        %5747 = vmatpush1.bf16.msra.mxu0 %v4134
        %5748 = vmatprep.mubr.bf16.mxu0 %v1308
        %5749 = vmatmul.mubr.bf16.gmra.mrb[0].mxu0 %v1294
        %v5750 = vpop.f32.mrb[0].mxu0
        %v5751 = vadd.f32 %v5710, %v5750
        %v5752 = vpop.f32.mrb[0].mxu0
        %v5753 = vadd.f32 %v5712, %v5752
        %v5754 = vpop.f32.mrb[0].mxu0
        %v5755 = vpop.f32.mrb[0].mxu0
        %5756 = vdwg.mxu0
        %5757 = vmatprep.subr.bf16.mxu0 %v4137
        %5758 = vmatpush1.bf16.msra.mxu0 %v4136
        %5759 = vmatprep.subr.bf16.mxu0 %v4139
        %5760 = vmatpush1.bf16.msra.mxu0 %v4138
        %5761 = vmatprep.subr.bf16.mxu0 %v4141
        %5762 = vmatpush1.bf16.msra.mxu0 %v4140
        %5763 = vmatprep.subr.bf16.mxu0 %v4143
        %5764 = vmatpush1.bf16.msra.mxu0 %v4142
        %5765 = vmatprep.subr.bf16.mxu0 %v4145
        %5766 = vmatpush1.bf16.msra.mxu0 %v4144
        %5767 = vmatprep.subr.bf16.mxu0 %v4147
        %5768 = vmatpush1.bf16.msra.mxu0 %v4146
        %5769 = vmatprep.subr.bf16.mxu0 %v4149
        %5770 = vmatpush1.bf16.msra.mxu0 %v4148
        %5771 = vmatprep.subr.bf16.mxu0 %v4151
        %5772 = vmatpush1.bf16.msra.mxu0 %v4150
        %5773 = vmatprep.subr.bf16.mxu0 %v4153
        %5774 = vmatpush1.bf16.msra.mxu0 %v4152
        %5775 = vmatprep.subr.bf16.mxu0 %v4155
        %5776 = vmatpush1.bf16.msra.mxu0 %v4154
        %5777 = vmatprep.subr.bf16.mxu0 %v4157
        %5778 = vmatpush1.bf16.msra.mxu0 %v4156
        %5779 = vmatprep.subr.bf16.mxu0 %v4159
        %5780 = vmatpush1.bf16.msra.mxu0 %v4158
        %5781 = vmatprep.subr.bf16.mxu0 %v4161
        %5782 = vmatpush1.bf16.msra.mxu0 %v4160
        %5783 = vmatprep.subr.bf16.mxu0 %v4163
        %5784 = vmatpush1.bf16.msra.mxu0 %v4162
        %5785 = vmatprep.subr.bf16.mxu0 %v4165
        %5786 = vmatpush1.bf16.msra.mxu0 %v4164
        %5787 = vmatprep.subr.bf16.mxu0 %v4167
        %5788 = vmatpush1.bf16.msra.mxu0 %v4166
        %5789 = vmatprep.mubr.bf16.mxu0 %v1318
        %5790 = vmatmul.mubr.bf16.gmra.mrb[0].mxu0 %v1316
        %v5791 = vpop.f32.mrb[0].mxu0
        %v5792 = vadd.f32 %v5751, %v5791
        %v5793 = vpop.f32.mrb[0].mxu0
        %v5794 = vadd.f32 %v5753, %v5793
        %v5795 = vpop.f32.mrb[0].mxu0
        %v5796 = vpop.f32.mrb[0].mxu0
        %5797 = vdwg.mxu0
        %5798 = vmatprep.subr.bf16.mxu0 %v4169
        %5799 = vmatpush1.bf16.msra.mxu0 %v4168
        %5800 = vmatprep.subr.bf16.mxu0 %v4171
        %5801 = vmatpush1.bf16.msra.mxu0 %v4170
        %5802 = vmatprep.subr.bf16.mxu0 %v4173
        %5803 = vmatpush1.bf16.msra.mxu0 %v4172
        %5804 = vmatprep.subr.bf16.mxu0 %v4175
        %5805 = vmatpush1.bf16.msra.mxu0 %v4174
        %5806 = vmatprep.subr.bf16.mxu0 %v4177
        %5807 = vmatpush1.bf16.msra.mxu0 %v4176
        %5808 = vmatprep.subr.bf16.mxu0 %v4179
        %5809 = vmatpush1.bf16.msra.mxu0 %v4178
        %5810 = vmatprep.subr.bf16.mxu0 %v4181
        %5811 = vmatpush1.bf16.msra.mxu0 %v4180
        %5812 = vmatprep.subr.bf16.mxu0 %v4183
        %5813 = vmatpush1.bf16.msra.mxu0 %v4182
        %5814 = vmatprep.subr.bf16.mxu0 %v4185
        %5815 = vmatpush1.bf16.msra.mxu0 %v4184
        %5816 = vmatprep.subr.bf16.mxu0 %v4187
        %5817 = vmatpush1.bf16.msra.mxu0 %v4186
        %5818 = vmatprep.subr.bf16.mxu0 %v4189
        %5819 = vmatpush1.bf16.msra.mxu0 %v4188
        %5820 = vmatprep.subr.bf16.mxu0 %v4191
        %5821 = vmatpush1.bf16.msra.mxu0 %v4190
        %5822 = vmatprep.subr.bf16.mxu0 %v4193
        %5823 = vmatpush1.bf16.msra.mxu0 %v4192
        %5824 = vmatprep.subr.bf16.mxu0 %v4195
        %5825 = vmatpush1.bf16.msra.mxu0 %v4194
        %5826 = vmatprep.subr.bf16.mxu0 %v4197
        %5827 = vmatpush1.bf16.msra.mxu0 %v4196
        %5828 = vmatprep.subr.bf16.mxu0 %v4199
        %5829 = vmatpush1.bf16.msra.mxu0 %v4198
        %5830 = vmatprep.mubr.bf16.mxu0 %v1315
        %5831 = vmatmul.mubr.bf16.gmra.mrb[0].mxu0 %v1301
        %v5832 = vpop.f32.mrb[0].mxu0
        %v5833 = vadd.f32 %v5792, %v5832
        %v5834 = vpop.f32.mrb[0].mxu0
        %v5835 = vadd.f32 %v5794, %v5834
        %v5836 = vpop.f32.mrb[0].mxu0
        %v5837 = vpop.f32.mrb[0].mxu0
        %5838 = vdwg.mxu0
        %5839 = vmatprep.subr.bf16.mxu0 %v4201
        %5840 = vmatpush1.bf16.msra.mxu0 %v4200
        %5841 = vmatprep.subr.bf16.mxu0 %v4203
        %5842 = vmatpush1.bf16.msra.mxu0 %v4202
        %5843 = vmatprep.subr.bf16.mxu0 %v4205
        %5844 = vmatpush1.bf16.msra.mxu0 %v4204
        %5845 = vmatprep.subr.bf16.mxu0 %v4207
        %5846 = vmatpush1.bf16.msra.mxu0 %v4206
        %5847 = vmatprep.subr.bf16.mxu0 %v4209
        %5848 = vmatpush1.bf16.msra.mxu0 %v4208
        %5849 = vmatprep.subr.bf16.mxu0 %v4211
        %5850 = vmatpush1.bf16.msra.mxu0 %v4210
        %5851 = vmatprep.subr.bf16.mxu0 %v4213
        %5852 = vmatpush1.bf16.msra.mxu0 %v4212
        %5853 = vmatprep.subr.bf16.mxu0 %v4215
        %5854 = vmatpush1.bf16.msra.mxu0 %v4214
        %5855 = vmatprep.subr.bf16.mxu0 %v4217
        %5856 = vmatpush1.bf16.msra.mxu0 %v4216
        %5857 = vmatprep.subr.bf16.mxu0 %v4219
        %5858 = vmatpush1.bf16.msra.mxu0 %v4218
        %5859 = vmatprep.subr.bf16.mxu0 %v4221
        %5860 = vmatpush1.bf16.msra.mxu0 %v4220
        %5861 = vmatprep.subr.bf16.mxu0 %v4223
        %5862 = vmatpush1.bf16.msra.mxu0 %v4222
        %5863 = vmatprep.subr.bf16.mxu0 %v4225
        %5864 = vmatpush1.bf16.msra.mxu0 %v4224
        %5865 = vmatprep.subr.bf16.mxu0 %v4227
        %5866 = vmatpush1.bf16.msra.mxu0 %v4226
        %5867 = vmatprep.subr.bf16.mxu0 %v4229
        %5868 = vmatpush1.bf16.msra.mxu0 %v4228
        %5869 = vmatprep.subr.bf16.mxu0 %v4231
        %5870 = vmatpush1.bf16.msra.mxu0 %v4230
        %5871 = vmatprep.mubr.bf16.mxu0 %v1319
        %5872 = vmatmul.mubr.bf16.gmra.mrb[0].mxu0 %v1317
        %v5873 = vpop.f32.mrb[0].mxu0
        %v5874 = vadd.f32 %v5833, %v5873
        %v5875 = vpop.f32.mrb[0].mxu0
        %v5876 = vadd.f32 %v5835, %v5875
        %v5877 = vpop.f32.mrb[0].mxu0
        %v5878 = vpop.f32.mrb[0].mxu0
        %5879 = vdwg.mxu0
        %5880 = vmatprep.subr.bf16.mxu0 %v4233
        %5881 = vmatpush1.bf16.msra.mxu0 %v4232
        %5882 = vmatprep.subr.bf16.mxu0 %v4235
        %5883 = vmatpush1.bf16.msra.mxu0 %v4234
        %5884 = vmatprep.subr.bf16.mxu0 %v4237
        %5885 = vmatpush1.bf16.msra.mxu0 %v4236
        %5886 = vmatprep.subr.bf16.mxu0 %v4239
        %5887 = vmatpush1.bf16.msra.mxu0 %v4238
        %5888 = vmatprep.subr.bf16.mxu0 %v4241
        %5889 = vmatpush1.bf16.msra.mxu0 %v4240
        %5890 = vmatprep.subr.bf16.mxu0 %v4243
        %5891 = vmatpush1.bf16.msra.mxu0 %v4242
        %5892 = vmatprep.subr.bf16.mxu0 %v4245
        %5893 = vmatpush1.bf16.msra.mxu0 %v4244
        %5894 = vmatprep.subr.bf16.mxu0 %v4247
        %5895 = vmatpush1.bf16.msra.mxu0 %v4246
        %5896 = vmatprep.subr.bf16.mxu0 %v4249
        %5897 = vmatpush1.bf16.msra.mxu0 %v4248
        %5898 = vmatprep.subr.bf16.mxu0 %v4251
        %5899 = vmatpush1.bf16.msra.mxu0 %v4250
        %5900 = vmatprep.subr.bf16.mxu0 %v4253
        %5901 = vmatpush1.bf16.msra.mxu0 %v4252
        %5902 = vmatprep.subr.bf16.mxu0 %v4255
        %5903 = vmatpush1.bf16.msra.mxu0 %v4254
        %5904 = vmatprep.subr.bf16.mxu0 %v4257
        %5905 = vmatpush1.bf16.msra.mxu0 %v4256
        %5906 = vmatprep.subr.bf16.mxu0 %v4259
        %5907 = vmatpush1.bf16.msra.mxu0 %v4258
        %5908 = vmatprep.subr.bf16.mxu0 %v4261
        %5909 = vmatpush1.bf16.msra.mxu0 %v4260
        %5910 = vmatprep.subr.bf16.mxu0 %v4263
        %5911 = vmatpush1.bf16.msra.mxu0 %v4262
        %5912 = vmatprep.mubr.bf16.mxu0 %v1357
        %5913 = vmatmul.mubr.bf16.gmra.mrb[0].mxu0 %v1343
        %v5914 = vpop.f32.mrb[0].mxu0
        %v5915 = vadd.f32 %v5874, %v5914
        %v5916 = vpop.f32.mrb[0].mxu0
        %v5917 = vadd.f32 %v5876, %v5916
        %v5918 = vpop.f32.mrb[0].mxu0
        %v5919 = vpop.f32.mrb[0].mxu0
        %5920 = vdwg.mxu0
        %5921 = vmatprep.subr.bf16.mxu0 %v4265
        %5922 = vmatpush1.bf16.msra.mxu0 %v4264
        %5923 = vmatprep.subr.bf16.mxu0 %v4267
        %5924 = vmatpush1.bf16.msra.mxu0 %v4266
        %5925 = vmatprep.subr.bf16.mxu0 %v4269
        %5926 = vmatpush1.bf16.msra.mxu0 %v4268
        %5927 = vmatprep.subr.bf16.mxu0 %v4271
        %5928 = vmatpush1.bf16.msra.mxu0 %v4270
        %5929 = vmatprep.subr.bf16.mxu0 %v4273
        %5930 = vmatpush1.bf16.msra.mxu0 %v4272
        %5931 = vmatprep.subr.bf16.mxu0 %v4275
        %5932 = vmatpush1.bf16.msra.mxu0 %v4274
        %5933 = vmatprep.subr.bf16.mxu0 %v4277
        %5934 = vmatpush1.bf16.msra.mxu0 %v4276
        %5935 = vmatprep.subr.bf16.mxu0 %v4279
        %5936 = vmatpush1.bf16.msra.mxu0 %v4278
        %5937 = vmatprep.subr.bf16.mxu0 %v4281
        %5938 = vmatpush1.bf16.msra.mxu0 %v4280
        %5939 = vmatprep.subr.bf16.mxu0 %v4283
        %5940 = vmatpush1.bf16.msra.mxu0 %v4282
        %5941 = vmatprep.subr.bf16.mxu0 %v4285
        %5942 = vmatpush1.bf16.msra.mxu0 %v4284
        %5943 = vmatprep.subr.bf16.mxu0 %v4287
        %5944 = vmatpush1.bf16.msra.mxu0 %v4286
        %5945 = vmatprep.subr.bf16.mxu0 %v4289
        %5946 = vmatpush1.bf16.msra.mxu0 %v4288
        %5947 = vmatprep.subr.bf16.mxu0 %v4291
        %5948 = vmatpush1.bf16.msra.mxu0 %v4290
        %5949 = vmatprep.subr.bf16.mxu0 %v4293
        %5950 = vmatpush1.bf16.msra.mxu0 %v4292
        %5951 = vmatprep.subr.bf16.mxu0 %v4295
        %5952 = vmatpush1.bf16.msra.mxu0 %v4294
        %5953 = vmatprep.mubr.bf16.mxu0 %v1367
        %5954 = vmatmul.mubr.bf16.gmra.mrb[0].mxu0 %v1365
        %v5955 = vpop.f32.mrb[0].mxu0
        %v5956 = vadd.f32 %v5915, %v5955
        %v5957 = vpop.f32.mrb[0].mxu0
        %v5958 = vadd.f32 %v5917, %v5957
        %v5959 = vpop.f32.mrb[0].mxu0
        %v5960 = vpop.f32.mrb[0].mxu0
        %5961 = vdwg.mxu0
        %5962 = vmatprep.subr.bf16.mxu0 %v4297
        %5963 = vmatpush1.bf16.msra.mxu0 %v4296
        %5964 = vmatprep.subr.bf16.mxu0 %v4299
        %5965 = vmatpush1.bf16.msra.mxu0 %v4298
        %5966 = vmatprep.subr.bf16.mxu0 %v4301
        %5967 = vmatpush1.bf16.msra.mxu0 %v4300
        %5968 = vmatprep.subr.bf16.mxu0 %v4303
        %5969 = vmatpush1.bf16.msra.mxu0 %v4302
        %5970 = vmatprep.subr.bf16.mxu0 %v4305
        %5971 = vmatpush1.bf16.msra.mxu0 %v4304
        %5972 = vmatprep.subr.bf16.mxu0 %v4307
        %5973 = vmatpush1.bf16.msra.mxu0 %v4306
        %5974 = vmatprep.subr.bf16.mxu0 %v4309
        %5975 = vmatpush1.bf16.msra.mxu0 %v4308
        %5976 = vmatprep.subr.bf16.mxu0 %v4311
        %5977 = vmatpush1.bf16.msra.mxu0 %v4310
        %5978 = vmatprep.subr.bf16.mxu0 %v4313
        %5979 = vmatpush1.bf16.msra.mxu0 %v4312
        %5980 = vmatprep.subr.bf16.mxu0 %v4315
        %5981 = vmatpush1.bf16.msra.mxu0 %v4314
        %5982 = vmatprep.subr.bf16.mxu0 %v4317
        %5983 = vmatpush1.bf16.msra.mxu0 %v4316
        %5984 = vmatprep.subr.bf16.mxu0 %v4319
        %5985 = vmatpush1.bf16.msra.mxu0 %v4318
        %5986 = vmatprep.subr.bf16.mxu0 %v4321
        %5987 = vmatpush1.bf16.msra.mxu0 %v4320
        %5988 = vmatprep.subr.bf16.mxu0 %v4323
        %5989 = vmatpush1.bf16.msra.mxu0 %v4322
        %5990 = vmatprep.subr.bf16.mxu0 %v4325
        %5991 = vmatpush1.bf16.msra.mxu0 %v4324
        %5992 = vmatprep.subr.bf16.mxu0 %v4327
        %5993 = vmatpush1.bf16.msra.mxu0 %v4326
        %5994 = vmatprep.mubr.bf16.mxu0 %v1364
        %5995 = vmatmul.mubr.bf16.gmra.mrb[0].mxu0 %v1350
        %v5996 = vpop.f32.mrb[0].mxu0
        %v5997 = vadd.f32 %v5956, %v5996
        %v5998 = vpop.f32.mrb[0].mxu0
        %v5999 = vadd.f32 %v5958, %v5998
        %v6000 = vpop.f32.mrb[0].mxu0
        %v6001 = vpop.f32.mrb[0].mxu0
        %6002 = vdwg.mxu0
        %6003 = vmatprep.subr.bf16.mxu0 %v4329
        %6004 = vmatpush1.bf16.msra.mxu0 %v4328
        %6005 = vmatprep.subr.bf16.mxu0 %v4331
        %6006 = vmatpush1.bf16.msra.mxu0 %v4330
        %6007 = vmatprep.subr.bf16.mxu0 %v4333
        %6008 = vmatpush1.bf16.msra.mxu0 %v4332
        %6009 = vmatprep.subr.bf16.mxu0 %v4335
        %6010 = vmatpush1.bf16.msra.mxu0 %v4334
        %6011 = vmatprep.subr.bf16.mxu0 %v4337
        %6012 = vmatpush1.bf16.msra.mxu0 %v4336
        %6013 = vmatprep.subr.bf16.mxu0 %v4339
        %6014 = vmatpush1.bf16.msra.mxu0 %v4338
        %6015 = vmatprep.subr.bf16.mxu0 %v4341
        %6016 = vmatpush1.bf16.msra.mxu0 %v4340
        %6017 = vmatprep.subr.bf16.mxu0 %v4343
        %6018 = vmatpush1.bf16.msra.mxu0 %v4342
        %6019 = vmatprep.subr.bf16.mxu0 %v4345
        %6020 = vmatpush1.bf16.msra.mxu0 %v4344
        %6021 = vmatprep.subr.bf16.mxu0 %v4347
        %6022 = vmatpush1.bf16.msra.mxu0 %v4346
        %6023 = vmatprep.subr.bf16.mxu0 %v4349
        %6024 = vmatpush1.bf16.msra.mxu0 %v4348
        %6025 = vmatprep.subr.bf16.mxu0 %v4351
        %6026 = vmatpush1.bf16.msra.mxu0 %v4350
        %6027 = vmatprep.subr.bf16.mxu0 %v4353
        %6028 = vmatpush1.bf16.msra.mxu0 %v4352
        %6029 = vmatprep.subr.bf16.mxu0 %v4355
        %6030 = vmatpush1.bf16.msra.mxu0 %v4354
        %6031 = vmatprep.subr.bf16.mxu0 %v4357
        %6032 = vmatpush1.bf16.msra.mxu0 %v4356
        %6033 = vmatprep.subr.bf16.mxu0 %v4359
        %6034 = vmatpush1.bf16.msra.mxu0 %v4358
        %6035 = vmatprep.mubr.bf16.mxu0 %v1368
        %6036 = vmatmul.mubr.bf16.gmra.mrb[0].mxu0 %v1366
        %v6037 = vpop.f32.mrb[0].mxu0
        %v6038 = vadd.f32 %v5997, %v6037
        %v6039 = vpop.f32.mrb[0].mxu0
        %v6040 = vadd.f32 %v5999, %v6039
        %v6041 = vpop.f32.mrb[0].mxu0
        %v6042 = vpop.f32.mrb[0].mxu0
        %6043 = vdwg.mxu0
        %6044 = vmatprep.subr.bf16.mxu0 %v4361
        %6045 = vmatpush1.bf16.msra.mxu0 %v4360
        %6046 = vmatprep.subr.bf16.mxu0 %v4363
        %6047 = vmatpush1.bf16.msra.mxu0 %v4362
        %6048 = vmatprep.subr.bf16.mxu0 %v4365
        %6049 = vmatpush1.bf16.msra.mxu0 %v4364
        %6050 = vmatprep.subr.bf16.mxu0 %v4367
        %6051 = vmatpush1.bf16.msra.mxu0 %v4366
        %6052 = vmatprep.subr.bf16.mxu0 %v4369
        %6053 = vmatpush1.bf16.msra.mxu0 %v4368
        %6054 = vmatprep.subr.bf16.mxu0 %v4371
        %6055 = vmatpush1.bf16.msra.mxu0 %v4370
        %6056 = vmatprep.subr.bf16.mxu0 %v4373
        %6057 = vmatpush1.bf16.msra.mxu0 %v4372
        %6058 = vmatprep.subr.bf16.mxu0 %v4375
        %6059 = vmatpush1.bf16.msra.mxu0 %v4374
        %6060 = vmatprep.subr.bf16.mxu0 %v4377
        %6061 = vmatpush1.bf16.msra.mxu0 %v4376
        %6062 = vmatprep.subr.bf16.mxu0 %v4379
        %6063 = vmatpush1.bf16.msra.mxu0 %v4378
        %6064 = vmatprep.subr.bf16.mxu0 %v4381
        %6065 = vmatpush1.bf16.msra.mxu0 %v4380
        %6066 = vmatprep.subr.bf16.mxu0 %v4383
        %6067 = vmatpush1.bf16.msra.mxu0 %v4382
        %6068 = vmatprep.subr.bf16.mxu0 %v4385
        %6069 = vmatpush1.bf16.msra.mxu0 %v4384
        %6070 = vmatprep.subr.bf16.mxu0 %v4387
        %6071 = vmatpush1.bf16.msra.mxu0 %v4386
        %6072 = vmatprep.subr.bf16.mxu0 %v4389
        %6073 = vmatpush1.bf16.msra.mxu0 %v4388
        %6074 = vmatprep.subr.bf16.mxu0 %v4391
        %6075 = vmatpush1.bf16.msra.mxu0 %v4390
        %6076 = vmatprep.mubr.bf16.mxu0 %v1406
        %6077 = vmatmul.mubr.bf16.gmra.mrb[0].mxu0 %v1392
        %v6078 = vpop.f32.mrb[0].mxu0
        %v6079 = vadd.f32 %v6038, %v6078
        %v6080 = vpop.f32.mrb[0].mxu0
        %v6081 = vadd.f32 %v6040, %v6080
        %v6082 = vpop.f32.mrb[0].mxu0
        %v6083 = vpop.f32.mrb[0].mxu0
        %6084 = vdwg.mxu0
        %6085 = vmatprep.subr.bf16.mxu0 %v4393
        %6086 = vmatpush1.bf16.msra.mxu0 %v4392
        %6087 = vmatprep.subr.bf16.mxu0 %v4395
        %6088 = vmatpush1.bf16.msra.mxu0 %v4394
        %6089 = vmatprep.subr.bf16.mxu0 %v4397
        %6090 = vmatpush1.bf16.msra.mxu0 %v4396
        %6091 = vmatprep.subr.bf16.mxu0 %v4399
        %6092 = vmatpush1.bf16.msra.mxu0 %v4398
        %6093 = vmatprep.subr.bf16.mxu0 %v4401
        %6094 = vmatpush1.bf16.msra.mxu0 %v4400
        %6095 = vmatprep.subr.bf16.mxu0 %v4403
        %6096 = vmatpush1.bf16.msra.mxu0 %v4402
        %6097 = vmatprep.subr.bf16.mxu0 %v4405
        %6098 = vmatpush1.bf16.msra.mxu0 %v4404
        %6099 = vmatprep.subr.bf16.mxu0 %v4407
        %6100 = vmatpush1.bf16.msra.mxu0 %v4406
        %6101 = vmatprep.subr.bf16.mxu0 %v4409
        %6102 = vmatpush1.bf16.msra.mxu0 %v4408
        %6103 = vmatprep.subr.bf16.mxu0 %v4411
        %6104 = vmatpush1.bf16.msra.mxu0 %v4410
        %6105 = vmatprep.subr.bf16.mxu0 %v4413
        %6106 = vmatpush1.bf16.msra.mxu0 %v4412
        %6107 = vmatprep.subr.bf16.mxu0 %v4415
        %6108 = vmatpush1.bf16.msra.mxu0 %v4414
        %6109 = vmatprep.subr.bf16.mxu0 %v4417
        %6110 = vmatpush1.bf16.msra.mxu0 %v4416
        %6111 = vmatprep.subr.bf16.mxu0 %v4419
        %6112 = vmatpush1.bf16.msra.mxu0 %v4418
        %6113 = vmatprep.subr.bf16.mxu0 %v4421
        %6114 = vmatpush1.bf16.msra.mxu0 %v4420
        %6115 = vmatprep.subr.bf16.mxu0 %v4423
        %6116 = vmatpush1.bf16.msra.mxu0 %v4422
        %6117 = vmatprep.mubr.bf16.mxu0 %v1416
        %6118 = vmatmul.mubr.bf16.gmra.mrb[0].mxu0 %v1414
        %v6119 = vpop.f32.mrb[0].mxu0
        %v6120 = vadd.f32 %v6079, %v6119
        %v6121 = vpop.f32.mrb[0].mxu0
        %v6122 = vadd.f32 %v6081, %v6121
        %v6123 = vpop.f32.mrb[0].mxu0
        %v6124 = vpop.f32.mrb[0].mxu0
        %6125 = vdwg.mxu0
        %6126 = vmatprep.subr.bf16.mxu0 %v4425
        %6127 = vmatpush1.bf16.msra.mxu0 %v4424
        %6128 = vmatprep.subr.bf16.mxu0 %v4427
        %6129 = vmatpush1.bf16.msra.mxu0 %v4426
        %6130 = vmatprep.subr.bf16.mxu0 %v4429
        %6131 = vmatpush1.bf16.msra.mxu0 %v4428
        %6132 = vmatprep.subr.bf16.mxu0 %v4431
        %6133 = vmatpush1.bf16.msra.mxu0 %v4430
        %6134 = vmatprep.subr.bf16.mxu0 %v4433
        %6135 = vmatpush1.bf16.msra.mxu0 %v4432
        %6136 = vmatprep.subr.bf16.mxu0 %v4435
        %6137 = vmatpush1.bf16.msra.mxu0 %v4434
        %6138 = vmatprep.subr.bf16.mxu0 %v4437
        %6139 = vmatpush1.bf16.msra.mxu0 %v4436
        %6140 = vmatprep.subr.bf16.mxu0 %v4439
        %6141 = vmatpush1.bf16.msra.mxu0 %v4438
        %6142 = vmatprep.subr.bf16.mxu0 %v4441
        %6143 = vmatpush1.bf16.msra.mxu0 %v4440
        %6144 = vmatprep.subr.bf16.mxu0 %v4443
        %6145 = vmatpush1.bf16.msra.mxu0 %v4442
        %6146 = vmatprep.subr.bf16.mxu0 %v4445
        %6147 = vmatpush1.bf16.msra.mxu0 %v4444
        %6148 = vmatprep.subr.bf16.mxu0 %v4447
        %6149 = vmatpush1.bf16.msra.mxu0 %v4446
        %6150 = vmatprep.subr.bf16.mxu0 %v4449
        %6151 = vmatpush1.bf16.msra.mxu0 %v4448
        %6152 = vmatprep.subr.bf16.mxu0 %v4451
        %6153 = vmatpush1.bf16.msra.mxu0 %v4450
        %6154 = vmatprep.subr.bf16.mxu0 %v4453
        %6155 = vmatpush1.bf16.msra.mxu0 %v4452
        %6156 = vmatprep.subr.bf16.mxu0 %v4455
        %6157 = vmatpush1.bf16.msra.mxu0 %v4454
        %6158 = vmatprep.mubr.bf16.mxu0 %v1413
        %6159 = vmatmul.mubr.bf16.gmra.mrb[0].mxu0 %v1399
        %v6160 = vpop.f32.mrb[0].mxu0
        %v6161 = vadd.f32 %v6120, %v6160
        %v6162 = vpop.f32.mrb[0].mxu0
        %v6163 = vadd.f32 %v6122, %v6162
        %v6164 = vpop.f32.mrb[0].mxu0
        %v6165 = vpop.f32.mrb[0].mxu0
        %6166 = vdwg.mxu0
        %6167 = vmatprep.subr.bf16.mxu0 %v4457
        %6168 = vmatpush1.bf16.msra.mxu0 %v4456
        %6169 = vmatprep.subr.bf16.mxu0 %v4459
        %6170 = vmatpush1.bf16.msra.mxu0 %v4458
        %6171 = vmatprep.subr.bf16.mxu0 %v4461
        %6172 = vmatpush1.bf16.msra.mxu0 %v4460
        %6173 = vmatprep.subr.bf16.mxu0 %v4463
        %6174 = vmatpush1.bf16.msra.mxu0 %v4462
        %6175 = vmatprep.subr.bf16.mxu0 %v4465
        %6176 = vmatpush1.bf16.msra.mxu0 %v4464
        %6177 = vmatprep.subr.bf16.mxu0 %v4467
        %6178 = vmatpush1.bf16.msra.mxu0 %v4466
        %6179 = vmatprep.subr.bf16.mxu0 %v4469
        %6180 = vmatpush1.bf16.msra.mxu0 %v4468
        %6181 = vmatprep.subr.bf16.mxu0 %v4471
        %6182 = vmatpush1.bf16.msra.mxu0 %v4470
        %6183 = vmatprep.subr.bf16.mxu0 0
        %6184 = vmatpush1.bf16.msra.mxu0 0
        %6185 = vmatprep.subr.bf16.mxu0 0
        %6186 = vmatpush1.bf16.msra.mxu0 0
        %6187 = vmatprep.subr.bf16.mxu0 0
        %6188 = vmatpush1.bf16.msra.mxu0 0
        %6189 = vmatprep.subr.bf16.mxu0 0
        %6190 = vmatpush1.bf16.msra.mxu0 0
        %6191 = vmatprep.subr.bf16.mxu0 0
        %6192 = vmatpush1.bf16.msra.mxu0 0
        %6193 = vmatprep.subr.bf16.mxu0 0
        %6194 = vmatpush1.bf16.msra.mxu0 0
        %6195 = vmatprep.subr.bf16.mxu0 0
        %6196 = vmatpush1.bf16.msra.mxu0 0
        %6197 = vmatprep.subr.bf16.mxu0 0
        %6198 = vmatpush1.bf16.msra.mxu0 0
        %6199 = vmatprep.mubr.bf16.mxu0 0
        %6200 = vmatmul.mubr.bf16.gmra.mrb[0].mxu0 %v1415
        %v6201 = vpop.f32.mrb[0].mxu0
        %v6202 = vadd.f32 %v6161, %v6201
        %v6203 = vpop.f32.mrb[0].mxu0
        %v6204 = vadd.f32 %v6163, %v6203
        %v6205 = vpop.f32.mrb[0].mxu0
        %v6206 = vpop.f32.mrb[0].mxu0
        %6207 = vdwg.mxu0
        %v6210 = vcombine.low %v6202, %v6204
        %v6212 = vunpack.c.l.s4 1983009808
        %v6213 = vunpack.c.0.s8 %v6212
        %v6214 = vlaneseq
        %v6215 = vshrl.u32 %v6214, 7
        %v6216 = vsub.s32 %v6213, %v6215
        %v6217 = vrot.slane %v6210, %v6216
        %v6219 = vadd.f32 %v359, %v6217
        %6220 = vst [vmem:[#allocation2] sm:$0xf] %v6219
        %p6221 = scmp.eq.s32.totalorder %s27, 4
        // Predicated region
        $region57: #{lenet_forward.1} parent=39 // pred_check
          %p6222 = pneg %p6221
        $region58: #{lenet_forward.1} parent=39 // pred_check_branch
          %6224 = sbr.rel (%p6222) target = $region60
        $region59: #{lenet_forward.1} parent=39 // pred_region
          %v6225 = vld [vmem:[#allocation2] sm:$0xf]
          %v6226 = vld [vmem:[%s292] sm:$0x3]
          %v6228 = vlaneseq
          %v6229 = vshrl.u32 %v6228, 7
          %v6230 = vsub.s32 0, %v6229
          %v6231 = vrot.slane %v6226, %v6230
          %v6232 = vlaneseq
          %v6233 = vshrl.u32 %v6232, 7
          %v6234 = vsub.s32 1, %v6233
          %v6235 = vrot.slane %v6226, %v6234
          %v6236 = vcombine.low %v6231, %v6235
          %v6238 = vunpack.c.l.s4 1983009808
          %v6239 = vunpack.c.0.s8 %v6238
          %v6240 = vlaneseq
          %v6241 = vshrl.u32 %v6240, 7
          %v6242 = vsub.s32 %v6239, %v6241
          %v6243 = vrot.slane %v6236, %v6242
          %v6245 = vadd.f32 %v6225, %v6243
          %v6246 = vmax.f32 %v6245, 0.0
          %v6247 = vld [vmem:[%s347] sm:$0xff]
          %v6248 = vld [vmem:[%s347 + $0x8] sm:$0xff]
          %v6249 = vld [vmem:[%s347 + $0x10] sm:$0xff]
          %v6250 = vld [vmem:[%s347 + $0x18] sm:$0xff]
          %v6251 = vld [vmem:[%s347 + $0x20] sm:$0xff]
          %v6252 = vld [vmem:[%s347 + $0x28] sm:$0xff]
          %v6253 = vld [vmem:[%s347 + $0x30] sm:$0xff]
          %v6254 = vld [vmem:[%s347 + $0x38] sm:$0xff]
          %v6255 = vld [vmem:[%s347 + $0x40] sm:$0xff]
          %v6256 = vld [vmem:[%s347 + $0x48] sm:$0xff]
          %v6257 = vld [vmem:[%s347 + $0x50] sm:$0xff]
          %v6258 = vld [vmem:[%s347 + $0x58] sm:$0xff]
          %v6259 = vld [vmem:[%s347 + $0x60] sm:$0xff]
          %v6260 = vld [vmem:[%s347 + $0x68] sm:$0xff]
          %v6261 = vld [vmem:[%s347 + $0x70] sm:$0xff]
          %v6262 = vld [vmem:[%s347 + $0x78] sm:$0xff]
          %v6263 = vld [vmem:[%s347 + $0x80] sm:$0xff]
          %v6264 = vld [vmem:[%s347 + $0x88] sm:$0xff]
          %v6265 = vld [vmem:[%s347 + $0x90] sm:$0xff]
          %v6266 = vld [vmem:[%s347 + $0x98] sm:$0xff]
          %v6267 = vld [vmem:[%s347 + $0xa0] sm:$0xff]
          %v6268 = vld [vmem:[%s347 + $0xa8] sm:$0xff]
          %v6269 = vld [vmem:[%s347 + $0xb0] sm:$0xff]
          %v6270 = vld [vmem:[%s347 + $0xb8] sm:$0xff]
          %v6271 = vld [vmem:[%s347 + $0xc0] sm:$0xff]
          %v6272 = vld [vmem:[%s347 + $0xc8] sm:$0xff]
          %v6273 = vld [vmem:[%s347 + $0xd0] sm:$0xff]
          %v6274 = vld [vmem:[%s347 + $0xd8] sm:$0xff]
          %v6275 = vld [vmem:[%s347 + $0xe0] sm:$0xff]
          %v6276 = vld [vmem:[%s347 + $0xe8] sm:$0xff]
          %v6277 = vld [vmem:[%s347 + $0xf0] sm:$0xff]
          %v6278 = vld [vmem:[%s347 + $0xf8] sm:$0xff]
          %v6279 = vld [vmem:[#allocation7] sm:$0x1]
          %p6280 = scmp.eq.s32.totalorder %s26, 0
          %s6281 = scalar_select %p6280, 1, 0
          %s6282 = scvt.s32.f32 %s6281
          %v6283 = vstv %s6282
          %v6284 = vmul.f32 %v6279, %v6283
          %v6286 = vlaneseq
          %v6287 = vshrl.u32 %v6286, 7
          %v6288 = vsub.s32 0, %v6287
          %v6289 = vrot.slane %v6284, %v6288
          %v6293 = vunpack.c.l.s4 1983009808
          %v6294 = vunpack.c.0.s8 %v6293
          %v6295 = vlaneseq
          %v6296 = vshrl.u32 %v6295, 7
          %v6297 = vsub.s32 %v6294, %v6296
          %v6298 = vrot.slane %v6246, %v6297
          %v6299 = vcombine.high %v6298, %v6298
          %6302 = vmatprep.subr.mxu0 0.0
          %6303 = vmatpush1.msra.mxu0 %v6247
          %6304 = vmatprep.subr.mxu0 0.0
          %6305 = vmatpush1.msra.mxu0 %v6248
          %6306 = vmatprep.subr.mxu0 0.0
          %6307 = vmatpush1.msra.mxu0 %v6249
          %6308 = vmatprep.subr.mxu0 0.0
          %6309 = vmatpush1.msra.mxu0 %v6250
          %6310 = vmatprep.subr.mxu0 0.0
          %6311 = vmatpush1.msra.mxu0 %v6251
          %6312 = vmatprep.subr.mxu0 0.0
          %6313 = vmatpush1.msra.mxu0 %v6252
          %6314 = vmatprep.subr.mxu0 0.0
          %6315 = vmatpush1.msra.mxu0 %v6253
          %6316 = vmatprep.subr.mxu0 0.0
          %6317 = vmatpush1.msra.mxu0 %v6254
          %6318 = vmatprep.subr.mxu0 0.0
          %6319 = vmatpush1.msra.mxu0 %v6255
          %6320 = vmatprep.subr.mxu0 0.0
          %6321 = vmatpush1.msra.mxu0 %v6256
          %6322 = vmatprep.subr.mxu0 0.0
          %6323 = vmatpush1.msra.mxu0 %v6257
          %6324 = vmatprep.subr.mxu0 0.0
          %6325 = vmatpush1.msra.mxu0 %v6258
          %6326 = vmatprep.subr.mxu0 0.0
          %6327 = vmatpush1.msra.mxu0 %v6259
          %6328 = vmatprep.subr.mxu0 0.0
          %6329 = vmatpush1.msra.mxu0 %v6260
          %6330 = vmatprep.subr.mxu0 0.0
          %6331 = vmatpush1.msra.mxu0 %v6261
          %6332 = vmatprep.subr.mxu0 0.0
          %6333 = vmatpush1.msra.mxu0 %v6262
          %6334 = vmatprep.subr.mxu0 0.0
          %6335 = vmatpush1.msra.mxu0 %v6263
          %6336 = vmatprep.subr.mxu0 0.0
          %6337 = vmatpush1.msra.mxu0 %v6264
          %6338 = vmatprep.subr.mxu0 0.0
          %6339 = vmatpush1.msra.mxu0 %v6265
          %6340 = vmatprep.subr.mxu0 0.0
          %6341 = vmatpush1.msra.mxu0 %v6266
          %6342 = vmatprep.subr.mxu0 0.0
          %6343 = vmatpush1.msra.mxu0 %v6267
          %6344 = vmatprep.subr.mxu0 0.0
          %6345 = vmatpush1.msra.mxu0 %v6268
          %6346 = vmatprep.subr.mxu0 0.0
          %6347 = vmatpush1.msra.mxu0 %v6269
          %6348 = vmatprep.subr.mxu0 0.0
          %6349 = vmatpush1.msra.mxu0 %v6270
          %6350 = vmatprep.subr.mxu0 0.0
          %6351 = vmatpush1.msra.mxu0 %v6271
          %6352 = vmatprep.subr.mxu0 0.0
          %6353 = vmatpush1.msra.mxu0 %v6272
          %6354 = vmatprep.subr.mxu0 0.0
          %6355 = vmatpush1.msra.mxu0 %v6273
          %6356 = vmatprep.subr.mxu0 0.0
          %6357 = vmatpush1.msra.mxu0 %v6274
          %6358 = vmatprep.subr.mxu0 0.0
          %6359 = vmatpush1.msra.mxu0 %v6275
          %6360 = vmatprep.subr.mxu0 0.0
          %6361 = vmatpush1.msra.mxu0 %v6276
          %6362 = vmatprep.subr.mxu0 0.0
          %6363 = vmatpush1.msra.mxu0 %v6277
          %6364 = vmatprep.subr.mxu0 0.0
          %6365 = vmatpush1.msra.mxu0 %v6278
          %6366 = vmatprep.mubr.f32.mxu0 %v6299
          %6367 = vmatmul.mubr.f32.gmra.mrb[0].mxu0 %v6298
          %v6368 = vpop.f32.mrb[0].mxu0
          %v6369 = vadd.f32 %v6289, %v6368
          %v6370 = vpop.f32.mrb[0].mxu0
          %6371 = vdwg.mxu0
          %vm6372 = vcmask 66560
          %6373 = vst.msk [vmem:[%s352] sm:$0x3] %vm6372, %v6369
        $region60: #{lenet_forward.1} parent=39 // pred_fallthru
          _
        %p6374 = scmp.lt.s32.totalorder %s26, 1
        %s6375 = scalar_select %p6374, %s26, 1
        %s6376 = smul.addr %s6375, 2
        %s6377 = scalar_lea.vmem %s5, %s6376
        // Predicated region
        $region61: #{lenet_forward.1} parent=39 // pred_check
          %p6378 = pneg %p179
        $region62: #{lenet_forward.1} parent=39 // pred_check_branch
          %6380 = sbr.rel (%p6378) target = $region64
        $region63: #{lenet_forward.1} parent=39 // pred_region
          _
        $region64: #{lenet_forward.1} parent=39 // pred_fallthru
          _
      $region40: #{lenet_forward.1} parent=5 // pred_fallthru
        _
      %p6381 = scmp.le.s32.totalorder 2, %s17
      // Predicated region
      $region65: #{lenet_forward.1} parent=5 // pred_check
        %p6382 = pneg %p6381
      $region66: #{lenet_forward.1} parent=5 // pred_check_branch
        %6384 = sbr.rel (%p6382) target = $region68
      $region67: #{lenet_forward.1} parent=5 // pred_region
        %s6385 = ssub.s32 %s17, 2
        // Predicated region
        $region69: #{lenet_forward.1} parent=67 // pred_check
          %p6386 = pneg %p185
        $region70: #{lenet_forward.1} parent=67 // pred_check_branch
          %6388 = sbr.rel (%p6386) target = $region72
        $region71: #{lenet_forward.1} parent=67 // pred_region
          %p6389 = scmp.lt.s32.totalorder %s28, 1
          %s6390 = scalar_select %p6389, %s28, 1
          %s6391 = smul.addr %s6390, 2
          %s6392 = scalar_lea.vmem %s5, %s6391
        $region72: #{lenet_forward.1} parent=67 // pred_fallthru
          _
      $region68: #{lenet_forward.1} parent=5 // pred_fallthru
        _
    $region6: #{lenet_forward.1} parent=1 // loop_footer
      %s21 = sadd.s32 1, %s17
    $region7: #{lenet_forward.1} parent=1 // loop_footer_branch
      %16 = sbr.rel target = $region3
    $region8: #{lenet_forward.1} parent=1 // loop_exit
      _
    %6393 = vsyncpa [#allocation4], 1
    %s6394 = scalar_lea.sflag [#allocation4], 1
    %6395 = vsyncpa %s6394, 1
    %6396 = vsyncpa [#allocation6], 1
    %s6397 = scalar_lea.sflag [#allocation6], 1
    %6398 = vsyncpa %s6397, 1

</llo_original>
